<compile_context>
chip_gen: v7x
topology: tpu7x:2x2x1
jax: 0.10.0
libtpu: 0.0.40
codegen_flags: <defaults>
</compile_context>

<pallas_src>
import functools
import math

import jax
import jax.numpy as jnp
from jax.experimental import pallas as pl
from jax.experimental.pallas import tpu as pltpu

_SQRT_2_OVER_PI = math.sqrt(2.0 / math.pi)   # hoisted GELU constants
_GELU_CUBIC_COEF = 0.044715
_LN_EPS = 1e-5
_NEG_BIG = -1e30                              # causal mask value (avoids -inf NaNs)


def _gelu(v):
    # Exact tanh-approx GELU from the PyTorch module (tanh goes to the EUP slot).
    return 0.5 * v * (1.0 + jnp.tanh(_SQRT_2_OVER_PI * (v + _GELU_CUBIC_COEF * v * v * v)))


def _layernorm(x, scale, shift):
    mean = jnp.mean(x, axis=-1, keepdims=True)
    centered = x - mean
    var = jnp.mean(centered * centered, axis=-1, keepdims=True)   # unbiased=False
    return scale * (centered * jax.lax.rsqrt(var + _LN_EPS)) + shift


def _transformer_block_kernel(
    num_heads,
    x_ref,
    ln1_scale_ref, ln1_shift_ref,
    wqkv_ref, bqkv_ref, wo_ref, bo_ref,
    ln2_scale_ref, ln2_shift_ref,
    w1_ref, b1_ref, w2_ref, b2_ref,
    o_ref,
):
    """One (block_b, S, E) batch tile per grid step, flattened to (block_b*S, E)."""
    Bt, S, E = x_ref.shape
    M = Bt * S
    H = num_heads
    Dh = E // H
    inv_sqrt_dh = Dh ** -0.5

    x = x_ref[...].astype(jnp.float32).reshape(M, E)          # residual stream, f32

    # ---- LayerNorm 1 (f32 vector math) ----
    h = _layernorm(x, ln1_scale_ref[...], ln1_shift_ref[...])

    # ---- fused QKV projection: one (M,E)x(E,3E) bf16 MXU dot, f32 accumulation ----
    qkv = jnp.dot(h.astype(jnp.bfloat16), wqkv_ref[...],
                  preferred_element_type=jnp.float32) + bqkv_ref[...]
    q = qkv[:, 0 * E:1 * E]      # 128-aligned lane slices: tile-aligned, free
    k = qkv[:, 1 * E:2 * E]
    v = qkv[:, 2 * E:3 * E]

    # Causal mask shared by all heads, packed head-major: rows = h*S + i, cols = j.
    q_pos = jax.lax.broadcasted_iota(jnp.int32, (H, S, S), 1).reshape(H * S, S)
    k_pos = jax.lax.broadcasted_iota(jnp.int32, (H, S, S), 2).reshape(H * S, S)
    causal_packed = k_pos > q_pos                # True => future token (masked)

    # ---- causal multi-head self-attention ----
    ctx_rows = []
    for b in range(Bt):                          # static unroll, Bt is small
        rs = b * S
        qbT = q[rs:rs + S, :].T                  # (E, S): one transpose per sequence
        kbT = k[rs:rs + S, :].T                  # (E, S)
        vb = v[rs:rs + S, :]                     # (S, E)

        # scores for all heads -> one packed (H*S, S) tile, single masked softmax
        s_heads = []
        for hd in range(H):                      # static unroll, sublane slices only
            lo = hd * Dh
            s_heads.append(jax.lax.dot_general(  # == q_h @ k_h^T (both pre-transposed)
                qbT[lo:lo + Dh, :], kbT[lo:lo + Dh, :],
                (((0,), (0,)), ((), ())),
                preferred_element_type=jnp.float32))            # (S, S)
        s = jnp.concatenate(s_heads, axis=0) * inv_sqrt_dh       # (H*S, S)
        s = jnp.where(causal_packed, _NEG_BIG, s)

        m = jnp.max(s, axis=-1, keepdims=True)
        p = jnp.exp(s - m)
        denom = jnp.sum(p, axis=-1, keepdims=True)
        w = p * pl.reciprocal(denom, approx=True)   # EUP slot instead of VPU divide

        # per-head context, concatenated along lanes -> (S, E) for a full-K out-proj
        ctx_heads = []
        for hd in range(H):
            lo = hd * Dh
            ctx_heads.append(jnp.dot(w[hd * S:(hd + 1) * S, :], vb[:, lo:lo + Dh],
                                     preferred_element_type=jnp.float32))  # (S, Dh)
        ctx_rows.append(jnp.concatenate(ctx_heads, axis=1))                 # (S, E)
    ctx = jnp.concatenate(ctx_rows, axis=0)                                  # (M, E)

    # single full-K output projection (bf16 operands, f32 accumulation)
    attn = jnp.dot(ctx.astype(jnp.bfloat16), wo_ref[...],
                   preferred_element_type=jnp.float32) + bo_ref[...]

    # drop_shortcut / attention dropout are identity at inference (drop_rate=0).
    # TODO(synk): training-mode dropout (pltpu.prng_*) not implemented.
    x = x + attn

    # ---- LayerNorm 2 + FeedForward (Linear -> tanh-GELU -> Linear) ----
    h2 = _layernorm(x, ln2_scale_ref[...], ln2_shift_ref[...])
    f = jnp.dot(h2.astype(jnp.bfloat16), w1_ref[...],
                preferred_element_type=jnp.float32) + b1_ref[...]
    f = _gelu(f)
    f = jnp.dot(f.astype(jnp.bfloat16), w2_ref[...],
                preferred_element_type=jnp.float32) + b2_ref[...]
    x = x + f

    o_ref[...] = x.reshape(Bt, S, E).astype(o_ref.dtype)     # lane-dense (*, 128) store


def transformer_block(x, params, *, num_heads, block_b=None):
    """x: (B, S, E) float32.  Weights are stored (in, out), i.e. transposed vs
    PyTorch's (out, in), so the kernel computes y = x @ w + b.  Weights are cast
    to bf16 (MXU-native) in the wrapper; biases / LN params stay f32."""
    B, S, E = x.shape
    assert E % num_heads == 0, "num_heads must divide emb_dim"
    if block_b is None:
        # Fatten M = block_b*S while keeping >= 2 parallel grid steps (v7x: 2 TCs).
        block_b = B // 2 if (B % 2 == 0 and B >= 2) else B
    assert B % block_b == 0, "block_b must divide batch"

    bf16, f32 = jnp.bfloat16, jnp.float32
    wqkv = jnp.concatenate([params["wq"], params["wk"], params["wv"]], axis=1).astype(bf16)
    bqkv = jnp.concatenate([params["bq"], params["bk"], params["bv"]], axis=1).astype(f32)
    flat_params = [
        params["ln1_scale"].astype(f32), params["ln1_shift"].astype(f32),
        wqkv, bqkv,
        params["wo"].astype(bf16), params["bo"].astype(f32),
        params["ln2_scale"].astype(f32), params["ln2_shift"].astype(f32),
        params["w1"].astype(bf16), params["b1"].astype(f32),
        params["w2"].astype(bf16), params["b2"].astype(f32),
    ]

    in_specs = [pl.BlockSpec((block_b, S, E), lambda b: (b, 0, 0))]
    # Constant index_map -> weights/biases stay VMEM-resident across grid steps
    # (no re-DMA).  At large E, single-buffer these (pipeline_mode=pl.Buffered(1))
    # and set vmem_limit_bytes; at E=128 the default double buffers are negligible.
    in_specs += [pl.BlockSpec(p.shape, lambda b: (0, 0)) for p in flat_params]

    # TODO(synk): for long sequences, tile the query axis with a flash-style
    # online softmax instead of holding the packed (H*S, S) score tile.
    return pl.pallas_call(
        functools.partial(_transformer_block_kernel, num_heads),
        grid=(B // block_b,),
        in_specs=in_specs,
        out_specs=pl.BlockSpec((block_b, S, E), lambda b: (b, 0, 0)),
        out_shape=jax.ShapeDtypeStruct((B, S, E), x.dtype),
        compiler_params=pltpu.CompilerParams(
            dimension_semantics=("parallel",),    # v7x: two TCs split the batch tiles
        ),
    )(x, *flat_params)


def _reference(x, params, *, num_heads):
    """Pure-JAX f32 reference mirroring the PyTorch TransformerBlock.forward (eval)."""
    B, S, E = x.shape
    head_dim = E // num_heads

    def ln(v, scale, shift):
        mean = v.mean(-1, keepdims=True)
        var = ((v - mean) ** 2).mean(-1, keepdims=True)
        return scale * ((v - mean) * jax.lax.rsqrt(var + _LN_EPS)) + shift

    h = ln(x, params["ln1_scale"], params["ln1_shift"])
    q = h @ params["wq"] + params["bq"]
    k = h @ params["wk"] + params["bk"]
    v = h @ params["wv"] + params["bv"]
    q = q.reshape(B, S, num_heads, head_dim).transpose(0, 2, 1, 3)
    k = k.reshape(B, S, num_heads, head_dim).transpose(0, 2, 1, 3)
    v = v.reshape(B, S, num_heads, head_dim).transpose(0, 2, 1, 3)
    scores = (q @ jnp.swapaxes(k, -1, -2)) * (head_dim ** -0.5)
    mask = jnp.triu(jnp.ones((S, S), dtype=bool), k=1)
    scores = jnp.where(mask, -jnp.inf, scores)
    m = scores.max(-1, keepdims=True)
    p = jnp.exp(scores - m)
    w = p / p.sum(-1, keepdims=True)
    ctx = (w @ v).transpose(0, 2, 1, 3).reshape(B, S, E)
    attn = ctx @ params["wo"] + params["bo"]
    x = x + attn
    h2 = ln(x, params["ln2_scale"], params["ln2_shift"])
    f = _gelu(h2 @ params["w1"] + params["b1"])
    f = f @ params["w2"] + params["b2"]
    return x + f


def _init_params(key, emb_dim):
    """nn.Linear-style init U(-1/sqrt(fan_in), 1/sqrt(fan_in)); LN scale=1, shift=0."""
    hidden = 4 * emb_dim

    def linear(k, fan_in, fan_out):
        kw, kb = jax.random.split(k)
        bound = 1.0 / math.sqrt(fan_in)
        w = jax.random.uniform(kw, (fan_in, fan_out), jnp.float32, -bound, bound)
        b = jax.random.uniform(kb, (1, fan_out), jnp.float32, -bound, bound)
        return w, b

    keys = jax.random.split(key, 6)
    wq, bq = linear(keys[0], emb_dim, emb_dim)
    wk, bk = linear(keys[1], emb_dim, emb_dim)
    wv, bv = linear(keys[2], emb_dim, emb_dim)
    wo, bo = linear(keys[3], emb_dim, emb_dim)
    w1, b1 = linear(keys[4], emb_dim, hidden)
    w2, b2 = linear(keys[5], hidden, emb_dim)
    ones = jnp.ones((1, emb_dim), jnp.float32)
    zeros = jnp.zeros((1, emb_dim), jnp.float32)
    return dict(ln1_scale=ones, ln1_shift=zeros,
                wq=wq, bq=bq, wk=wk, bk=bk, wv=wv, bv=bv, wo=wo, bo=bo,
                ln2_scale=ones, ln2_shift=zeros,
                w1=w1, b1=b1, w2=w2, b2=b2)


if __name__ == "__main__":
    cfg = dict(emb_dim=128, n_heads=4, context_length=16, drop_rate=0.0, qkv_bias=True)
    B, S, E = 4, cfg["context_length"], cfg["emb_dim"]

    key = jax.random.PRNGKey(0)
    key, kx = jax.random.split(key)
    x = jax.random.normal(kx, (B, S, E), jnp.float32)
    params = _init_params(key, E)

    out = transformer_block(x, params, num_heads=cfg["n_heads"])
    out = jax.block_until_ready(out)

    ref = _reference(x, params, num_heads=cfg["n_heads"])
    assert out.shape == (B, S, E)
    max_err = float(jnp.max(jnp.abs(out - ref)))
    # bf16 MXU operands/weights vs the f32 reference -> looser tolerance (expected).
    assert jnp.allclose(out, ref, atol=3e-2, rtol=3e-2), f"max abs err {max_err}"

    print("KERNEL_OK")
</pallas_src>

<mosaic_0001>
module attributes {stable_mosaic.version = 11 : i64} {
  func.func @_transformer_block_kernel(%arg0: i32, %arg1: memref<2x16x128xf32, #tpu.memory_space<vmem>>, %arg2: memref<1x128xf32, #tpu.memory_space<vmem>>, %arg3: memref<1x128xf32, #tpu.memory_space<vmem>>, %arg4: memref<128x384xbf16, #tpu.memory_space<vmem>>, %arg5: memref<1x384xf32, #tpu.memory_space<vmem>>, %arg6: memref<128x128xbf16, #tpu.memory_space<vmem>>, %arg7: memref<1x128xf32, #tpu.memory_space<vmem>>, %arg8: memref<1x128xf32, #tpu.memory_space<vmem>>, %arg9: memref<1x128xf32, #tpu.memory_space<vmem>>, %arg10: memref<128x512xbf16, #tpu.memory_space<vmem>>, %arg11: memref<1x512xf32, #tpu.memory_space<vmem>>, %arg12: memref<512x128xbf16, #tpu.memory_space<vmem>>, %arg13: memref<1x128xf32, #tpu.memory_space<vmem>>, %arg14: memref<2x16x128xf32, #tpu.memory_space<vmem>>) attributes {dimension_semantics = [#tpu.dimension_semantics<parallel>], iteration_bounds = array<i64: 2>, scalar_prefetch = 0 : i64, scratch_operands = 0 : i64, tpu.core_type = #tpu.core_type<tc>, window_params = [{transform_indices = @transform_0, window_bounds = array<i64: 2, 16, 128>}, {pipeline_mode = #tpu.pipeline_mode<synchronous>, transform_indices = @transform_1, window_bounds = array<i64: 1, 128>}, {pipeline_mode = #tpu.pipeline_mode<synchronous>, transform_indices = @transform_2, window_bounds = array<i64: 1, 128>}, {pipeline_mode = #tpu.pipeline_mode<synchronous>, transform_indices = @transform_3, window_bounds = array<i64: 128, 384>}, {pipeline_mode = #tpu.pipeline_mode<synchronous>, transform_indices = @transform_4, window_bounds = array<i64: 1, 384>}, {pipeline_mode = #tpu.pipeline_mode<synchronous>, transform_indices = @transform_5, window_bounds = array<i64: 128, 128>}, {pipeline_mode = #tpu.pipeline_mode<synchronous>, transform_indices = @transform_6, window_bounds = array<i64: 1, 128>}, {pipeline_mode = #tpu.pipeline_mode<synchronous>, transform_indices = @transform_7, window_bounds = array<i64: 1, 128>}, {pipeline_mode = #tpu.pipeline_mode<synchronous>, transform_indices = @transform_8, window_bounds = array<i64: 1, 128>}, {pipeline_mode = #tpu.pipeline_mode<synchronous>, transform_indices = @transform_9, window_bounds = array<i64: 128, 512>}, {pipeline_mode = #tpu.pipeline_mode<synchronous>, transform_indices = @transform_10, window_bounds = array<i64: 1, 512>}, {pipeline_mode = #tpu.pipeline_mode<synchronous>, transform_indices = @transform_11, window_bounds = array<i64: 512, 128>}, {pipeline_mode = #tpu.pipeline_mode<synchronous>, transform_indices = @transform_12, window_bounds = array<i64: 1, 128>}, {transform_indices = @transform_13, window_bounds = array<i64: 2, 16, 128>}]} {
    %c0 = arith.constant 0 : index
    %c0_0 = arith.constant 0 : index
    %c0_1 = arith.constant 0 : index
    %0 = vector.load %arg1[%c0, %c0_0, %c0_1] : memref<2x16x128xf32, #tpu.memory_space<vmem>>, vector<2x16x128xf32>
    %1 = vector.shape_cast %0 : vector<2x16x128xf32> to vector<32x128xf32>
    %c0_2 = arith.constant 0 : index
    %c0_3 = arith.constant 0 : index
    %2 = vector.load %arg2[%c0_2, %c0_3] : memref<1x128xf32, #tpu.memory_space<vmem>>, vector<1x128xf32>
    %c0_4 = arith.constant 0 : index
    %c0_5 = arith.constant 0 : index
    %3 = vector.load %arg3[%c0_4, %c0_5] : memref<1x128xf32, #tpu.memory_space<vmem>>, vector<1x128xf32>
    %cst = arith.constant dense<0.000000e+00> : vector<32xf32>
    %4 = vector.multi_reduction <add>, %1, %cst [1] : vector<32x128xf32> to vector<32xf32>
    %5 = vector.shape_cast %4 : vector<32xf32> to vector<32x1xf32>
    %cst_6 = arith.constant 1.280000e+02 : f32
    %6 = vector.broadcast %cst_6 : f32 to vector<32x1xf32>
    %7 = arith.divf %5, %6 : vector<32x1xf32>
    %8 = vector.broadcast %7 : vector<32x1xf32> to vector<32x128xf32>
    %9 = arith.subf %1, %8 : vector<32x128xf32>
    %10 = arith.mulf %9, %9 : vector<32x128xf32>
    %cst_7 = arith.constant dense<0.000000e+00> : vector<32xf32>
    %11 = vector.multi_reduction <add>, %10, %cst_7 [1] : vector<32x128xf32> to vector<32xf32>
    %12 = vector.shape_cast %11 : vector<32xf32> to vector<32x1xf32>
    %cst_8 = arith.constant 1.280000e+02 : f32
    %13 = vector.broadcast %cst_8 : f32 to vector<32x1xf32>
    %14 = arith.divf %12, %13 : vector<32x1xf32>
    %cst_9 = arith.constant 9.99999974E-6 : f32
    %15 = vector.broadcast %cst_9 : f32 to vector<32x1xf32>
    %16 = arith.addf %14, %15 : vector<32x1xf32>
    %17 = math.rsqrt %16 : vector<32x1xf32>
    %18 = vector.broadcast %17 : vector<32x1xf32> to vector<32x128xf32>
    %19 = arith.mulf %9, %18 : vector<32x128xf32>
    %20 = vector.broadcast %2 : vector<1x128xf32> to vector<32x128xf32>
    %21 = arith.mulf %20, %19 : vector<32x128xf32>
    %22 = vector.broadcast %3 : vector<1x128xf32> to vector<32x128xf32>
    %23 = arith.addf %21, %22 : vector<32x128xf32>
    %24 = arith.truncf %23 : vector<32x128xf32> to vector<32x128xbf16>
    %c0_10 = arith.constant 0 : index
    %c0_11 = arith.constant 0 : index
    %25 = vector.load %arg4[%c0_10, %c0_11] : memref<128x384xbf16, #tpu.memory_space<vmem>>, vector<128x384xbf16>
    %cst_12 = arith.constant dense<0.000000e+00> : vector<32x384xf32>
    %26 = tpu.matmul %24, %25, %cst_12 {dimension_numbers = #tpu.dot_dimension_numbers<[1], [0], [0], [1], [0, 0, 1, 1], [], []>} : vector<32x128xbf16>, vector<128x384xbf16>, vector<32x384xf32> -> vector<32x384xf32>
    %c0_13 = arith.constant 0 : index
    %c0_14 = arith.constant 0 : index
    %27 = vector.load %arg5[%c0_13, %c0_14] : memref<1x384xf32, #tpu.memory_space<vmem>>, vector<1x384xf32>
    %28 = vector.broadcast %27 : vector<1x384xf32> to vector<32x384xf32>
    %29 = arith.addf %26, %28 : vector<32x384xf32>
    %30 = vector.extract_strided_slice %29 {offsets = [0, 0], sizes = [32, 128], strides = [1, 1]} : vector<32x384xf32> to vector<32x128xf32>
    %31 = vector.extract_strided_slice %29 {offsets = [0, 128], sizes = [32, 128], strides = [1, 1]} : vector<32x384xf32> to vector<32x128xf32>
    %32 = vector.extract_strided_slice %29 {offsets = [0, 256], sizes = [32, 128], strides = [1, 1]} : vector<32x384xf32> to vector<32x128xf32>
    %33 = tpu.iota {dimensions = array<i32: 1>} : vector<4x16x16xi32>
    %34 = vector.shape_cast %33 : vector<4x16x16xi32> to vector<64x16xi32>
    %35 = tpu.iota {dimensions = array<i32: 2>} : vector<4x16x16xi32>
    %36 = vector.shape_cast %35 : vector<4x16x16xi32> to vector<64x16xi32>
    %37 = arith.cmpi sgt, %36, %34 : vector<64x16xi32>
    %38 = vector.extract_strided_slice %30 {offsets = [0, 0], sizes = [16, 128], strides = [1, 1]} : vector<32x128xf32> to vector<16x128xf32>
    %39 = tpu.transpose %38, [1, 0] : vector<16x128xf32> -> vector<128x16xf32>
    %40 = vector.extract_strided_slice %31 {offsets = [0, 0], sizes = [16, 128], strides = [1, 1]} : vector<32x128xf32> to vector<16x128xf32>
    %41 = tpu.transpose %40, [1, 0] : vector<16x128xf32> -> vector<128x16xf32>
    %42 = vector.extract_strided_slice %32 {offsets = [0, 0], sizes = [16, 128], strides = [1, 1]} : vector<32x128xf32> to vector<16x128xf32>
    %43 = vector.extract_strided_slice %39 {offsets = [0, 0], sizes = [32, 16], strides = [1, 1]} : vector<128x16xf32> to vector<32x16xf32>
    %44 = vector.extract_strided_slice %41 {offsets = [0, 0], sizes = [32, 16], strides = [1, 1]} : vector<128x16xf32> to vector<32x16xf32>
    %cst_15 = arith.constant dense<0.000000e+00> : vector<16x16xf32>
    %45 = tpu.matmul %43, %44, %cst_15 {dimension_numbers = #tpu.dot_dimension_numbers<[0], [0], [1], [1], [0, 1, 1, 1], [], []>} : vector<32x16xf32>, vector<32x16xf32>, vector<16x16xf32> -> vector<16x16xf32>
    %46 = vector.extract_strided_slice %39 {offsets = [32, 0], sizes = [32, 16], strides = [1, 1]} : vector<128x16xf32> to vector<32x16xf32>
    %47 = vector.extract_strided_slice %41 {offsets = [32, 0], sizes = [32, 16], strides = [1, 1]} : vector<128x16xf32> to vector<32x16xf32>
    %cst_16 = arith.constant dense<0.000000e+00> : vector<16x16xf32>
    %48 = tpu.matmul %46, %47, %cst_16 {dimension_numbers = #tpu.dot_dimension_numbers<[0], [0], [1], [1], [0, 1, 1, 1], [], []>} : vector<32x16xf32>, vector<32x16xf32>, vector<16x16xf32> -> vector<16x16xf32>
    %49 = vector.extract_strided_slice %39 {offsets = [64, 0], sizes = [32, 16], strides = [1, 1]} : vector<128x16xf32> to vector<32x16xf32>
    %50 = vector.extract_strided_slice %41 {offsets = [64, 0], sizes = [32, 16], strides = [1, 1]} : vector<128x16xf32> to vector<32x16xf32>
    %cst_17 = arith.constant dense<0.000000e+00> : vector<16x16xf32>
    %51 = tpu.matmul %49, %50, %cst_17 {dimension_numbers = #tpu.dot_dimension_numbers<[0], [0], [1], [1], [0, 1, 1, 1], [], []>} : vector<32x16xf32>, vector<32x16xf32>, vector<16x16xf32> -> vector<16x16xf32>
    %52 = vector.extract_strided_slice %39 {offsets = [96, 0], sizes = [32, 16], strides = [1, 1]} : vector<128x16xf32> to vector<32x16xf32>
    %53 = vector.extract_strided_slice %41 {offsets = [96, 0], sizes = [32, 16], strides = [1, 1]} : vector<128x16xf32> to vector<32x16xf32>
    %cst_18 = arith.constant dense<0.000000e+00> : vector<16x16xf32>
    %54 = tpu.matmul %52, %53, %cst_18 {dimension_numbers = #tpu.dot_dimension_numbers<[0], [0], [1], [1], [0, 1, 1, 1], [], []>} : vector<32x16xf32>, vector<32x16xf32>, vector<16x16xf32> -> vector<16x16xf32>
    %55 = tpu.concatenate %45, %48, %51, %54 in 0 : vector<16x16xf32>, vector<16x16xf32>, vector<16x16xf32>, vector<16x16xf32> -> vector<64x16xf32>
    %cst_19 = arith.constant 0.176776692 : f32
    %56 = vector.broadcast %cst_19 : f32 to vector<64x16xf32>
    %57 = arith.mulf %55, %56 : vector<64x16xf32>
    %cst_20 = arith.constant -1.000000e+30 : f32
    %58 = vector.broadcast %cst_20 : f32 to vector<64x16xf32>
    %59 = arith.select %37, %58, %57 : vector<64x16xi1>, vector<64x16xf32>
    %cst_21 = arith.constant dense<0xFF800000> : vector<64xf32>
    %60 = vector.multi_reduction <maximumf>, %59, %cst_21 [1] : vector<64x16xf32> to vector<64xf32>
    %61 = vector.shape_cast %60 : vector<64xf32> to vector<64x1xf32>
    %62 = vector.broadcast %61 : vector<64x1xf32> to vector<64x16xf32>
    %63 = arith.subf %59, %62 : vector<64x16xf32>
    %64 = math.exp %63 : vector<64x16xf32>
    %cst_22 = arith.constant dense<0.000000e+00> : vector<64xf32>
    %65 = vector.multi_reduction <add>, %64, %cst_22 [1] : vector<64x16xf32> to vector<64xf32>
    %66 = vector.shape_cast %65 : vector<64xf32> to vector<64x1xf32>
    %67 = tpu.reciprocal %66 {approx = true} : vector<64x1xf32> -> vector<64x1xf32>
    %68 = vector.broadcast %67 : vector<64x1xf32> to vector<64x16xf32>
    %69 = arith.mulf %64, %68 : vector<64x16xf32>
    %70 = vector.extract_strided_slice %69 {offsets = [0, 0], sizes = [16, 16], strides = [1, 1]} : vector<64x16xf32> to vector<16x16xf32>
    %71 = vector.extract_strided_slice %42 {offsets = [0, 0], sizes = [16, 32], strides = [1, 1]} : vector<16x128xf32> to vector<16x32xf32>
    %cst_23 = arith.constant dense<0.000000e+00> : vector<16x32xf32>
    %72 = tpu.matmul %70, %71, %cst_23 {dimension_numbers = #tpu.dot_dimension_numbers<[1], [0], [0], [1], [0, 0, 1, 1], [], []>} : vector<16x16xf32>, vector<16x32xf32>, vector<16x32xf32> -> vector<16x32xf32>
    %73 = vector.extract_strided_slice %69 {offsets = [16, 0], sizes = [16, 16], strides = [1, 1]} : vector<64x16xf32> to vector<16x16xf32>
    %74 = vector.extract_strided_slice %42 {offsets = [0, 32], sizes = [16, 32], strides = [1, 1]} : vector<16x128xf32> to vector<16x32xf32>
    %cst_24 = arith.constant dense<0.000000e+00> : vector<16x32xf32>
    %75 = tpu.matmul %73, %74, %cst_24 {dimension_numbers = #tpu.dot_dimension_numbers<[1], [0], [0], [1], [0, 0, 1, 1], [], []>} : vector<16x16xf32>, vector<16x32xf32>, vector<16x32xf32> -> vector<16x32xf32>
    %76 = vector.extract_strided_slice %69 {offsets = [32, 0], sizes = [16, 16], strides = [1, 1]} : vector<64x16xf32> to vector<16x16xf32>
    %77 = vector.extract_strided_slice %42 {offsets = [0, 64], sizes = [16, 32], strides = [1, 1]} : vector<16x128xf32> to vector<16x32xf32>
    %cst_25 = arith.constant dense<0.000000e+00> : vector<16x32xf32>
    %78 = tpu.matmul %76, %77, %cst_25 {dimension_numbers = #tpu.dot_dimension_numbers<[1], [0], [0], [1], [0, 0, 1, 1], [], []>} : vector<16x16xf32>, vector<16x32xf32>, vector<16x32xf32> -> vector<16x32xf32>
    %79 = vector.extract_strided_slice %69 {offsets = [48, 0], sizes = [16, 16], strides = [1, 1]} : vector<64x16xf32> to vector<16x16xf32>
    %80 = vector.extract_strided_slice %42 {offsets = [0, 96], sizes = [16, 32], strides = [1, 1]} : vector<16x128xf32> to vector<16x32xf32>
    %cst_26 = arith.constant dense<0.000000e+00> : vector<16x32xf32>
    %81 = tpu.matmul %79, %80, %cst_26 {dimension_numbers = #tpu.dot_dimension_numbers<[1], [0], [0], [1], [0, 0, 1, 1], [], []>} : vector<16x16xf32>, vector<16x32xf32>, vector<16x32xf32> -> vector<16x32xf32>
    %82 = tpu.concatenate %72, %75, %78, %81 in 1 : vector<16x32xf32>, vector<16x32xf32>, vector<16x32xf32>, vector<16x32xf32> -> vector<16x128xf32>
    %83 = vector.extract_strided_slice %30 {offsets = [16, 0], sizes = [16, 128], strides = [1, 1]} : vector<32x128xf32> to vector<16x128xf32>
    %84 = tpu.transpose %83, [1, 0] : vector<16x128xf32> -> vector<128x16xf32>
    %85 = vector.extract_strided_slice %31 {offsets = [16, 0], sizes = [16, 128], strides = [1, 1]} : vector<32x128xf32> to vector<16x128xf32>
    %86 = tpu.transpose %85, [1, 0] : vector<16x128xf32> -> vector<128x16xf32>
    %87 = vector.extract_strided_slice %32 {offsets = [16, 0], sizes = [16, 128], strides = [1, 1]} : vector<32x128xf32> to vector<16x128xf32>
    %88 = vector.extract_strided_slice %84 {offsets = [0, 0], sizes = [32, 16], strides = [1, 1]} : vector<128x16xf32> to vector<32x16xf32>
    %89 = vector.extract_strided_slice %86 {offsets = [0, 0], sizes = [32, 16], strides = [1, 1]} : vector<128x16xf32> to vector<32x16xf32>
    %cst_27 = arith.constant dense<0.000000e+00> : vector<16x16xf32>
    %90 = tpu.matmul %88, %89, %cst_27 {dimension_numbers = #tpu.dot_dimension_numbers<[0], [0], [1], [1], [0, 1, 1, 1], [], []>} : vector<32x16xf32>, vector<32x16xf32>, vector<16x16xf32> -> vector<16x16xf32>
    %91 = vector.extract_strided_slice %84 {offsets = [32, 0], sizes = [32, 16], strides = [1, 1]} : vector<128x16xf32> to vector<32x16xf32>
    %92 = vector.extract_strided_slice %86 {offsets = [32, 0], sizes = [32, 16], strides = [1, 1]} : vector<128x16xf32> to vector<32x16xf32>
    %cst_28 = arith.constant dense<0.000000e+00> : vector<16x16xf32>
    %93 = tpu.matmul %91, %92, %cst_28 {dimension_numbers = #tpu.dot_dimension_numbers<[0], [0], [1], [1], [0, 1, 1, 1], [], []>} : vector<32x16xf32>, vector<32x16xf32>, vector<16x16xf32> -> vector<16x16xf32>
    %94 = vector.extract_strided_slice %84 {offsets = [64, 0], sizes = [32, 16], strides = [1, 1]} : vector<128x16xf32> to vector<32x16xf32>
    %95 = vector.extract_strided_slice %86 {offsets = [64, 0], sizes = [32, 16], strides = [1, 1]} : vector<128x16xf32> to vector<32x16xf32>
    %cst_29 = arith.constant dense<0.000000e+00> : vector<16x16xf32>
    %96 = tpu.matmul %94, %95, %cst_29 {dimension_numbers = #tpu.dot_dimension_numbers<[0], [0], [1], [1], [0, 1, 1, 1], [], []>} : vector<32x16xf32>, vector<32x16xf32>, vector<16x16xf32> -> vector<16x16xf32>
    %97 = vector.extract_strided_slice %84 {offsets = [96, 0], sizes = [32, 16], strides = [1, 1]} : vector<128x16xf32> to vector<32x16xf32>
    %98 = vector.extract_strided_slice %86 {offsets = [96, 0], sizes = [32, 16], strides = [1, 1]} : vector<128x16xf32> to vector<32x16xf32>
    %cst_30 = arith.constant dense<0.000000e+00> : vector<16x16xf32>
    %99 = tpu.matmul %97, %98, %cst_30 {dimension_numbers = #tpu.dot_dimension_numbers<[0], [0], [1], [1], [0, 1, 1, 1], [], []>} : vector<32x16xf32>, vector<32x16xf32>, vector<16x16xf32> -> vector<16x16xf32>
    %100 = tpu.concatenate %90, %93, %96, %99 in 0 : vector<16x16xf32>, vector<16x16xf32>, vector<16x16xf32>, vector<16x16xf32> -> vector<64x16xf32>
    %cst_31 = arith.constant 0.176776692 : f32
    %101 = vector.broadcast %cst_31 : f32 to vector<64x16xf32>
    %102 = arith.mulf %100, %101 : vector<64x16xf32>
    %cst_32 = arith.constant -1.000000e+30 : f32
    %103 = vector.broadcast %cst_32 : f32 to vector<64x16xf32>
    %104 = arith.select %37, %103, %102 : vector<64x16xi1>, vector<64x16xf32>
    %cst_33 = arith.constant dense<0xFF800000> : vector<64xf32>
    %105 = vector.multi_reduction <maximumf>, %104, %cst_33 [1] : vector<64x16xf32> to vector<64xf32>
    %106 = vector.shape_cast %105 : vector<64xf32> to vector<64x1xf32>
    %107 = vector.broadcast %106 : vector<64x1xf32> to vector<64x16xf32>
    %108 = arith.subf %104, %107 : vector<64x16xf32>
    %109 = math.exp %108 : vector<64x16xf32>
    %cst_34 = arith.constant dense<0.000000e+00> : vector<64xf32>
    %110 = vector.multi_reduction <add>, %109, %cst_34 [1] : vector<64x16xf32> to vector<64xf32>
    %111 = vector.shape_cast %110 : vector<64xf32> to vector<64x1xf32>
    %112 = tpu.reciprocal %111 {approx = true} : vector<64x1xf32> -> vector<64x1xf32>
    %113 = vector.broadcast %112 : vector<64x1xf32> to vector<64x16xf32>
    %114 = arith.mulf %109, %113 : vector<64x16xf32>
    %115 = vector.extract_strided_slice %114 {offsets = [0, 0], sizes = [16, 16], strides = [1, 1]} : vector<64x16xf32> to vector<16x16xf32>
    %116 = vector.extract_strided_slice %87 {offsets = [0, 0], sizes = [16, 32], strides = [1, 1]} : vector<16x128xf32> to vector<16x32xf32>
    %cst_35 = arith.constant dense<0.000000e+00> : vector<16x32xf32>
    %117 = tpu.matmul %115, %116, %cst_35 {dimension_numbers = #tpu.dot_dimension_numbers<[1], [0], [0], [1], [0, 0, 1, 1], [], []>} : vector<16x16xf32>, vector<16x32xf32>, vector<16x32xf32> -> vector<16x32xf32>
    %118 = vector.extract_strided_slice %114 {offsets = [16, 0], sizes = [16, 16], strides = [1, 1]} : vector<64x16xf32> to vector<16x16xf32>
    %119 = vector.extract_strided_slice %87 {offsets = [0, 32], sizes = [16, 32], strides = [1, 1]} : vector<16x128xf32> to vector<16x32xf32>
    %cst_36 = arith.constant dense<0.000000e+00> : vector<16x32xf32>
    %120 = tpu.matmul %118, %119, %cst_36 {dimension_numbers = #tpu.dot_dimension_numbers<[1], [0], [0], [1], [0, 0, 1, 1], [], []>} : vector<16x16xf32>, vector<16x32xf32>, vector<16x32xf32> -> vector<16x32xf32>
    %121 = vector.extract_strided_slice %114 {offsets = [32, 0], sizes = [16, 16], strides = [1, 1]} : vector<64x16xf32> to vector<16x16xf32>
    %122 = vector.extract_strided_slice %87 {offsets = [0, 64], sizes = [16, 32], strides = [1, 1]} : vector<16x128xf32> to vector<16x32xf32>
    %cst_37 = arith.constant dense<0.000000e+00> : vector<16x32xf32>
    %123 = tpu.matmul %121, %122, %cst_37 {dimension_numbers = #tpu.dot_dimension_numbers<[1], [0], [0], [1], [0, 0, 1, 1], [], []>} : vector<16x16xf32>, vector<16x32xf32>, vector<16x32xf32> -> vector<16x32xf32>
    %124 = vector.extract_strided_slice %114 {offsets = [48, 0], sizes = [16, 16], strides = [1, 1]} : vector<64x16xf32> to vector<16x16xf32>
    %125 = vector.extract_strided_slice %87 {offsets = [0, 96], sizes = [16, 32], strides = [1, 1]} : vector<16x128xf32> to vector<16x32xf32>
    %cst_38 = arith.constant dense<0.000000e+00> : vector<16x32xf32>
    %126 = tpu.matmul %124, %125, %cst_38 {dimension_numbers = #tpu.dot_dimension_numbers<[1], [0], [0], [1], [0, 0, 1, 1], [], []>} : vector<16x16xf32>, vector<16x32xf32>, vector<16x32xf32> -> vector<16x32xf32>
    %127 = tpu.concatenate %117, %120, %123, %126 in 1 : vector<16x32xf32>, vector<16x32xf32>, vector<16x32xf32>, vector<16x32xf32> -> vector<16x128xf32>
    %128 = tpu.concatenate %82, %127 in 0 : vector<16x128xf32>, vector<16x128xf32> -> vector<32x128xf32>
    %129 = arith.truncf %128 : vector<32x128xf32> to vector<32x128xbf16>
    %c0_39 = arith.constant 0 : index
    %c0_40 = arith.constant 0 : index
    %130 = vector.load %arg6[%c0_39, %c0_40] : memref<128x128xbf16, #tpu.memory_space<vmem>>, vector<128x128xbf16>
    %cst_41 = arith.constant dense<0.000000e+00> : vector<32x128xf32>
    %131 = tpu.matmul %129, %130, %cst_41 {dimension_numbers = #tpu.dot_dimension_numbers<[1], [0], [0], [1], [0, 0, 1, 1], [], []>} : vector<32x128xbf16>, vector<128x128xbf16>, vector<32x128xf32> -> vector<32x128xf32>
    %c0_42 = arith.constant 0 : index
    %c0_43 = arith.constant 0 : index
    %132 = vector.load %arg7[%c0_42, %c0_43] : memref<1x128xf32, #tpu.memory_space<vmem>>, vector<1x128xf32>
    %133 = vector.broadcast %132 : vector<1x128xf32> to vector<32x128xf32>
    %134 = arith.addf %131, %133 : vector<32x128xf32>
    %135 = arith.addf %1, %134 : vector<32x128xf32>
    %c0_44 = arith.constant 0 : index
    %c0_45 = arith.constant 0 : index
    %136 = vector.load %arg8[%c0_44, %c0_45] : memref<1x128xf32, #tpu.memory_space<vmem>>, vector<1x128xf32>
    %c0_46 = arith.constant 0 : index
    %c0_47 = arith.constant 0 : index
    %137 = vector.load %arg9[%c0_46, %c0_47] : memref<1x128xf32, #tpu.memory_space<vmem>>, vector<1x128xf32>
    %cst_48 = arith.constant dense<0.000000e+00> : vector<32xf32>
    %138 = vector.multi_reduction <add>, %135, %cst_48 [1] : vector<32x128xf32> to vector<32xf32>
    %139 = vector.shape_cast %138 : vector<32xf32> to vector<32x1xf32>
    %cst_49 = arith.constant 1.280000e+02 : f32
    %140 = vector.broadcast %cst_49 : f32 to vector<32x1xf32>
    %141 = arith.divf %139, %140 : vector<32x1xf32>
    %142 = vector.broadcast %141 : vector<32x1xf32> to vector<32x128xf32>
    %143 = arith.subf %135, %142 : vector<32x128xf32>
    %144 = arith.mulf %143, %143 : vector<32x128xf32>
    %cst_50 = arith.constant dense<0.000000e+00> : vector<32xf32>
    %145 = vector.multi_reduction <add>, %144, %cst_50 [1] : vector<32x128xf32> to vector<32xf32>
    %146 = vector.shape_cast %145 : vector<32xf32> to vector<32x1xf32>
    %cst_51 = arith.constant 1.280000e+02 : f32
    %147 = vector.broadcast %cst_51 : f32 to vector<32x1xf32>
    %148 = arith.divf %146, %147 : vector<32x1xf32>
    %cst_52 = arith.constant 9.99999974E-6 : f32
    %149 = vector.broadcast %cst_52 : f32 to vector<32x1xf32>
    %150 = arith.addf %148, %149 : vector<32x1xf32>
    %151 = math.rsqrt %150 : vector<32x1xf32>
    %152 = vector.broadcast %151 : vector<32x1xf32> to vector<32x128xf32>
    %153 = arith.mulf %143, %152 : vector<32x128xf32>
    %154 = vector.broadcast %136 : vector<1x128xf32> to vector<32x128xf32>
    %155 = arith.mulf %154, %153 : vector<32x128xf32>
    %156 = vector.broadcast %137 : vector<1x128xf32> to vector<32x128xf32>
    %157 = arith.addf %155, %156 : vector<32x128xf32>
    %158 = arith.truncf %157 : vector<32x128xf32> to vector<32x128xbf16>
    %c0_53 = arith.constant 0 : index
    %c0_54 = arith.constant 0 : index
    %159 = vector.load %arg10[%c0_53, %c0_54] : memref<128x512xbf16, #tpu.memory_space<vmem>>, vector<128x512xbf16>
    %cst_55 = arith.constant dense<0.000000e+00> : vector<32x512xf32>
    %160 = tpu.matmul %158, %159, %cst_55 {dimension_numbers = #tpu.dot_dimension_numbers<[1], [0], [0], [1], [0, 0, 1, 1], [], []>} : vector<32x128xbf16>, vector<128x512xbf16>, vector<32x512xf32> -> vector<32x512xf32>
    %c0_56 = arith.constant 0 : index
    %c0_57 = arith.constant 0 : index
    %161 = vector.load %arg11[%c0_56, %c0_57] : memref<1x512xf32, #tpu.memory_space<vmem>>, vector<1x512xf32>
    %162 = vector.broadcast %161 : vector<1x512xf32> to vector<32x512xf32>
    %163 = arith.addf %160, %162 : vector<32x512xf32>
    %cst_58 = arith.constant 5.000000e-01 : f32
    %164 = vector.broadcast %cst_58 : f32 to vector<32x512xf32>
    %165 = arith.mulf %164, %163 : vector<32x512xf32>
    %cst_59 = arith.constant 4.471500e-02 : f32
    %166 = vector.broadcast %cst_59 : f32 to vector<32x512xf32>
    %167 = arith.mulf %166, %163 : vector<32x512xf32>
    %168 = arith.mulf %167, %163 : vector<32x512xf32>
    %169 = arith.mulf %168, %163 : vector<32x512xf32>
    %170 = arith.addf %163, %169 : vector<32x512xf32>
    %cst_60 = arith.constant 0.797884583 : f32
    %171 = vector.broadcast %cst_60 : f32 to vector<32x512xf32>
    %172 = arith.mulf %171, %170 : vector<32x512xf32>
    %173 = math.tanh %172 : vector<32x512xf32>
    %cst_61 = arith.constant 1.000000e+00 : f32
    %174 = vector.broadcast %cst_61 : f32 to vector<32x512xf32>
    %175 = arith.addf %174, %173 : vector<32x512xf32>
    %176 = arith.mulf %165, %175 : vector<32x512xf32>
    %177 = arith.truncf %176 : vector<32x512xf32> to vector<32x512xbf16>
    %c0_62 = arith.constant 0 : index
    %c0_63 = arith.constant 0 : index
    %178 = vector.load %arg12[%c0_62, %c0_63] : memref<512x128xbf16, #tpu.memory_space<vmem>>, vector<512x128xbf16>
    %cst_64 = arith.constant dense<0.000000e+00> : vector<32x128xf32>
    %179 = tpu.matmul %177, %178, %cst_64 {dimension_numbers = #tpu.dot_dimension_numbers<[1], [0], [0], [1], [0, 0, 1, 1], [], []>} : vector<32x512xbf16>, vector<512x128xbf16>, vector<32x128xf32> -> vector<32x128xf32>
    %c0_65 = arith.constant 0 : index
    %c0_66 = arith.constant 0 : index
    %180 = vector.load %arg13[%c0_65, %c0_66] : memref<1x128xf32, #tpu.memory_space<vmem>>, vector<1x128xf32>
    %181 = vector.broadcast %180 : vector<1x128xf32> to vector<32x128xf32>
    %182 = arith.addf %179, %181 : vector<32x128xf32>
    %183 = arith.addf %135, %182 : vector<32x128xf32>
    %184 = vector.shape_cast %183 : vector<32x128xf32> to vector<2x16x128xf32>
    %c0_67 = arith.constant 0 : index
    %c0_68 = arith.constant 0 : index
    %c0_69 = arith.constant 0 : index
    %185 = vector.load %arg14[%c0_67, %c0_68, %c0_69] : memref<2x16x128xf32, #tpu.memory_space<vmem>>, vector<2x16x128xf32>
    tpu.vector_store %arg14[%c0_67, %c0_68, %c0_69], %184 {strides = array<i32>} : memref<2x16x128xf32, #tpu.memory_space<vmem>>, vector<2x16x128xf32>,
    return
  }
  func.func @transform_0(%arg0: i32) -> (i32, i32, i32) {
    %c0_i32 = arith.constant 0 : i32
    %c0_i32_0 = arith.constant 0 : i32
    %c0_i32_1 = arith.constant 0 : i32
    return %arg0, %c0_i32, %c0_i32_0 : i32, i32, i32
  }
  func.func @transform_1(%arg0: i32) -> (i32, i32) {
    %c0_i32 = arith.constant 0 : i32
    %c0_i32_0 = arith.constant 0 : i32
    %c0_i32_1 = arith.constant 0 : i32
    return %c0_i32, %c0_i32_0 : i32, i32
  }
  func.func @transform_2(%arg0: i32) -> (i32, i32) {
    %c0_i32 = arith.constant 0 : i32
    %c0_i32_0 = arith.constant 0 : i32
    %c0_i32_1 = arith.constant 0 : i32
    return %c0_i32, %c0_i32_0 : i32, i32
  }
  func.func @transform_3(%arg0: i32) -> (i32, i32) {
    %c0_i32 = arith.constant 0 : i32
    %c0_i32_0 = arith.constant 0 : i32
    %c0_i32_1 = arith.constant 0 : i32
    return %c0_i32, %c0_i32_0 : i32, i32
  }
  func.func @transform_4(%arg0: i32) -> (i32, i32) {
    %c0_i32 = arith.constant 0 : i32
    %c0_i32_0 = arith.constant 0 : i32
    %c0_i32_1 = arith.constant 0 : i32
    return %c0_i32, %c0_i32_0 : i32, i32
  }
  func.func @transform_5(%arg0: i32) -> (i32, i32) {
    %c0_i32 = arith.constant 0 : i32
    %c0_i32_0 = arith.constant 0 : i32
    %c0_i32_1 = arith.constant 0 : i32
    return %c0_i32, %c0_i32_0 : i32, i32
  }
  func.func @transform_6(%arg0: i32) -> (i32, i32) {
    %c0_i32 = arith.constant 0 : i32
    %c0_i32_0 = arith.constant 0 : i32
    %c0_i32_1 = arith.constant 0 : i32
    return %c0_i32, %c0_i32_0 : i32, i32
  }
  func.func @transform_7(%arg0: i32) -> (i32, i32) {
    %c0_i32 = arith.constant 0 : i32
    %c0_i32_0 = arith.constant 0 : i32
    %c0_i32_1 = arith.constant 0 : i32
    return %c0_i32, %c0_i32_0 : i32, i32
  }
  func.func @transform_8(%arg0: i32) -> (i32, i32) {
    %c0_i32 = arith.constant 0 : i32
    %c0_i32_0 = arith.constant 0 : i32
    %c0_i32_1 = arith.constant 0 : i32
    return %c0_i32, %c0_i32_0 : i32, i32
  }
  func.func @transform_9(%arg0: i32) -> (i32, i32) {
    %c0_i32 = arith.constant 0 : i32
    %c0_i32_0 = arith.constant 0 : i32
    %c0_i32_1 = arith.constant 0 : i32
    return %c0_i32, %c0_i32_0 : i32, i32
  }
  func.func @transform_10(%arg0: i32) -> (i32, i32) {
    %c0_i32 = arith.constant 0 : i32
    %c0_i32_0 = arith.constant 0 : i32
    %c0_i32_1 = arith.constant 0 : i32
    return %c0_i32, %c0_i32_0 : i32, i32
  }
  func.func @transform_11(%arg0: i32) -> (i32, i32) {
    %c0_i32 = arith.constant 0 : i32
    %c0_i32_0 = arith.constant 0 : i32
    %c0_i32_1 = arith.constant 0 : i32
    return %c0_i32, %c0_i32_0 : i32, i32
  }
  func.func @transform_12(%arg0: i32) -> (i32, i32) {
    %c0_i32 = arith.constant 0 : i32
    %c0_i32_0 = arith.constant 0 : i32
    %c0_i32_1 = arith.constant 0 : i32
    return %c0_i32, %c0_i32_0 : i32, i32
  }
  func.func @transform_13(%arg0: i32) -> (i32, i32, i32) {
    %c0_i32 = arith.constant 0 : i32
    %c0_i32_0 = arith.constant 0 : i32
    %c0_i32_1 = arith.constant 0 : i32
    return %arg0, %c0_i32, %c0_i32_0 : i32, i32, i32
  }
}

</mosaic_0001>

<llo_original>
// kernel: tpu_custom_call.1
$region0: #{tpu_custom_call.1}
  #allocation0 [shape = 'u32[]', space=smem, size = 0x4, offset = 0x4, fixed_abs, tag = 'smem constant byte address 0x4 - core index']
  #allocation1 [shape = 'u32[144,128]{1,0:T(1,128)}', space=vmem, size = 0x12000, scoped, tag = 'internal scratch']
  %s0 = inlined_call_operand.hbm [shape: f32[4,16,128], index: 0, kind: input, shape index: {}]
  %s1 = inlined_call_operand.hbm [shape: f32[1,128], index: 1, kind: input, shape index: {}]
  %s2 = inlined_call_operand.hbm [shape: f32[1,128], index: 2, kind: input, shape index: {}]
  %s3 = inlined_call_operand.hbm [shape: bf16[128,384], index: 3, kind: input, shape index: {}]
  %s4 = inlined_call_operand.vmem [shape: f32[1,384], index: 4, kind: input, shape index: {}]
  %s5 = inlined_call_operand.hbm [shape: bf16[128,128], index: 5, kind: input, shape index: {}]
  %s6 = inlined_call_operand.vmem [shape: f32[1,128], index: 6, kind: input, shape index: {}]
  %s7 = inlined_call_operand.vmem [shape: f32[1,128], index: 7, kind: input, shape index: {}]
  %s8 = inlined_call_operand.vmem [shape: f32[1,128], index: 8, kind: input, shape index: {}]
  %s9 = inlined_call_operand.hbm [shape: bf16[128,512], index: 9, kind: input, shape index: {}]
  %s10 = inlined_call_operand.vmem [shape: f32[1,512], index: 10, kind: input, shape index: {}]
  %s11 = inlined_call_operand.hbm [shape: bf16[512,128], index: 11, kind: input, shape index: {}]
  %s12 = inlined_call_operand.vmem [shape: f32[1,128], index: 12, kind: input, shape index: {}]
  %s13 = inlined_call_operand.hbm [shape: f32[4,16,128], index: 13, kind: output, shape index: {}]
  %s14 = sld [smem:[#allocation0]]
  $region113: #{tpu_custom_call.1} parent=0
    _
  %s16 = ssub.s32 1, %s14
  %s17 = scalar_select 0, %s16, %s14
  $region1: #{tpu_custom_call.1} parent=0
    #allocation2 [shape = 'u8[32768]{0}', space=vmem, size = 0x8000, scoped, tag = 'input window, operand 0']
    #allocation3 [shape = 's32[2]{0}', space=sflag, size = 0x8, scoped, tag = 'scoped memory for tpu_custom_call.1']
    #allocation4 [shape = 's32[2]{0}', space=sflag, size = 0x8, scoped, tag = 'scoped memory for tpu_custom_call.1']
    #allocation5 [shape = 'u8[512]{0}', space=vmem, size = 0x400, scoped, tag = 'input window, operand 1, single buffered']
    #allocation6 [shape = 's32[1]{0}', space=sflag, size = 0x4, scoped, tag = 'scoped memory for tpu_custom_call.1']
    #allocation7 [shape = 'u8[512]{0}', space=vmem, size = 0x400, scoped, tag = 'input window, operand 2, single buffered']
    #allocation8 [shape = 'u8[98304]{0}', space=vmem, size = 0x18000, scoped, tag = 'input window, operand 3, single buffered']
    #allocation9 [shape = 's32[1]{0}', space=sflag, size = 0x4, scoped, tag = 'scoped memory for tpu_custom_call.1']
    #allocation10 [shape = 'u8[32768]{0}', space=vmem, size = 0x8000, scoped, tag = 'input window, operand 5, single buffered']
    #allocation11 [shape = 'u8[131072]{0}', space=vmem, size = 0x20000, scoped, tag = 'input window, operand 9, single buffered']
    #allocation12 [shape = 's32[1]{0}', space=sflag, size = 0x4, scoped, tag = 'scoped memory for tpu_custom_call.1']
    #allocation13 [shape = 'u8[131072]{0}', space=vmem, size = 0x20000, scoped, tag = 'input window, operand 11, single buffered']
    #allocation14 [shape = 'u8[32768]{0}', space=vmem, size = 0x8000, scoped, tag = 'output window, operand 0']
    %18 = vsyncpa [#allocation3], 0
    %s19 = scalar_lea.sflag [#allocation3], 1
    %20 = vsyncpa %s19, 0
    %21 = vsyncpa [#allocation6], 0
    %22 = vsyncpa [#allocation9], 0
    %23 = vsyncpa [#allocation12], 0
    %24 = vsyncpa [#allocation4], 0
    %s25 = scalar_lea.sflag [#allocation4], 1
    %26 = vsyncpa %s25, 0
    loop: start=0, step=1, limit=4
    $region2: #{tpu_custom_call.1} parent=1 // loop_pre_header
      _
    $region3: #{tpu_custom_call.1} parent=1 // loop_header
      %s28 = sphi 0, %s32
      %p29 = scmp.ge.s32.totalorder %s28, 4
      %s38 = sphi 0, %s40
      %s41 = sphi 0, %s38
      %s42 = sphi 0, %s41
      %s58 = sphi 0, %s42
      %s62 = sphi 0, %s62
      %s64 = sphi 0, %s62
      %s65 = sphi 0, %s64
      %s79 = sphi 0, %s65
      %s83 = sphi 0, %s83
      %s85 = sphi 0, %s83
      %s86 = sphi 0, %s85
      %s100 = sphi 0, %s86
      %s104 = sphi 0, %s104
      %s106 = sphi 0, %s104
      %s107 = sphi 0, %s106
      %s121 = sphi 0, %s107
      %s125 = sphi 0, %s125
      %s127 = sphi 0, %s125
      %s128 = sphi 0, %s127
      %s142 = sphi 0, %s128
      %s146 = sphi 0, %s146
      %s148 = sphi 0, %s146
      %s149 = sphi 0, %s148
      %s163 = sphi 0, %s149
      %s167 = sphi 0, %s167
      %s169 = sphi 0, %s167
      %s170 = sphi 0, %s169
      %s184 = sphi 0, %s170
      %s188 = sphi 0, %s188
      %s190 = sphi 0, %s188
      %s191 = sphi 0, %s190
      %s205 = sphi 0, %s191
      %s209 = sphi 0, %s209
      %s211 = sphi 0, %s209
      %s212 = sphi 0, %s211
      %s226 = sphi 0, %s212
      %s230 = sphi 0, %s230
      %s232 = sphi 0, %s230
      %s233 = sphi 0, %s232
      %s247 = sphi 0, %s233
      %s251 = sphi 0, %s251
      %s253 = sphi 0, %s251
      %s254 = sphi 0, %s253
      %s268 = sphi 0, %s254
      %s272 = sphi 0, %s272
      %s274 = sphi 0, %s272
      %s275 = sphi 0, %s274
      %s289 = sphi 0, %s275
      %s293 = sphi 0, %s293
      %s295 = sphi 0, %s293
      %s296 = sphi 0, %s295
      %s310 = sphi 0, %s296
      %s316 = sphi 0, %s318
      %s319 = sphi 0, %s316
      %s320 = sphi 0, %s319
      %s336 = sphi 0, %s320
    $region4: #{tpu_custom_call.1} parent=1 // loop_header_branch
      %31 = sbr.rel (%p29) target = $region8
    $region5: #{tpu_custom_call.1} parent=1 // loop_body
      %s33 = ssub.s32 %s28, 1
      %s34 = ssub.s32 %s28, 2
      %s35 = sadd.s32 %s28, 1
      %s36 = ssub.s32 %s28, %s35
      %p37 = scmp.eq.s32.totalorder %s36, 0
      %s39 = sadd.s32 %s38, 1
      %s40 = scalar_select %p37, %s38, %s39
      %p43 = pneg %p37
      %p44 = scmp.eq.s32.totalorder %s28, 1
      %p45 = por %p43, %p44
      %p46 = scmp.ne.s32.totalorder %s38, %s41
      %p47 = scmp.eq.s32.totalorder %s28, 0
      %p48 = por %p46, %p47
      %p49 = scmp.ne.s32.totalorder %s38, %s41
      %p50 = scmp.eq.s32.totalorder %s33, 1
      %p51 = por %p49, %p50
      %p52 = scmp.ne.s32.totalorder %s41, %s42
      %p53 = scmp.eq.s32.totalorder %s33, 0
      %p54 = por %p52, %p53
      %p55 = scmp.ne.s32.totalorder %s41, %s42
      %p56 = scmp.eq.s32.totalorder %s34, 1
      %p57 = por %p55, %p56
      %p59 = scmp.ne.s32.totalorder %s42, %s58
      %p60 = scmp.eq.s32.totalorder %s34, 0
      %p61 = por %p59, %p60
      %s63 = sadd.s32 %s62, 1
      %p66 = scmp.eq.s32.totalorder %s28, 1
      %p67 = scmp.ne.s32.totalorder %s62, %s64
      %p68 = scmp.eq.s32.totalorder %s28, 0
      %p69 = por %p67, %p68
      %p70 = scmp.ne.s32.totalorder %s62, %s64
      %p71 = scmp.eq.s32.totalorder %s33, 1
      %p72 = por %p70, %p71
      %p73 = scmp.ne.s32.totalorder %s64, %s65
      %p74 = scmp.eq.s32.totalorder %s33, 0
      %p75 = por %p73, %p74
      %p76 = scmp.ne.s32.totalorder %s64, %s65
      %p77 = scmp.eq.s32.totalorder %s34, 1
      %p78 = por %p76, %p77
      %p80 = scmp.ne.s32.totalorder %s65, %s79
      %p81 = scmp.eq.s32.totalorder %s34, 0
      %p82 = por %p80, %p81
      %s84 = sadd.s32 %s83, 1
      %p87 = scmp.eq.s32.totalorder %s28, 1
      %p88 = scmp.ne.s32.totalorder %s83, %s85
      %p89 = scmp.eq.s32.totalorder %s28, 0
      %p90 = por %p88, %p89
      %p91 = scmp.ne.s32.totalorder %s83, %s85
      %p92 = scmp.eq.s32.totalorder %s33, 1
      %p93 = por %p91, %p92
      %p94 = scmp.ne.s32.totalorder %s85, %s86
      %p95 = scmp.eq.s32.totalorder %s33, 0
      %p96 = por %p94, %p95
      %p97 = scmp.ne.s32.totalorder %s85, %s86
      %p98 = scmp.eq.s32.totalorder %s34, 1
      %p99 = por %p97, %p98
      %p101 = scmp.ne.s32.totalorder %s86, %s100
      %p102 = scmp.eq.s32.totalorder %s34, 0
      %p103 = por %p101, %p102
      %s105 = sadd.s32 %s104, 1
      %p108 = scmp.eq.s32.totalorder %s28, 1
      %p109 = scmp.ne.s32.totalorder %s104, %s106
      %p110 = scmp.eq.s32.totalorder %s28, 0
      %p111 = por %p109, %p110
      %p112 = scmp.ne.s32.totalorder %s104, %s106
      %p113 = scmp.eq.s32.totalorder %s33, 1
      %p114 = por %p112, %p113
      %p115 = scmp.ne.s32.totalorder %s106, %s107
      %p116 = scmp.eq.s32.totalorder %s33, 0
      %p117 = por %p115, %p116
      %p118 = scmp.ne.s32.totalorder %s106, %s107
      %p119 = scmp.eq.s32.totalorder %s34, 1
      %p120 = por %p118, %p119
      %p122 = scmp.ne.s32.totalorder %s107, %s121
      %p123 = scmp.eq.s32.totalorder %s34, 0
      %p124 = por %p122, %p123
      %s126 = sadd.s32 %s125, 1
      %p129 = scmp.eq.s32.totalorder %s28, 1
      %p130 = scmp.ne.s32.totalorder %s125, %s127
      %p131 = scmp.eq.s32.totalorder %s28, 0
      %p132 = por %p130, %p131
      %p133 = scmp.ne.s32.totalorder %s125, %s127
      %p134 = scmp.eq.s32.totalorder %s33, 1
      %p135 = por %p133, %p134
      %p136 = scmp.ne.s32.totalorder %s127, %s128
      %p137 = scmp.eq.s32.totalorder %s33, 0
      %p138 = por %p136, %p137
      %p139 = scmp.ne.s32.totalorder %s127, %s128
      %p140 = scmp.eq.s32.totalorder %s34, 1
      %p141 = por %p139, %p140
      %p143 = scmp.ne.s32.totalorder %s128, %s142
      %p144 = scmp.eq.s32.totalorder %s34, 0
      %p145 = por %p143, %p144
      %s147 = sadd.s32 %s146, 1
      %p150 = scmp.eq.s32.totalorder %s28, 1
      %p151 = scmp.ne.s32.totalorder %s146, %s148
      %p152 = scmp.eq.s32.totalorder %s28, 0
      %p153 = por %p151, %p152
      %p154 = scmp.ne.s32.totalorder %s146, %s148
      %p155 = scmp.eq.s32.totalorder %s33, 1
      %p156 = por %p154, %p155
      %p157 = scmp.ne.s32.totalorder %s148, %s149
      %p158 = scmp.eq.s32.totalorder %s33, 0
      %p159 = por %p157, %p158
      %p160 = scmp.ne.s32.totalorder %s148, %s149
      %p161 = scmp.eq.s32.totalorder %s34, 1
      %p162 = por %p160, %p161
      %p164 = scmp.ne.s32.totalorder %s149, %s163
      %p165 = scmp.eq.s32.totalorder %s34, 0
      %p166 = por %p164, %p165
      %s168 = sadd.s32 %s167, 1
      %p171 = scmp.eq.s32.totalorder %s28, 1
      %p172 = scmp.ne.s32.totalorder %s167, %s169
      %p173 = scmp.eq.s32.totalorder %s28, 0
      %p174 = por %p172, %p173
      %p175 = scmp.ne.s32.totalorder %s167, %s169
      %p176 = scmp.eq.s32.totalorder %s33, 1
      %p177 = por %p175, %p176
      %p178 = scmp.ne.s32.totalorder %s169, %s170
      %p179 = scmp.eq.s32.totalorder %s33, 0
      %p180 = por %p178, %p179
      %p181 = scmp.ne.s32.totalorder %s169, %s170
      %p182 = scmp.eq.s32.totalorder %s34, 1
      %p183 = por %p181, %p182
      %p185 = scmp.ne.s32.totalorder %s170, %s184
      %p186 = scmp.eq.s32.totalorder %s34, 0
      %p187 = por %p185, %p186
      %s189 = sadd.s32 %s188, 1
      %p192 = scmp.eq.s32.totalorder %s28, 1
      %p193 = scmp.ne.s32.totalorder %s188, %s190
      %p194 = scmp.eq.s32.totalorder %s28, 0
      %p195 = por %p193, %p194
      %p196 = scmp.ne.s32.totalorder %s188, %s190
      %p197 = scmp.eq.s32.totalorder %s33, 1
      %p198 = por %p196, %p197
      %p199 = scmp.ne.s32.totalorder %s190, %s191
      %p200 = scmp.eq.s32.totalorder %s33, 0
      %p201 = por %p199, %p200
      %p202 = scmp.ne.s32.totalorder %s190, %s191
      %p203 = scmp.eq.s32.totalorder %s34, 1
      %p204 = por %p202, %p203
      %p206 = scmp.ne.s32.totalorder %s191, %s205
      %p207 = scmp.eq.s32.totalorder %s34, 0
      %p208 = por %p206, %p207
      %s210 = sadd.s32 %s209, 1
      %p213 = scmp.eq.s32.totalorder %s28, 1
      %p214 = scmp.ne.s32.totalorder %s209, %s211
      %p215 = scmp.eq.s32.totalorder %s28, 0
      %p216 = por %p214, %p215
      %p217 = scmp.ne.s32.totalorder %s209, %s211
      %p218 = scmp.eq.s32.totalorder %s33, 1
      %p219 = por %p217, %p218
      %p220 = scmp.ne.s32.totalorder %s211, %s212
      %p221 = scmp.eq.s32.totalorder %s33, 0
      %p222 = por %p220, %p221
      %p223 = scmp.ne.s32.totalorder %s211, %s212
      %p224 = scmp.eq.s32.totalorder %s34, 1
      %p225 = por %p223, %p224
      %p227 = scmp.ne.s32.totalorder %s212, %s226
      %p228 = scmp.eq.s32.totalorder %s34, 0
      %p229 = por %p227, %p228
      %s231 = sadd.s32 %s230, 1
      %p234 = scmp.eq.s32.totalorder %s28, 1
      %p235 = scmp.ne.s32.totalorder %s230, %s232
      %p236 = scmp.eq.s32.totalorder %s28, 0
      %p237 = por %p235, %p236
      %p238 = scmp.ne.s32.totalorder %s230, %s232
      %p239 = scmp.eq.s32.totalorder %s33, 1
      %p240 = por %p238, %p239
      %p241 = scmp.ne.s32.totalorder %s232, %s233
      %p242 = scmp.eq.s32.totalorder %s33, 0
      %p243 = por %p241, %p242
      %p244 = scmp.ne.s32.totalorder %s232, %s233
      %p245 = scmp.eq.s32.totalorder %s34, 1
      %p246 = por %p244, %p245
      %p248 = scmp.ne.s32.totalorder %s233, %s247
      %p249 = scmp.eq.s32.totalorder %s34, 0
      %p250 = por %p248, %p249
      %s252 = sadd.s32 %s251, 1
      %p255 = scmp.eq.s32.totalorder %s28, 1
      %p256 = scmp.ne.s32.totalorder %s251, %s253
      %p257 = scmp.eq.s32.totalorder %s28, 0
      %p258 = por %p256, %p257
      %p259 = scmp.ne.s32.totalorder %s251, %s253
      %p260 = scmp.eq.s32.totalorder %s33, 1
      %p261 = por %p259, %p260
      %p262 = scmp.ne.s32.totalorder %s253, %s254
      %p263 = scmp.eq.s32.totalorder %s33, 0
      %p264 = por %p262, %p263
      %p265 = scmp.ne.s32.totalorder %s253, %s254
      %p266 = scmp.eq.s32.totalorder %s34, 1
      %p267 = por %p265, %p266
      %p269 = scmp.ne.s32.totalorder %s254, %s268
      %p270 = scmp.eq.s32.totalorder %s34, 0
      %p271 = por %p269, %p270
      %s273 = sadd.s32 %s272, 1
      %p276 = scmp.eq.s32.totalorder %s28, 1
      %p277 = scmp.ne.s32.totalorder %s272, %s274
      %p278 = scmp.eq.s32.totalorder %s28, 0
      %p279 = por %p277, %p278
      %p280 = scmp.ne.s32.totalorder %s272, %s274
      %p281 = scmp.eq.s32.totalorder %s33, 1
      %p282 = por %p280, %p281
      %p283 = scmp.ne.s32.totalorder %s274, %s275
      %p284 = scmp.eq.s32.totalorder %s33, 0
      %p285 = por %p283, %p284
      %p286 = scmp.ne.s32.totalorder %s274, %s275
      %p287 = scmp.eq.s32.totalorder %s34, 1
      %p288 = por %p286, %p287
      %p290 = scmp.ne.s32.totalorder %s275, %s289
      %p291 = scmp.eq.s32.totalorder %s34, 0
      %p292 = por %p290, %p291
      %s294 = sadd.s32 %s293, 1
      %p297 = scmp.eq.s32.totalorder %s28, 1
      %p298 = scmp.ne.s32.totalorder %s293, %s295
      %p299 = scmp.eq.s32.totalorder %s28, 0
      %p300 = por %p298, %p299
      %p301 = scmp.ne.s32.totalorder %s293, %s295
      %p302 = scmp.eq.s32.totalorder %s33, 1
      %p303 = por %p301, %p302
      %p304 = scmp.ne.s32.totalorder %s295, %s296
      %p305 = scmp.eq.s32.totalorder %s33, 0
      %p306 = por %p304, %p305
      %p307 = scmp.ne.s32.totalorder %s295, %s296
      %p308 = scmp.eq.s32.totalorder %s34, 1
      %p309 = por %p307, %p308
      %p311 = scmp.ne.s32.totalorder %s296, %s310
      %p312 = scmp.eq.s32.totalorder %s34, 0
      %p313 = por %p311, %p312
      %s314 = ssub.s32 %s28, %s35
      %p315 = scmp.eq.s32.totalorder %s314, 0
      %s317 = sadd.s32 %s316, 1
      %s318 = scalar_select %p315, %s316, %s317
      %p321 = pneg %p315
      %p322 = scmp.eq.s32.totalorder %s28, 1
      %p323 = por %p321, %p322
      %p324 = scmp.ne.s32.totalorder %s316, %s319
      %p325 = scmp.eq.s32.totalorder %s28, 0
      %p326 = por %p324, %p325
      %p327 = scmp.ne.s32.totalorder %s316, %s319
      %p328 = scmp.eq.s32.totalorder %s33, 1
      %p329 = por %p327, %p328
      %p330 = scmp.ne.s32.totalorder %s319, %s320
      %p331 = scmp.eq.s32.totalorder %s33, 0
      %p332 = por %p330, %p331
      %p333 = scmp.ne.s32.totalorder %s319, %s320
      %p334 = scmp.eq.s32.totalorder %s34, 1
      %p335 = por %p333, %p334
      %p337 = scmp.ne.s32.totalorder %s320, %s336
      %p338 = scmp.eq.s32.totalorder %s34, 0
      %p339 = por %p337, %p338
      %p340 = scmp.le.s32.totalorder 1, %s28
      %p341 = scmp.lt.s32.totalorder %s28, 3
      %p342 = pnand %p340, %p341
      %p343 = pneg %p342
      // Predicated region
      $region9: #{tpu_custom_call.1} parent=5 // pred_check
        _
      $region10: #{tpu_custom_call.1} parent=5 // pred_check_branch
        %345 = sbr.rel (%p342) target = $region12
      $region11: #{tpu_custom_call.1} parent=5 // pred_region
        %s346 = ssub.s32 %s28, 1
        // Predicated region
        $region13: #{tpu_custom_call.1} parent=11 // pred_check
          %p347 = pneg %p75
        $region14: #{tpu_custom_call.1} parent=11 // pred_check_branch
          %349 = sbr.rel (%p347) target = $region16
        $region15: #{tpu_custom_call.1} parent=11 // pred_region
          %s351 = ssub.s32 16, 16
          %352 = vsyncadd [#allocation6], %s351
          %s354 = sshll.u32 [#allocation5], 4
          %s355 = int_to_ptr.vmem [resolvable:$true] %s354
          %357 = dma.hbm_to_vmem [thread:$0]  %s1, 16, %s355, [#allocation6]
        $region16: #{tpu_custom_call.1} parent=11 // pred_fallthru
          _
        // Predicated region
        $region17: #{tpu_custom_call.1} parent=11 // pred_check
          %p358 = pneg %p96
        $region18: #{tpu_custom_call.1} parent=11 // pred_check_branch
          %360 = sbr.rel (%p358) target = $region20
        $region19: #{tpu_custom_call.1} parent=11 // pred_region
          %s362 = ssub.s32 16, 16
          %363 = vsyncadd [#allocation6], %s362
          %s365 = sshll.u32 [#allocation7], 4
          %s366 = int_to_ptr.vmem [resolvable:$true] %s365
          %368 = dma.hbm_to_vmem [thread:$0]  %s2, 16, %s366, [#allocation6]
        $region20: #{tpu_custom_call.1} parent=11 // pred_fallthru
          _
        // Predicated region
        $region21: #{tpu_custom_call.1} parent=11 // pred_check
          %p369 = pneg %p117
        $region22: #{tpu_custom_call.1} parent=11 // pred_check_branch
          %371 = sbr.rel (%p369) target = $region24
        $region23: #{tpu_custom_call.1} parent=11 // pred_region
          %s373 = ssub.s32 3072, 3072
          %374 = vsyncadd [#allocation9], %s373
          %s375 = sshll.u32 [#allocation8], 4
          %s376 = int_to_ptr.vmem [resolvable:$true] %s375
          %381 = dma.hbm_to_vmem [thread:$0]  %s3, 3072, %s376, [#allocation9], 192, 192, 12
        $region24: #{tpu_custom_call.1} parent=11 // pred_fallthru
          _
        // Predicated region
        $region25: #{tpu_custom_call.1} parent=11 // pred_check
          %p382 = pneg %p138
        $region26: #{tpu_custom_call.1} parent=11 // pred_check_branch
          %384 = sbr.rel (%p382) target = $region28
        $region27: #{tpu_custom_call.1} parent=11 // pred_region
          _
        $region28: #{tpu_custom_call.1} parent=11 // pred_fallthru
          _
        // Predicated region
        $region29: #{tpu_custom_call.1} parent=11 // pred_check
          %p385 = pneg %p159
        $region30: #{tpu_custom_call.1} parent=11 // pred_check_branch
          %387 = sbr.rel (%p385) target = $region32
        $region31: #{tpu_custom_call.1} parent=11 // pred_region
          %s389 = ssub.s32 1024, 1024
          %390 = vsyncadd [#allocation9], %s389
          %s391 = sshll.u32 [#allocation10], 4
          %s392 = int_to_ptr.vmem [resolvable:$true] %s391
          %397 = dma.hbm_to_vmem [thread:$0]  %s5, 1024, %s392, [#allocation9], 64, 64, 4
        $region32: #{tpu_custom_call.1} parent=11 // pred_fallthru
          _
        // Predicated region
        $region33: #{tpu_custom_call.1} parent=11 // pred_check
          %p398 = pneg %p180
        $region34: #{tpu_custom_call.1} parent=11 // pred_check_branch
          %400 = sbr.rel (%p398) target = $region36
        $region35: #{tpu_custom_call.1} parent=11 // pred_region
          _
        $region36: #{tpu_custom_call.1} parent=11 // pred_fallthru
          _
        // Predicated region
        $region37: #{tpu_custom_call.1} parent=11 // pred_check
          %p401 = pneg %p201
        $region38: #{tpu_custom_call.1} parent=11 // pred_check_branch
          %403 = sbr.rel (%p401) target = $region40
        $region39: #{tpu_custom_call.1} parent=11 // pred_region
          _
        $region40: #{tpu_custom_call.1} parent=11 // pred_fallthru
          _
        // Predicated region
        $region41: #{tpu_custom_call.1} parent=11 // pred_check
          %p404 = pneg %p222
        $region42: #{tpu_custom_call.1} parent=11 // pred_check_branch
          %406 = sbr.rel (%p404) target = $region44
        $region43: #{tpu_custom_call.1} parent=11 // pred_region
          _
        $region44: #{tpu_custom_call.1} parent=11 // pred_fallthru
          _
        // Predicated region
        $region45: #{tpu_custom_call.1} parent=11 // pred_check
          %p407 = pneg %p243
        $region46: #{tpu_custom_call.1} parent=11 // pred_check_branch
          %409 = sbr.rel (%p407) target = $region48
        $region47: #{tpu_custom_call.1} parent=11 // pred_region
          %s411 = ssub.s32 4096, 4096
          %412 = vsyncadd [#allocation12], %s411
          %s413 = sshll.u32 [#allocation11], 4
          %s414 = int_to_ptr.vmem [resolvable:$true] %s413
          %419 = dma.hbm_to_vmem [thread:$0]  %s9, 4096, %s414, [#allocation12], 256, 256, 16
        $region48: #{tpu_custom_call.1} parent=11 // pred_fallthru
          _
        // Predicated region
        $region49: #{tpu_custom_call.1} parent=11 // pred_check
          %p420 = pneg %p264
        $region50: #{tpu_custom_call.1} parent=11 // pred_check_branch
          %422 = sbr.rel (%p420) target = $region52
        $region51: #{tpu_custom_call.1} parent=11 // pred_region
          _
        $region52: #{tpu_custom_call.1} parent=11 // pred_fallthru
          _
        // Predicated region
        $region53: #{tpu_custom_call.1} parent=11 // pred_check
          %p423 = pneg %p285
        $region54: #{tpu_custom_call.1} parent=11 // pred_check_branch
          %425 = sbr.rel (%p423) target = $region56
        $region55: #{tpu_custom_call.1} parent=11 // pred_region
          %s427 = ssub.s32 4096, 4096
          %428 = vsyncadd [#allocation12], %s427
          %s429 = sshll.u32 [#allocation13], 4
          %s430 = int_to_ptr.vmem [resolvable:$true] %s429
          %435 = dma.hbm_to_vmem [thread:$0]  %s11, 4096, %s430, [#allocation12], 64, 64, 4
        $region56: #{tpu_custom_call.1} parent=11 // pred_fallthru
          _
        // Predicated region
        $region57: #{tpu_custom_call.1} parent=11 // pred_check
          %p436 = pneg %p306
        $region58: #{tpu_custom_call.1} parent=11 // pred_check_branch
          %438 = sbr.rel (%p436) target = $region60
        $region59: #{tpu_custom_call.1} parent=11 // pred_region
          _
        $region60: #{tpu_custom_call.1} parent=11 // pred_fallthru
          _
      $region12: #{tpu_custom_call.1} parent=5 // pred_fallthru
        _
      %p439 = scmp.lt.s32.totalorder %s28, 2
      // Predicated region
      $region61: #{tpu_custom_call.1} parent=5 // pred_check
        %p440 = pneg %p439
      $region62: #{tpu_custom_call.1} parent=5 // pred_check_branch
        %442 = sbr.rel (%p440) target = $region64
      $region63: #{tpu_custom_call.1} parent=5 // pred_region
        // Predicated region
        $region65: #{tpu_custom_call.1} parent=63 // pred_check
          %p443 = pneg %p48
        $region66: #{tpu_custom_call.1} parent=63 // pred_check_branch
          %445 = sbr.rel (%p443) target = $region68
        $region67: #{tpu_custom_call.1} parent=63 // pred_region
          %s446 = sand.u32 %s38, 1
          %s447 = scalar_lea.sflag [#allocation3], %s446
          %s448 = sand.u32 %s38, 1
          %s449 = smul.addr %s448, 32
          %s450 = scalar_lea.vmem [#allocation2], %s449
          %s451 = smul.u32 2, %s28
          %s453 = ssub.s32 512, 512
          %454 = vsyncadd %s447, %s453
          %s455 = smul.addr %s451, 2
          %s456 = smul.addr %s455, 128
          %s457 = scalar_lea.hbm %s0, %s456
          %s458 = sshll.u32 %s450, 4
          %s459 = int_to_ptr.vmem [resolvable:$true] %s458
          %464 = dma.hbm_to_vmem [thread:$0]  %s457, 512, %s459, %s447, 128, 128, 8
        $region68: #{tpu_custom_call.1} parent=63 // pred_fallthru
          _
      $region64: #{tpu_custom_call.1} parent=5 // pred_fallthru
        _
      %p465 = scmp.le.s32.totalorder 1, %s28
      %p466 = scmp.lt.s32.totalorder %s28, 3
      %p467 = pnand %p465, %p466
      %p468 = pneg %p467
      // Predicated region
      $region69: #{tpu_custom_call.1} parent=5 // pred_check
        _
      $region70: #{tpu_custom_call.1} parent=5 // pred_check_branch
        %470 = sbr.rel (%p467) target = $region72
      $region71: #{tpu_custom_call.1} parent=5 // pred_region
        %s471 = ssub.s32 %s28, 1
        %s472 = sand.u32 %s41, 1
        %s473 = scalar_lea.sflag [#allocation3], %s472
        %s474 = sand.u32 %s41, 1
        %s475 = smul.addr %s474, 32
        %s476 = scalar_lea.vmem [#allocation2], %s475
        // Predicated region
        $region73: #{tpu_custom_call.1} parent=71 // pred_check
          %p477 = pneg %p54
        $region74: #{tpu_custom_call.1} parent=71 // pred_check_branch
          %479 = sbr.rel (%p477) target = $region76
        $region75: #{tpu_custom_call.1} parent=71 // pred_region
          %480 = dma.done %s473, 512
        $region76: #{tpu_custom_call.1} parent=71 // pred_fallthru
          _
        // Predicated region
        $region77: #{tpu_custom_call.1} parent=71 // pred_check
          %p481 = pneg %p75
        $region78: #{tpu_custom_call.1} parent=71 // pred_check_branch
          %483 = sbr.rel (%p481) target = $region80
        $region79: #{tpu_custom_call.1} parent=71 // pred_region
          %484 = dma.done [#allocation6], 16
        $region80: #{tpu_custom_call.1} parent=71 // pred_fallthru
          _
        // Predicated region
        $region81: #{tpu_custom_call.1} parent=71 // pred_check
          %p485 = pneg %p96
        $region82: #{tpu_custom_call.1} parent=71 // pred_check_branch
          %487 = sbr.rel (%p485) target = $region84
        $region83: #{tpu_custom_call.1} parent=71 // pred_region
          %488 = dma.done [#allocation6], 16
        $region84: #{tpu_custom_call.1} parent=71 // pred_fallthru
          _
        // Predicated region
        $region85: #{tpu_custom_call.1} parent=71 // pred_check
          %p489 = pneg %p117
        $region86: #{tpu_custom_call.1} parent=71 // pred_check_branch
          %491 = sbr.rel (%p489) target = $region88
        $region87: #{tpu_custom_call.1} parent=71 // pred_region
          %492 = dma.done [#allocation9], 3072
        $region88: #{tpu_custom_call.1} parent=71 // pred_fallthru
          _
        // Predicated region
        $region89: #{tpu_custom_call.1} parent=71 // pred_check
          %p493 = pneg %p159
        $region90: #{tpu_custom_call.1} parent=71 // pred_check_branch
          %495 = sbr.rel (%p493) target = $region92
        $region91: #{tpu_custom_call.1} parent=71 // pred_region
          %496 = dma.done [#allocation9], 1024
        $region92: #{tpu_custom_call.1} parent=71 // pred_fallthru
          _
        // Predicated region
        $region93: #{tpu_custom_call.1} parent=71 // pred_check
          %p497 = pneg %p243
        $region94: #{tpu_custom_call.1} parent=71 // pred_check_branch
          %499 = sbr.rel (%p497) target = $region96
        $region95: #{tpu_custom_call.1} parent=71 // pred_region
          %500 = dma.done [#allocation12], 4096
        $region96: #{tpu_custom_call.1} parent=71 // pred_fallthru
          _
        // Predicated region
        $region97: #{tpu_custom_call.1} parent=71 // pred_check
          %p501 = pneg %p285
        $region98: #{tpu_custom_call.1} parent=71 // pred_check_branch
          %503 = sbr.rel (%p501) target = $region100
        $region99: #{tpu_custom_call.1} parent=71 // pred_region
          %504 = dma.done [#allocation12], 4096
        $region100: #{tpu_custom_call.1} parent=71 // pred_fallthru
          _
        %s505 = sand.u32 %s41, 1
        %s506 = scalar_lea.sflag [#allocation3], %s505
        %s507 = sand.u32 %s41, 1
        %s508 = smul.addr %s507, 32
        %s509 = scalar_lea.vmem [#allocation2], %s508
        %p510 = pneg %p54
        %p511 = pneg %p51
        %p512 = pneg %p75
        %p513 = pneg %p72
        %p514 = pneg %p96
        %p515 = pneg %p93
        %p516 = pneg %p117
        %p517 = pneg %p114
        %p518 = pneg %p138
        %p519 = pneg %p135
        %p520 = pneg %p159
        %p521 = pneg %p156
        %p522 = pneg %p180
        %p523 = pneg %p177
        %p524 = pneg %p201
        %p525 = pneg %p198
        %p526 = pneg %p222
        %p527 = pneg %p219
        %p528 = pneg %p243
        %p529 = pneg %p240
        %p530 = pneg %p264
        %p531 = pneg %p261
        %p532 = pneg %p285
        %p533 = pneg %p282
        %p534 = pneg %p306
        %p535 = pneg %p303
        %p536 = pneg %p332
        %p537 = pneg %p329
        %s538 = sand.u32 %s319, 1
        %s539 = scalar_lea.sflag [#allocation4], %s538
        %s540 = sand.u32 %s319, 1
        %s541 = smul.addr %s540, 32
        %s542 = scalar_lea.vmem [#allocation14], %s541
        %s543 = smul.u32 2, %s33
        %s544 = smul.u32 2, %s33
        %v546 = vld [vmem:[%s476] sm:$0xff]
        %v547 = vld [vmem:[%s476 + $0x8] sm:$0xff]
        %v548 = vld [vmem:[%s476 + $0x10] sm:$0xff]
        %v549 = vld [vmem:[%s476 + $0x18] sm:$0xff]
        %v550 = vld [vmem:[#allocation5] sm:$0x1]
        %v551 = vld [vmem:[#allocation7] sm:$0x1]
        %552 = vadd.xlane.f32.xlu0 %v546
        %v553 = vpop.xlane.xlu0 %552
        %554 = vadd.xlane.f32.xlu0 %v547
        %v555 = vpop.xlane.xlu0 %554
        %556 = vadd.xlane.f32.xlu0 %v548
        %v557 = vpop.xlane.xlu0 %556
        %558 = vadd.xlane.f32.xlu0 %v549
        %v559 = vpop.xlane.xlu0 %558
        %v560 = vrcp.pop 128.0
        %v561 = vmul.f32 %v553, %v560
        %v562 = vmul.f32 %v555, %v560
        %v563 = vmul.f32 %v557, %v560
        %v564 = vmul.f32 %v559, %v560
        %v565 = vsub.f32 %v546, %v561
        %v566 = vsub.f32 %v547, %v562
        %v567 = vsub.f32 %v548, %v563
        %v568 = vsub.f32 %v549, %v564
        %v569 = vmul.f32 %v565, %v565
        %v570 = vmul.f32 %v566, %v566
        %v571 = vmul.f32 %v567, %v567
        %v572 = vmul.f32 %v568, %v568
        %573 = vadd.xlane.f32.xlu0 %v569
        %v574 = vpop.xlane.xlu0 %573
        %575 = vadd.xlane.f32.xlu0 %v570
        %v576 = vpop.xlane.xlu0 %575
        %577 = vadd.xlane.f32.xlu0 %v571
        %v578 = vpop.xlane.xlu0 %577
        %579 = vadd.xlane.f32.xlu0 %v572
        %v580 = vpop.xlane.xlu0 %579
        %v581 = vmul.f32 %v574, %v560
        %v582 = vmul.f32 %v576, %v560
        %v583 = vmul.f32 %v578, %v560
        %v584 = vmul.f32 %v580, %v560
        %v585 = vadd.f32 %v581, 1e-05
        %v586 = vadd.f32 %v582, 1e-05
        %v587 = vadd.f32 %v583, 1e-05
        %v588 = vadd.f32 %v584, 1e-05
        %v589 = vrsqrt.pop %v585
        %v590 = vrsqrt.pop %v586
        %v591 = vrsqrt.pop %v587
        %v592 = vrsqrt.pop %v588
        %v593 = vmul.f32 %v565, %v589
        %v594 = vmul.f32 %v566, %v590
        %v595 = vmul.f32 %v567, %v591
        %v596 = vmul.f32 %v568, %v592
        %v598 = vlaneseq
        %v599 = vshrl.u32 %v598, 7
        %v600 = vsub.s32 0, %v599
        %v601 = vrot.slane %v550, %v600
        %v603 = vmul.f32 %v601, %v593
        %v604 = vmul.f32 %v601, %v594
        %v605 = vmul.f32 %v601, %v595
        %v606 = vmul.f32 %v601, %v596
        %v608 = vlaneseq
        %v609 = vshrl.u32 %v608, 7
        %v610 = vsub.s32 0, %v609
        %v611 = vrot.slane %v551, %v610
        %v613 = vadd.f32 %v603, %v611
        %v614 = vadd.f32 %v604, %v611
        %v615 = vadd.f32 %v605, %v611
        %v616 = vadd.f32 %v606, %v611
        %v617 = vpack.c.bf16 %v614, %v613
        %v618 = vpack.c.bf16 %v616, %v615
        %v619 = vld [vmem:[#allocation8] sm:$0xff]
        %v620 = vld [vmem:[#allocation8 + $0x8] sm:$0xf]
        %v621 = vld [vmem:[#allocation8 + $0xc] sm:$0xff]
        %v622 = vld [vmem:[#allocation8 + $0x14] sm:$0xf]
        %v623 = vld [vmem:[#allocation8 + $0x18] sm:$0xff]
        %v624 = vld [vmem:[#allocation8 + $0x20] sm:$0xf]
        %v625 = vld [vmem:[#allocation8 + $0x24] sm:$0xff]
        %v626 = vld [vmem:[#allocation8 + $0x2c] sm:$0xf]
        %v627 = vld [vmem:[#allocation8 + $0x30] sm:$0xff]
        %v628 = vld [vmem:[#allocation8 + $0x38] sm:$0xf]
        %v629 = vld [vmem:[#allocation8 + $0x3c] sm:$0xff]
        %v630 = vld [vmem:[#allocation8 + $0x44] sm:$0xf]
        %v631 = vld [vmem:[#allocation8 + $0x48] sm:$0xff]
        %v632 = vld [vmem:[#allocation8 + $0x50] sm:$0xf]
        %v633 = vld [vmem:[#allocation8 + $0x54] sm:$0xff]
        %v634 = vld [vmem:[#allocation8 + $0x5c] sm:$0xf]
        %v635 = vld [vmem:[#allocation8 + $0x60] sm:$0xff]
        %v636 = vld [vmem:[#allocation8 + $0x68] sm:$0xf]
        %v637 = vld [vmem:[#allocation8 + $0x6c] sm:$0xff]
        %v638 = vld [vmem:[#allocation8 + $0x74] sm:$0xf]
        %v639 = vld [vmem:[#allocation8 + $0x78] sm:$0xff]
        %v640 = vld [vmem:[#allocation8 + $0x80] sm:$0xf]
        %v641 = vld [vmem:[#allocation8 + $0x84] sm:$0xff]
        %v642 = vld [vmem:[#allocation8 + $0x8c] sm:$0xf]
        %v643 = vld [vmem:[#allocation8 + $0x90] sm:$0xff]
        %v644 = vld [vmem:[#allocation8 + $0x98] sm:$0xf]
        %v645 = vld [vmem:[#allocation8 + $0x9c] sm:$0xff]
        %v646 = vld [vmem:[#allocation8 + $0xa4] sm:$0xf]
        %v647 = vld [vmem:[#allocation8 + $0xa8] sm:$0xff]
        %v648 = vld [vmem:[#allocation8 + $0xb0] sm:$0xf]
        %v649 = vld [vmem:[#allocation8 + $0xb4] sm:$0xff]
        %v650 = vld [vmem:[#allocation8 + $0xbc] sm:$0xf]
        %v651 = vld [vmem:[%s4] sm:$0x7]
        %v653 = vlaneseq
        %v654 = vshrl.u32 %v653, 7
        %v655 = vsub.s32 0, %v654
        %v656 = vrot.slane %v651, %v655
        %v657 = vlaneseq
        %v658 = vshrl.u32 %v657, 7
        %v659 = vsub.s32 1, %v658
        %v660 = vrot.slane %v651, %v659
        %v661 = vlaneseq
        %v662 = vshrl.u32 %v661, 7
        %v663 = vsub.s32 2, %v662
        %v664 = vrot.slane %v651, %v663
        %v700 = vunpack.c.l.b16 %v619
        %v701 = vunpack.c.h.b16 %v619
        %v702 = vunpack.c.l.b16 %v620
        %v703 = vunpack.c.l.b16 %v621
        %v704 = vunpack.c.h.b16 %v621
        %v705 = vunpack.c.l.b16 %v622
        %v706 = vunpack.c.l.b16 %v623
        %v707 = vunpack.c.h.b16 %v623
        %v708 = vunpack.c.l.b16 %v624
        %v709 = vunpack.c.l.b16 %v625
        %v710 = vunpack.c.h.b16 %v625
        %v711 = vunpack.c.l.b16 %v626
        %v712 = vunpack.c.l.b16 %v627
        %v713 = vunpack.c.h.b16 %v627
        %v714 = vunpack.c.l.b16 %v628
        %v715 = vunpack.c.l.b16 %v629
        %v716 = vunpack.c.h.b16 %v629
        %v717 = vunpack.c.l.b16 %v630
        %v718 = vunpack.c.l.b16 %v631
        %v719 = vunpack.c.h.b16 %v631
        %v720 = vunpack.c.l.b16 %v632
        %v721 = vunpack.c.l.b16 %v633
        %v722 = vunpack.c.h.b16 %v633
        %v723 = vunpack.c.l.b16 %v634
        %v724 = vunpack.c.l.b16 %v635
        %v725 = vunpack.c.h.b16 %v635
        %v726 = vunpack.c.l.b16 %v636
        %v727 = vunpack.c.l.b16 %v637
        %v728 = vunpack.c.h.b16 %v637
        %v729 = vunpack.c.l.b16 %v638
        %v730 = vunpack.c.l.b16 %v639
        %v731 = vunpack.c.h.b16 %v639
        %v732 = vunpack.c.l.b16 %v640
        %v733 = vunpack.c.l.b16 %v641
        %v734 = vunpack.c.h.b16 %v641
        %v735 = vunpack.c.l.b16 %v642
        %v736 = vunpack.c.l.b16 %v643
        %v737 = vunpack.c.h.b16 %v643
        %v738 = vunpack.c.l.b16 %v644
        %v739 = vunpack.c.l.b16 %v645
        %v740 = vunpack.c.h.b16 %v645
        %v741 = vunpack.c.l.b16 %v646
        %v742 = vunpack.c.l.b16 %v647
        %v743 = vunpack.c.h.b16 %v647
        %v744 = vunpack.c.l.b16 %v648
        %v745 = vunpack.c.l.b16 %v649
        %v746 = vunpack.c.h.b16 %v649
        %v747 = vunpack.c.l.b16 %v650
        %v748 = vpack.c.b16 %v703, %v700
        %v749 = vpack.c.b16 %v704, %v701
        %v750 = vpack.c.b16 %v705, %v702
        %v751 = vpack.c.b16 %v709, %v706
        %v752 = vpack.c.b16 %v710, %v707
        %v753 = vpack.c.b16 %v711, %v708
        %v754 = vpack.c.b16 %v715, %v712
        %v755 = vpack.c.b16 %v716, %v713
        %v756 = vpack.c.b16 %v717, %v714
        %v757 = vpack.c.b16 %v721, %v718
        %v758 = vpack.c.b16 %v722, %v719
        %v759 = vpack.c.b16 %v723, %v720
        %v760 = vpack.c.b16 %v727, %v724
        %v761 = vpack.c.b16 %v728, %v725
        %v762 = vpack.c.b16 %v729, %v726
        %v763 = vpack.c.b16 %v733, %v730
        %v764 = vpack.c.b16 %v734, %v731
        %v765 = vpack.c.b16 %v735, %v732
        %v766 = vpack.c.b16 %v739, %v736
        %v767 = vpack.c.b16 %v740, %v737
        %v768 = vpack.c.b16 %v741, %v738
        %v769 = vpack.c.b16 %v745, %v742
        %v770 = vpack.c.b16 %v746, %v743
        %v771 = vpack.c.b16 %v747, %v744
        %796 = vmatprep.subr.bf16.mxu0 %v749
        %797 = vmatpush1.bf16.msra.mxu0 %v748
        %798 = vmatprep.subr.bf16.mxu0 %v752
        %799 = vmatpush1.bf16.msra.mxu0 %v751
        %800 = vmatprep.subr.bf16.mxu0 %v755
        %801 = vmatpush1.bf16.msra.mxu0 %v754
        %802 = vmatprep.subr.bf16.mxu0 %v758
        %803 = vmatpush1.bf16.msra.mxu0 %v757
        %804 = vmatprep.subr.bf16.mxu0 %v761
        %805 = vmatpush1.bf16.msra.mxu0 %v760
        %806 = vmatprep.subr.bf16.mxu0 %v764
        %807 = vmatpush1.bf16.msra.mxu0 %v763
        %808 = vmatprep.subr.bf16.mxu0 %v767
        %809 = vmatpush1.bf16.msra.mxu0 %v766
        %810 = vmatprep.subr.bf16.mxu0 %v770
        %811 = vmatpush1.bf16.msra.mxu0 %v769
        %812 = vmatprep.subr.bf16.mxu0 0
        %813 = vmatpush1.bf16.msra.mxu0 0
        %814 = vmatprep.subr.bf16.mxu0 0
        %815 = vmatpush1.bf16.msra.mxu0 0
        %816 = vmatprep.subr.bf16.mxu0 0
        %817 = vmatpush1.bf16.msra.mxu0 0
        %818 = vmatprep.subr.bf16.mxu0 0
        %819 = vmatpush1.bf16.msra.mxu0 0
        %820 = vmatprep.subr.bf16.mxu0 0
        %821 = vmatpush1.bf16.msra.mxu0 0
        %822 = vmatprep.subr.bf16.mxu0 0
        %823 = vmatpush1.bf16.msra.mxu0 0
        %824 = vmatprep.subr.bf16.mxu0 0
        %825 = vmatpush1.bf16.msra.mxu0 0
        %826 = vmatprep.subr.bf16.mxu0 0
        %827 = vmatpush1.bf16.msra.mxu0 0
        %828 = vmatprep.mubr.bf16.mxu0 0
        %829 = vmatmul.mubr.bf16.gmra.mrb[0].mxu0 %v617
        %v830 = vpop.f32.mrb[0].mxu0
        %v831 = vadd.f32 %v656, %v830
        %v832 = vpop.f32.mrb[0].mxu0
        %v833 = vadd.f32 %v660, %v832
        %v834 = vpop.f32.mrb[0].mxu0
        %v835 = vadd.f32 %v656, %v834
        %v836 = vpop.f32.mrb[0].mxu0
        %v837 = vadd.f32 %v660, %v836
        %838 = vmatprep.mubr.bf16.mxu0 0
        %839 = vmatmul.mubr.bf16.gmra.mrb[0].mxu0 %v618
        %v840 = vpop.f32.mrb[0].mxu0
        %v841 = vadd.f32 %v656, %v840
        %v842 = vpop.f32.mrb[0].mxu0
        %v843 = vadd.f32 %v660, %v842
        %v844 = vpop.f32.mrb[0].mxu0
        %v845 = vadd.f32 %v656, %v844
        %v846 = vpop.f32.mrb[0].mxu0
        %v847 = vadd.f32 %v660, %v846
        %848 = vdwg.mxu0
        %849 = vmatprep.subr.bf16.mxu0 0
        %850 = vmatpush1.bf16.msra.mxu0 %v750
        %851 = vmatprep.subr.bf16.mxu0 0
        %852 = vmatpush1.bf16.msra.mxu0 %v753
        %853 = vmatprep.subr.bf16.mxu0 0
        %854 = vmatpush1.bf16.msra.mxu0 %v756
        %855 = vmatprep.subr.bf16.mxu0 0
        %856 = vmatpush1.bf16.msra.mxu0 %v759
        %857 = vmatprep.subr.bf16.mxu0 0
        %858 = vmatpush1.bf16.msra.mxu0 %v762
        %859 = vmatprep.subr.bf16.mxu0 0
        %860 = vmatpush1.bf16.msra.mxu0 %v765
        %861 = vmatprep.subr.bf16.mxu0 0
        %862 = vmatpush1.bf16.msra.mxu0 %v768
        %863 = vmatprep.subr.bf16.mxu0 0
        %864 = vmatpush1.bf16.msra.mxu0 %v771
        %865 = vmatprep.subr.bf16.mxu0 0
        %866 = vmatpush1.bf16.msra.mxu0 0
        %867 = vmatprep.subr.bf16.mxu0 0
        %868 = vmatpush1.bf16.msra.mxu0 0
        %869 = vmatprep.subr.bf16.mxu0 0
        %870 = vmatpush1.bf16.msra.mxu0 0
        %871 = vmatprep.subr.bf16.mxu0 0
        %872 = vmatpush1.bf16.msra.mxu0 0
        %873 = vmatprep.subr.bf16.mxu0 0
        %874 = vmatpush1.bf16.msra.mxu0 0
        %875 = vmatprep.subr.bf16.mxu0 0
        %876 = vmatpush1.bf16.msra.mxu0 0
        %877 = vmatprep.subr.bf16.mxu0 0
        %878 = vmatpush1.bf16.msra.mxu0 0
        %879 = vmatprep.subr.bf16.mxu0 0
        %880 = vmatpush1.bf16.msra.mxu0 0
        %881 = vmatprep.mubr.bf16.mxu0 0
        %882 = vmatmul.mubr.bf16.gmra.mrb[0].mxu0 %v617
        %v883 = vpop.f32.mrb[0].mxu0
        %v884 = vadd.f32 %v664, %v883
        %v885 = vpop.f32.mrb[0].mxu0
        %v886 = vpop.f32.mrb[0].mxu0
        %v887 = vadd.f32 %v664, %v886
        %v888 = vpop.f32.mrb[0].mxu0
        %889 = vmatprep.mubr.bf16.mxu0 0
        %890 = vmatmul.mubr.bf16.gmra.mrb[0].mxu0 %v618
        %v891 = vpop.f32.mrb[0].mxu0
        %v892 = vadd.f32 %v664, %v891
        %v893 = vpop.f32.mrb[0].mxu0
        %v894 = vpop.f32.mrb[0].mxu0
        %v895 = vadd.f32 %v664, %v894
        %v896 = vpop.f32.mrb[0].mxu0
        %897 = vdwg.mxu0
        %v898 = vlaneseq
        %v899 = vshrl.u32 %v898, 7
        %v900 = vadd.s32 %v899, 8
        %v901 = vlaneseq
        %v902 = vand.u32 %v901, 127
        %vm903 = vcmp.gt.s32.totalorder %v902, %v899
        %vm904 = vcmp.gt.s32.totalorder %v902, %v900
        %905 = vxpose.xlu0.b32.start [1/16] %v831, 128
        %906 = vxpose.xlu0.b32.cont [2/16] %v835, 128
        %907 = vxpose.xlu0.b32.cont [3/16] 0.0, 128
        %908 = vxpose.xlu0.b32.cont [4/16] 0.0, 128
        %909 = vxpose.xlu0.b32.cont [5/16] 0.0, 128
        %910 = vxpose.xlu0.b32.cont [6/16] 0.0, 128
        %911 = vxpose.xlu0.b32.cont [7/16] 0.0, 128
        %912 = vxpose.xlu0.b32.cont [8/16] 0.0, 128
        %913 = vxpose.xlu0.b32.cont [9/16] 0.0, 128
        %914 = vxpose.xlu0.b32.cont [10/16] 0.0, 128
        %915 = vxpose.xlu0.b32.cont [11/16] 0.0, 128
        %916 = vxpose.xlu0.b32.cont [12/16] 0.0, 128
        %917 = vxpose.xlu0.b32.cont [13/16] 0.0, 128
        %918 = vxpose.xlu0.b32.cont [14/16] 0.0, 128
        %919 = vxpose.xlu0.b32.cont [15/16] 0.0, 128
        %920 = vxpose.xlu0.b32.end [16/16] 0.0, 128
        %v921 = vpop.trf.xlu0
        %v922 = vpop.trf.xlu0
        %v923 = vpop.trf.xlu0
        %v924 = vpop.trf.xlu0
        %v925 = vpop.trf.xlu0
        %v926 = vpop.trf.xlu0
        %v927 = vpop.trf.xlu0
        %v928 = vpop.trf.xlu0
        %v929 = vpop.trf.xlu0
        %v930 = vpop.trf.xlu0
        %v931 = vpop.trf.xlu0
        %v932 = vpop.trf.xlu0
        %v933 = vpop.trf.xlu0
        %v934 = vpop.trf.xlu0
        %v935 = vpop.trf.xlu0
        %v936 = vpop.trf.xlu0
        %937 = vxpose.xlu0.b32.start [1/16] %v921, 128
        %938 = vxpose.xlu0.b32.cont [2/16] %v922, 128
        %939 = vxpose.xlu0.b32.cont [3/16] %v923, 128
        %940 = vxpose.xlu0.b32.cont [4/16] %v924, 128
        %941 = vxpose.xlu0.b32.cont [5/16] 0.0, 128
        %942 = vxpose.xlu0.b32.cont [6/16] 0.0, 128
        %943 = vxpose.xlu0.b32.cont [7/16] 0.0, 128
        %944 = vxpose.xlu0.b32.cont [8/16] 0.0, 128
        %945 = vxpose.xlu0.b32.cont [9/16] 0.0, 128
        %946 = vxpose.xlu0.b32.cont [10/16] 0.0, 128
        %947 = vxpose.xlu0.b32.cont [11/16] 0.0, 128
        %948 = vxpose.xlu0.b32.cont [12/16] 0.0, 128
        %949 = vxpose.xlu0.b32.cont [13/16] 0.0, 128
        %950 = vxpose.xlu0.b32.cont [14/16] 0.0, 128
        %951 = vxpose.xlu0.b32.cont [15/16] 0.0, 128
        %952 = vxpose.xlu0.b32.end [16/16] 0.0, 128
        %v953 = vpop.trf.xlu0
        %v954 = vpop.trf.xlu0
        %v955 = vpop.trf.xlu0
        %v956 = vpop.trf.xlu0
        %v957 = vpop.trf.xlu0
        %v958 = vpop.trf.xlu0
        %v959 = vpop.trf.xlu0
        %v960 = vpop.trf.xlu0
        %v961 = vpop.trf.xlu0
        %v962 = vpop.trf.xlu0
        %v963 = vpop.trf.xlu0
        %v964 = vpop.trf.xlu0
        %v965 = vpop.trf.xlu0
        %v966 = vpop.trf.xlu0
        %v967 = vpop.trf.xlu0
        %v968 = vpop.trf.xlu0
        %vm969 = vcmask 261120
        %v971 = vsel %vm969, %v953, 0
        %v974 = vsel %vm969, %v954, 0
        %v977 = vsel %vm969, %v833, 0
        %v980 = vsel %vm969, %v837, 0
        %982 = vmatprep.subr.mxu0 0.0
        %983 = vmatpush1.xpose.msra.mxu0 %v977
        %984 = vmatprep.subr.mxu0 0.0
        %985 = vmatpush1.xpose.msra.mxu0 %v980
        %986 = vmatprep.subr.mxu0 0.0
        %987 = vmatpush1.xpose.msra.mxu0 0.0
        %988 = vmatprep.subr.mxu0 0.0
        %989 = vmatpush1.xpose.msra.mxu0 0.0
        %990 = vmatprep.subr.mxu0 0.0
        %991 = vmatpush1.xpose.msra.mxu0 0.0
        %992 = vmatprep.subr.mxu0 0.0
        %993 = vmatpush1.xpose.msra.mxu0 0.0
        %994 = vmatprep.subr.mxu0 0.0
        %995 = vmatpush1.xpose.msra.mxu0 0.0
        %996 = vmatprep.subr.mxu0 0.0
        %997 = vmatpush1.xpose.msra.mxu0 0.0
        %998 = vmatprep.subr.mxu0 0.0
        %999 = vmatpush1.xpose.msra.mxu0 0.0
        %1000 = vmatprep.subr.mxu0 0.0
        %1001 = vmatpush1.xpose.msra.mxu0 0.0
        %1002 = vmatprep.subr.mxu0 0.0
        %1003 = vmatpush1.xpose.msra.mxu0 0.0
        %1004 = vmatprep.subr.mxu0 0.0
        %1005 = vmatpush1.xpose.msra.mxu0 0.0
        %1006 = vmatprep.subr.mxu0 0.0
        %1007 = vmatpush1.xpose.msra.mxu0 0.0
        %1008 = vmatprep.subr.mxu0 0.0
        %1009 = vmatpush1.xpose.msra.mxu0 0.0
        %1010 = vmatprep.subr.mxu0 0.0
        %1011 = vmatpush1.xpose.msra.mxu0 0.0
        %1012 = vmatprep.subr.mxu0 0.0
        %1013 = vmatpush1.xpose.msra.mxu0 0.0
        %1014 = vmatprep.subr.mxu0 0.0
        %1015 = vmatpush1.xpose.msra.mxu0 0.0
        %1016 = vmatprep.subr.mxu0 0.0
        %1017 = vmatpush1.xpose.msra.mxu0 0.0
        %1018 = vmatprep.subr.mxu0 0.0
        %1019 = vmatpush1.xpose.msra.mxu0 0.0
        %1020 = vmatprep.subr.mxu0 0.0
        %1021 = vmatpush1.xpose.msra.mxu0 0.0
        %1022 = vmatprep.subr.mxu0 0.0
        %1023 = vmatpush1.xpose.msra.mxu0 0.0
        %1024 = vmatprep.subr.mxu0 0.0
        %1025 = vmatpush1.xpose.msra.mxu0 0.0
        %1026 = vmatprep.subr.mxu0 0.0
        %1027 = vmatpush1.xpose.msra.mxu0 0.0
        %1028 = vmatprep.subr.mxu0 0.0
        %1029 = vmatpush1.xpose.msra.mxu0 0.0
        %1030 = vmatprep.subr.mxu0 0.0
        %1031 = vmatpush1.xpose.msra.mxu0 0.0
        %1032 = vmatprep.subr.mxu0 0.0
        %1033 = vmatpush1.xpose.msra.mxu0 0.0
        %1034 = vmatprep.subr.mxu0 0.0
        %1035 = vmatpush1.xpose.msra.mxu0 0.0
        %1036 = vmatprep.subr.mxu0 0.0
        %1037 = vmatpush1.xpose.msra.mxu0 0.0
        %1038 = vmatprep.subr.mxu0 0.0
        %1039 = vmatpush1.xpose.msra.mxu0 0.0
        %1040 = vmatprep.subr.mxu0 0.0
        %1041 = vmatpush1.xpose.msra.mxu0 0.0
        %1042 = vmatprep.subr.mxu0 0.0
        %1043 = vmatpush1.xpose.msra.mxu0 0.0
        %1044 = vmatprep.subr.mxu0 0.0
        %1045 = vmatpush1.xpose.msra.mxu0 0.0
        %1046 = vmatprep.mubr.f32.mxu0 0.0
        %1047 = vmatmul.mubr.f32.gmra.mrb[0].mxu0 %v971
        %v1048 = vpop.f32.mrb[0].mxu0
        %v1049 = vadd.f32 0.0, %v1048
        %v1050 = vpop.f32.mrb[0].mxu0
        %1051 = vmatprep.mubr.f32.mxu0 0.0
        %1052 = vmatmul.mubr.f32.gmra.mrb[0].mxu0 %v974
        %v1053 = vpop.f32.mrb[0].mxu0
        %v1054 = vadd.f32 0.0, %v1053
        %v1055 = vpop.f32.mrb[0].mxu0
        %1056 = vdwg.mxu0
        %1057 = vxpose.xlu0.b32.start [1/16] %v925, 128
        %1058 = vxpose.xlu0.b32.cont [2/16] %v926, 128
        %1059 = vxpose.xlu0.b32.cont [3/16] %v927, 128
        %1060 = vxpose.xlu0.b32.cont [4/16] %v928, 128
        %1061 = vxpose.xlu0.b32.cont [5/16] 0.0, 128
        %1062 = vxpose.xlu0.b32.cont [6/16] 0.0, 128
        %1063 = vxpose.xlu0.b32.cont [7/16] 0.0, 128
        %1064 = vxpose.xlu0.b32.cont [8/16] 0.0, 128
        %1065 = vxpose.xlu0.b32.cont [9/16] 0.0, 128
        %1066 = vxpose.xlu0.b32.cont [10/16] 0.0, 128
        %1067 = vxpose.xlu0.b32.cont [11/16] 0.0, 128
        %1068 = vxpose.xlu0.b32.cont [12/16] 0.0, 128
        %1069 = vxpose.xlu0.b32.cont [13/16] 0.0, 128
        %1070 = vxpose.xlu0.b32.cont [14/16] 0.0, 128
        %1071 = vxpose.xlu0.b32.cont [15/16] 0.0, 128
        %1072 = vxpose.xlu0.b32.end [16/16] 0.0, 128
        %v1073 = vpop.trf.xlu0
        %v1074 = vpop.trf.xlu0
        %v1075 = vpop.trf.xlu0
        %v1076 = vpop.trf.xlu0
        %v1077 = vpop.trf.xlu0
        %v1078 = vpop.trf.xlu0
        %v1079 = vpop.trf.xlu0
        %v1080 = vpop.trf.xlu0
        %v1081 = vpop.trf.xlu0
        %v1082 = vpop.trf.xlu0
        %v1083 = vpop.trf.xlu0
        %v1084 = vpop.trf.xlu0
        %v1085 = vpop.trf.xlu0
        %v1086 = vpop.trf.xlu0
        %v1087 = vpop.trf.xlu0
        %v1088 = vpop.trf.xlu0
        %1089 = vrot.lane.b32.xlu0 %v833, 96
        %v1090 = vpop.permute.xlu0 %1089
        %1091 = vrot.lane.b32.xlu0 %v837, 96
        %v1092 = vpop.permute.xlu0 %1091
        %v1094 = vsel %vm969, %v1073, 0
        %v1097 = vsel %vm969, %v1074, 0
        %v1099 = vsel %vm969, %v1090, 0
        %v1101 = vsel %vm969, %v1092, 0
        %1103 = vmatprep.subr.mxu0 0.0
        %1104 = vmatpush1.xpose.msra.mxu0 %v1099
        %1105 = vmatprep.subr.mxu0 0.0
        %1106 = vmatpush1.xpose.msra.mxu0 %v1101
        %1107 = vmatprep.subr.mxu0 0.0
        %1108 = vmatpush1.xpose.msra.mxu0 0.0
        %1109 = vmatprep.subr.mxu0 0.0
        %1110 = vmatpush1.xpose.msra.mxu0 0.0
        %1111 = vmatprep.subr.mxu0 0.0
        %1112 = vmatpush1.xpose.msra.mxu0 0.0
        %1113 = vmatprep.subr.mxu0 0.0
        %1114 = vmatpush1.xpose.msra.mxu0 0.0
        %1115 = vmatprep.subr.mxu0 0.0
        %1116 = vmatpush1.xpose.msra.mxu0 0.0
        %1117 = vmatprep.subr.mxu0 0.0
        %1118 = vmatpush1.xpose.msra.mxu0 0.0
        %1119 = vmatprep.subr.mxu0 0.0
        %1120 = vmatpush1.xpose.msra.mxu0 0.0
        %1121 = vmatprep.subr.mxu0 0.0
        %1122 = vmatpush1.xpose.msra.mxu0 0.0
        %1123 = vmatprep.subr.mxu0 0.0
        %1124 = vmatpush1.xpose.msra.mxu0 0.0
        %1125 = vmatprep.subr.mxu0 0.0
        %1126 = vmatpush1.xpose.msra.mxu0 0.0
        %1127 = vmatprep.subr.mxu0 0.0
        %1128 = vmatpush1.xpose.msra.mxu0 0.0
        %1129 = vmatprep.subr.mxu0 0.0
        %1130 = vmatpush1.xpose.msra.mxu0 0.0
        %1131 = vmatprep.subr.mxu0 0.0
        %1132 = vmatpush1.xpose.msra.mxu0 0.0
        %1133 = vmatprep.subr.mxu0 0.0
        %1134 = vmatpush1.xpose.msra.mxu0 0.0
        %1135 = vmatprep.subr.mxu0 0.0
        %1136 = vmatpush1.xpose.msra.mxu0 0.0
        %1137 = vmatprep.subr.mxu0 0.0
        %1138 = vmatpush1.xpose.msra.mxu0 0.0
        %1139 = vmatprep.subr.mxu0 0.0
        %1140 = vmatpush1.xpose.msra.mxu0 0.0
        %1141 = vmatprep.subr.mxu0 0.0
        %1142 = vmatpush1.xpose.msra.mxu0 0.0
        %1143 = vmatprep.subr.mxu0 0.0
        %1144 = vmatpush1.xpose.msra.mxu0 0.0
        %1145 = vmatprep.subr.mxu0 0.0
        %1146 = vmatpush1.xpose.msra.mxu0 0.0
        %1147 = vmatprep.subr.mxu0 0.0
        %1148 = vmatpush1.xpose.msra.mxu0 0.0
        %1149 = vmatprep.subr.mxu0 0.0
        %1150 = vmatpush1.xpose.msra.mxu0 0.0
        %1151 = vmatprep.subr.mxu0 0.0
        %1152 = vmatpush1.xpose.msra.mxu0 0.0
        %1153 = vmatprep.subr.mxu0 0.0
        %1154 = vmatpush1.xpose.msra.mxu0 0.0
        %1155 = vmatprep.subr.mxu0 0.0
        %1156 = vmatpush1.xpose.msra.mxu0 0.0
        %1157 = vmatprep.subr.mxu0 0.0
        %1158 = vmatpush1.xpose.msra.mxu0 0.0
        %1159 = vmatprep.subr.mxu0 0.0
        %1160 = vmatpush1.xpose.msra.mxu0 0.0
        %1161 = vmatprep.subr.mxu0 0.0
        %1162 = vmatpush1.xpose.msra.mxu0 0.0
        %1163 = vmatprep.subr.mxu0 0.0
        %1164 = vmatpush1.xpose.msra.mxu0 0.0
        %1165 = vmatprep.subr.mxu0 0.0
        %1166 = vmatpush1.xpose.msra.mxu0 0.0
        %1167 = vmatprep.mubr.f32.mxu0 0.0
        %1168 = vmatmul.mubr.f32.gmra.mrb[0].mxu0 %v1094
        %v1169 = vpop.f32.mrb[0].mxu0
        %v1170 = vadd.f32 0.0, %v1169
        %v1171 = vpop.f32.mrb[0].mxu0
        %1172 = vmatprep.mubr.f32.mxu0 0.0
        %1173 = vmatmul.mubr.f32.gmra.mrb[0].mxu0 %v1097
        %v1174 = vpop.f32.mrb[0].mxu0
        %v1175 = vadd.f32 0.0, %v1174
        %v1176 = vpop.f32.mrb[0].mxu0
        %1177 = vdwg.mxu0
        %1178 = vxpose.xlu0.b32.start [1/16] %v929, 128
        %1179 = vxpose.xlu0.b32.cont [2/16] %v930, 128
        %1180 = vxpose.xlu0.b32.cont [3/16] %v931, 128
        %1181 = vxpose.xlu0.b32.cont [4/16] %v932, 128
        %1182 = vxpose.xlu0.b32.cont [5/16] 0.0, 128
        %1183 = vxpose.xlu0.b32.cont [6/16] 0.0, 128
        %1184 = vxpose.xlu0.b32.cont [7/16] 0.0, 128
        %1185 = vxpose.xlu0.b32.cont [8/16] 0.0, 128
        %1186 = vxpose.xlu0.b32.cont [9/16] 0.0, 128
        %1187 = vxpose.xlu0.b32.cont [10/16] 0.0, 128
        %1188 = vxpose.xlu0.b32.cont [11/16] 0.0, 128
        %1189 = vxpose.xlu0.b32.cont [12/16] 0.0, 128
        %1190 = vxpose.xlu0.b32.cont [13/16] 0.0, 128
        %1191 = vxpose.xlu0.b32.cont [14/16] 0.0, 128
        %1192 = vxpose.xlu0.b32.cont [15/16] 0.0, 128
        %1193 = vxpose.xlu0.b32.end [16/16] 0.0, 128
        %v1194 = vpop.trf.xlu0
        %v1195 = vpop.trf.xlu0
        %v1196 = vpop.trf.xlu0
        %v1197 = vpop.trf.xlu0
        %v1198 = vpop.trf.xlu0
        %v1199 = vpop.trf.xlu0
        %v1200 = vpop.trf.xlu0
        %v1201 = vpop.trf.xlu0
        %v1202 = vpop.trf.xlu0
        %v1203 = vpop.trf.xlu0
        %v1204 = vpop.trf.xlu0
        %v1205 = vpop.trf.xlu0
        %v1206 = vpop.trf.xlu0
        %v1207 = vpop.trf.xlu0
        %v1208 = vpop.trf.xlu0
        %v1209 = vpop.trf.xlu0
        %1210 = vrot.lane.b32.xlu0 %v833, 64
        %v1211 = vpop.permute.xlu0 %1210
        %1212 = vrot.lane.b32.xlu0 %v837, 64
        %v1213 = vpop.permute.xlu0 %1212
        %v1215 = vsel %vm969, %v1194, 0
        %v1218 = vsel %vm969, %v1195, 0
        %v1220 = vsel %vm969, %v1211, 0
        %v1222 = vsel %vm969, %v1213, 0
        %1224 = vmatprep.subr.mxu0 0.0
        %1225 = vmatpush1.xpose.msra.mxu0 %v1220
        %1226 = vmatprep.subr.mxu0 0.0
        %1227 = vmatpush1.xpose.msra.mxu0 %v1222
        %1228 = vmatprep.subr.mxu0 0.0
        %1229 = vmatpush1.xpose.msra.mxu0 0.0
        %1230 = vmatprep.subr.mxu0 0.0
        %1231 = vmatpush1.xpose.msra.mxu0 0.0
        %1232 = vmatprep.subr.mxu0 0.0
        %1233 = vmatpush1.xpose.msra.mxu0 0.0
        %1234 = vmatprep.subr.mxu0 0.0
        %1235 = vmatpush1.xpose.msra.mxu0 0.0
        %1236 = vmatprep.subr.mxu0 0.0
        %1237 = vmatpush1.xpose.msra.mxu0 0.0
        %1238 = vmatprep.subr.mxu0 0.0
        %1239 = vmatpush1.xpose.msra.mxu0 0.0
        %1240 = vmatprep.subr.mxu0 0.0
        %1241 = vmatpush1.xpose.msra.mxu0 0.0
        %1242 = vmatprep.subr.mxu0 0.0
        %1243 = vmatpush1.xpose.msra.mxu0 0.0
        %1244 = vmatprep.subr.mxu0 0.0
        %1245 = vmatpush1.xpose.msra.mxu0 0.0
        %1246 = vmatprep.subr.mxu0 0.0
        %1247 = vmatpush1.xpose.msra.mxu0 0.0
        %1248 = vmatprep.subr.mxu0 0.0
        %1249 = vmatpush1.xpose.msra.mxu0 0.0
        %1250 = vmatprep.subr.mxu0 0.0
        %1251 = vmatpush1.xpose.msra.mxu0 0.0
        %1252 = vmatprep.subr.mxu0 0.0
        %1253 = vmatpush1.xpose.msra.mxu0 0.0
        %1254 = vmatprep.subr.mxu0 0.0
        %1255 = vmatpush1.xpose.msra.mxu0 0.0
        %1256 = vmatprep.subr.mxu0 0.0
        %1257 = vmatpush1.xpose.msra.mxu0 0.0
        %1258 = vmatprep.subr.mxu0 0.0
        %1259 = vmatpush1.xpose.msra.mxu0 0.0
        %1260 = vmatprep.subr.mxu0 0.0
        %1261 = vmatpush1.xpose.msra.mxu0 0.0
        %1262 = vmatprep.subr.mxu0 0.0
        %1263 = vmatpush1.xpose.msra.mxu0 0.0
        %1264 = vmatprep.subr.mxu0 0.0
        %1265 = vmatpush1.xpose.msra.mxu0 0.0
        %1266 = vmatprep.subr.mxu0 0.0
        %1267 = vmatpush1.xpose.msra.mxu0 0.0
        %1268 = vmatprep.subr.mxu0 0.0
        %1269 = vmatpush1.xpose.msra.mxu0 0.0
        %1270 = vmatprep.subr.mxu0 0.0
        %1271 = vmatpush1.xpose.msra.mxu0 0.0
        %1272 = vmatprep.subr.mxu0 0.0
        %1273 = vmatpush1.xpose.msra.mxu0 0.0
        %1274 = vmatprep.subr.mxu0 0.0
        %1275 = vmatpush1.xpose.msra.mxu0 0.0
        %1276 = vmatprep.subr.mxu0 0.0
        %1277 = vmatpush1.xpose.msra.mxu0 0.0
        %1278 = vmatprep.subr.mxu0 0.0
        %1279 = vmatpush1.xpose.msra.mxu0 0.0
        %1280 = vmatprep.subr.mxu0 0.0
        %1281 = vmatpush1.xpose.msra.mxu0 0.0
        %1282 = vmatprep.subr.mxu0 0.0
        %1283 = vmatpush1.xpose.msra.mxu0 0.0
        %1284 = vmatprep.subr.mxu0 0.0
        %1285 = vmatpush1.xpose.msra.mxu0 0.0
        %1286 = vmatprep.subr.mxu0 0.0
        %1287 = vmatpush1.xpose.msra.mxu0 0.0
        %1288 = vmatprep.mubr.f32.mxu0 0.0
        %1289 = vmatmul.mubr.f32.gmra.mrb[0].mxu0 %v1215
        %v1290 = vpop.f32.mrb[0].mxu0
        %v1291 = vadd.f32 0.0, %v1290
        %v1292 = vpop.f32.mrb[0].mxu0
        %1293 = vmatprep.mubr.f32.mxu0 0.0
        %1294 = vmatmul.mubr.f32.gmra.mrb[0].mxu0 %v1218
        %v1295 = vpop.f32.mrb[0].mxu0
        %v1296 = vadd.f32 0.0, %v1295
        %v1297 = vpop.f32.mrb[0].mxu0
        %1298 = vdwg.mxu0
        %1299 = vxpose.xlu0.b32.start [1/16] %v933, 128
        %1300 = vxpose.xlu0.b32.cont [2/16] %v934, 128
        %1301 = vxpose.xlu0.b32.cont [3/16] %v935, 128
        %1302 = vxpose.xlu0.b32.cont [4/16] %v936, 128
        %1303 = vxpose.xlu0.b32.cont [5/16] 0.0, 128
        %1304 = vxpose.xlu0.b32.cont [6/16] 0.0, 128
        %1305 = vxpose.xlu0.b32.cont [7/16] 0.0, 128
        %1306 = vxpose.xlu0.b32.cont [8/16] 0.0, 128
        %1307 = vxpose.xlu0.b32.cont [9/16] 0.0, 128
        %1308 = vxpose.xlu0.b32.cont [10/16] 0.0, 128
        %1309 = vxpose.xlu0.b32.cont [11/16] 0.0, 128
        %1310 = vxpose.xlu0.b32.cont [12/16] 0.0, 128
        %1311 = vxpose.xlu0.b32.cont [13/16] 0.0, 128
        %1312 = vxpose.xlu0.b32.cont [14/16] 0.0, 128
        %1313 = vxpose.xlu0.b32.cont [15/16] 0.0, 128
        %1314 = vxpose.xlu0.b32.end [16/16] 0.0, 128
        %v1315 = vpop.trf.xlu0
        %v1316 = vpop.trf.xlu0
        %v1317 = vpop.trf.xlu0
        %v1318 = vpop.trf.xlu0
        %v1319 = vpop.trf.xlu0
        %v1320 = vpop.trf.xlu0
        %v1321 = vpop.trf.xlu0
        %v1322 = vpop.trf.xlu0
        %v1323 = vpop.trf.xlu0
        %v1324 = vpop.trf.xlu0
        %v1325 = vpop.trf.xlu0
        %v1326 = vpop.trf.xlu0
        %v1327 = vpop.trf.xlu0
        %v1328 = vpop.trf.xlu0
        %v1329 = vpop.trf.xlu0
        %v1330 = vpop.trf.xlu0
        %1331 = vrot.lane.b32.xlu0 %v833, 32
        %v1332 = vpop.permute.xlu0 %1331
        %1333 = vrot.lane.b32.xlu0 %v837, 32
        %v1334 = vpop.permute.xlu0 %1333
        %v1336 = vsel %vm969, %v1315, 0
        %v1339 = vsel %vm969, %v1316, 0
        %v1341 = vsel %vm969, %v1332, 0
        %v1343 = vsel %vm969, %v1334, 0
        %1345 = vmatprep.subr.mxu0 0.0
        %1346 = vmatpush1.xpose.msra.mxu0 %v1341
        %1347 = vmatprep.subr.mxu0 0.0
        %1348 = vmatpush1.xpose.msra.mxu0 %v1343
        %1349 = vmatprep.subr.mxu0 0.0
        %1350 = vmatpush1.xpose.msra.mxu0 0.0
        %1351 = vmatprep.subr.mxu0 0.0
        %1352 = vmatpush1.xpose.msra.mxu0 0.0
        %1353 = vmatprep.subr.mxu0 0.0
        %1354 = vmatpush1.xpose.msra.mxu0 0.0
        %1355 = vmatprep.subr.mxu0 0.0
        %1356 = vmatpush1.xpose.msra.mxu0 0.0
        %1357 = vmatprep.subr.mxu0 0.0
        %1358 = vmatpush1.xpose.msra.mxu0 0.0
        %1359 = vmatprep.subr.mxu0 0.0
        %1360 = vmatpush1.xpose.msra.mxu0 0.0
        %1361 = vmatprep.subr.mxu0 0.0
        %1362 = vmatpush1.xpose.msra.mxu0 0.0
        %1363 = vmatprep.subr.mxu0 0.0
        %1364 = vmatpush1.xpose.msra.mxu0 0.0
        %1365 = vmatprep.subr.mxu0 0.0
        %1366 = vmatpush1.xpose.msra.mxu0 0.0
        %1367 = vmatprep.subr.mxu0 0.0
        %1368 = vmatpush1.xpose.msra.mxu0 0.0
        %1369 = vmatprep.subr.mxu0 0.0
        %1370 = vmatpush1.xpose.msra.mxu0 0.0
        %1371 = vmatprep.subr.mxu0 0.0
        %1372 = vmatpush1.xpose.msra.mxu0 0.0
        %1373 = vmatprep.subr.mxu0 0.0
        %1374 = vmatpush1.xpose.msra.mxu0 0.0
        %1375 = vmatprep.subr.mxu0 0.0
        %1376 = vmatpush1.xpose.msra.mxu0 0.0
        %1377 = vmatprep.subr.mxu0 0.0
        %1378 = vmatpush1.xpose.msra.mxu0 0.0
        %1379 = vmatprep.subr.mxu0 0.0
        %1380 = vmatpush1.xpose.msra.mxu0 0.0
        %1381 = vmatprep.subr.mxu0 0.0
        %1382 = vmatpush1.xpose.msra.mxu0 0.0
        %1383 = vmatprep.subr.mxu0 0.0
        %1384 = vmatpush1.xpose.msra.mxu0 0.0
        %1385 = vmatprep.subr.mxu0 0.0
        %1386 = vmatpush1.xpose.msra.mxu0 0.0
        %1387 = vmatprep.subr.mxu0 0.0
        %1388 = vmatpush1.xpose.msra.mxu0 0.0
        %1389 = vmatprep.subr.mxu0 0.0
        %1390 = vmatpush1.xpose.msra.mxu0 0.0
        %1391 = vmatprep.subr.mxu0 0.0
        %1392 = vmatpush1.xpose.msra.mxu0 0.0
        %1393 = vmatprep.subr.mxu0 0.0
        %1394 = vmatpush1.xpose.msra.mxu0 0.0
        %1395 = vmatprep.subr.mxu0 0.0
        %1396 = vmatpush1.xpose.msra.mxu0 0.0
        %1397 = vmatprep.subr.mxu0 0.0
        %1398 = vmatpush1.xpose.msra.mxu0 0.0
        %1399 = vmatprep.subr.mxu0 0.0
        %1400 = vmatpush1.xpose.msra.mxu0 0.0
        %1401 = vmatprep.subr.mxu0 0.0
        %1402 = vmatpush1.xpose.msra.mxu0 0.0
        %1403 = vmatprep.subr.mxu0 0.0
        %1404 = vmatpush1.xpose.msra.mxu0 0.0
        %1405 = vmatprep.subr.mxu0 0.0
        %1406 = vmatpush1.xpose.msra.mxu0 0.0
        %1407 = vmatprep.subr.mxu0 0.0
        %1408 = vmatpush1.xpose.msra.mxu0 0.0
        %1409 = vmatprep.mubr.f32.mxu0 0.0
        %1410 = vmatmul.mubr.f32.gmra.mrb[0].mxu0 %v1336
        %v1411 = vpop.f32.mrb[0].mxu0
        %v1412 = vadd.f32 0.0, %v1411
        %v1413 = vpop.f32.mrb[0].mxu0
        %1414 = vmatprep.mubr.f32.mxu0 0.0
        %1415 = vmatmul.mubr.f32.gmra.mrb[0].mxu0 %v1339
        %v1416 = vpop.f32.mrb[0].mxu0
        %v1417 = vadd.f32 0.0, %v1416
        %v1418 = vpop.f32.mrb[0].mxu0
        %1419 = vdwg.mxu0
        %v1420 = vmul.f32 %v1049, 0.17677669
        %v1421 = vmul.f32 %v1054, 0.17677669
        %v1422 = vmul.f32 %v1170, 0.17677669
        %v1423 = vmul.f32 %v1175, 0.17677669
        %v1424 = vmul.f32 %v1291, 0.17677669
        %v1425 = vmul.f32 %v1296, 0.17677669
        %v1426 = vmul.f32 %v1412, 0.17677669
        %v1427 = vmul.f32 %v1417, 0.17677669
        %v1428 = vsel %vm903, -1e+30, %v1420
        %v1429 = vsel %vm904, -1e+30, %v1421
        %v1430 = vsel %vm903, -1e+30, %v1422
        %v1431 = vsel %vm904, -1e+30, %v1423
        %v1432 = vsel %vm903, -1e+30, %v1424
        %v1433 = vsel %vm904, -1e+30, %v1425
        %v1434 = vsel %vm903, -1e+30, %v1426
        %v1435 = vsel %vm904, -1e+30, %v1427
        %vm1436 = vcmask 130048
        %v1437 = vsel %vm1436, %v1428, -inf
        %1438 = vmax.xlane.f32.xlu0 %v1437
        %v1439 = vpop.xlane.xlu0 %1438
        %v1440 = vsel %vm1436, %v1429, -inf
        %1441 = vmax.xlane.f32.xlu0 %v1440
        %v1442 = vpop.xlane.xlu0 %1441
        %v1443 = vsel %vm1436, %v1430, -inf
        %1444 = vmax.xlane.f32.xlu0 %v1443
        %v1445 = vpop.xlane.xlu0 %1444
        %v1446 = vsel %vm1436, %v1431, -inf
        %1447 = vmax.xlane.f32.xlu0 %v1446
        %v1448 = vpop.xlane.xlu0 %1447
        %v1449 = vsel %vm1436, %v1432, -inf
        %1450 = vmax.xlane.f32.xlu0 %v1449
        %v1451 = vpop.xlane.xlu0 %1450
        %v1452 = vsel %vm1436, %v1433, -inf
        %1453 = vmax.xlane.f32.xlu0 %v1452
        %v1454 = vpop.xlane.xlu0 %1453
        %v1455 = vsel %vm1436, %v1434, -inf
        %1456 = vmax.xlane.f32.xlu0 %v1455
        %v1457 = vpop.xlane.xlu0 %1456
        %v1458 = vsel %vm1436, %v1435, -inf
        %1459 = vmax.xlane.f32.xlu0 %v1458
        %v1460 = vpop.xlane.xlu0 %1459
        %v1461 = vsub.f32 %v1428, %v1439
        %v1462 = vsub.f32 %v1429, %v1442
        %v1463 = vsub.f32 %v1430, %v1445
        %v1464 = vsub.f32 %v1431, %v1448
        %v1465 = vsub.f32 %v1432, %v1451
        %v1466 = vsub.f32 %v1433, %v1454
        %v1467 = vsub.f32 %v1434, %v1457
        %v1468 = vsub.f32 %v1435, %v1460
        %v1469 = vmul.f32 %v1461, 1.442695
        %v1470 = vpow.pop %v1469
        %v1471 = vmul.f32 %v1462, 1.442695
        %v1472 = vpow.pop %v1471
        %v1473 = vmul.f32 %v1463, 1.442695
        %v1474 = vpow.pop %v1473
        %v1475 = vmul.f32 %v1464, 1.442695
        %v1476 = vpow.pop %v1475
        %v1477 = vmul.f32 %v1465, 1.442695
        %v1478 = vpow.pop %v1477
        %v1479 = vmul.f32 %v1466, 1.442695
        %v1480 = vpow.pop %v1479
        %v1481 = vmul.f32 %v1467, 1.442695
        %v1482 = vpow.pop %v1481
        %v1483 = vmul.f32 %v1468, 1.442695
        %v1484 = vpow.pop %v1483
        %v1485 = vsel %vm1436, %v1470, 0.0
        %1486 = vadd.xlane.f32.xlu0 %v1485
        %v1487 = vpop.xlane.xlu0 %1486
        %v1488 = vsel %vm1436, %v1472, 0.0
        %1489 = vadd.xlane.f32.xlu0 %v1488
        %v1490 = vpop.xlane.xlu0 %1489
        %v1491 = vsel %vm1436, %v1474, 0.0
        %1492 = vadd.xlane.f32.xlu0 %v1491
        %v1493 = vpop.xlane.xlu0 %1492
        %v1494 = vsel %vm1436, %v1476, 0.0
        %1495 = vadd.xlane.f32.xlu0 %v1494
        %v1496 = vpop.xlane.xlu0 %1495
        %v1497 = vsel %vm1436, %v1478, 0.0
        %1498 = vadd.xlane.f32.xlu0 %v1497
        %v1499 = vpop.xlane.xlu0 %1498
        %v1500 = vsel %vm1436, %v1480, 0.0
        %1501 = vadd.xlane.f32.xlu0 %v1500
        %v1502 = vpop.xlane.xlu0 %1501
        %v1503 = vsel %vm1436, %v1482, 0.0
        %1504 = vadd.xlane.f32.xlu0 %v1503
        %v1505 = vpop.xlane.xlu0 %1504
        %v1506 = vsel %vm1436, %v1484, 0.0
        %1507 = vadd.xlane.f32.xlu0 %v1506
        %v1508 = vpop.xlane.xlu0 %1507
        %v1509 = vrcp.pop %v1487
        %v1510 = vrcp.pop %v1490
        %v1511 = vrcp.pop %v1493
        %v1512 = vrcp.pop %v1496
        %v1513 = vrcp.pop %v1499
        %v1514 = vrcp.pop %v1502
        %v1515 = vrcp.pop %v1505
        %v1516 = vrcp.pop %v1508
        %v1517 = vmul.f32 %v1470, %v1509
        %v1518 = vmul.f32 %v1472, %v1510
        %v1519 = vmul.f32 %v1474, %v1511
        %v1520 = vmul.f32 %v1476, %v1512
        %v1521 = vmul.f32 %v1478, %v1513
        %v1522 = vmul.f32 %v1480, %v1514
        %v1523 = vmul.f32 %v1482, %v1515
        %v1524 = vmul.f32 %v1484, %v1516
        %v1526 = vsel %vm1436, %v1517, 0
        %v1529 = vsel %vm1436, %v1518, 0
        %1531 = vmatprep.subr.mxu0 0.0
        %1532 = vmatpush1.msra.mxu0 %v884
        %1533 = vmatprep.subr.mxu0 0.0
        %1534 = vmatpush1.msra.mxu0 %v887
        %1535 = vmatprep.subr.mxu0 0.0
        %1536 = vmatpush1.msra.mxu0 0.0
        %1537 = vmatprep.subr.mxu0 0.0
        %1538 = vmatpush1.msra.mxu0 0.0
        %1539 = vmatprep.subr.mxu0 0.0
        %1540 = vmatpush1.msra.mxu0 0.0
        %1541 = vmatprep.subr.mxu0 0.0
        %1542 = vmatpush1.msra.mxu0 0.0
        %1543 = vmatprep.subr.mxu0 0.0
        %1544 = vmatpush1.msra.mxu0 0.0
        %1545 = vmatprep.subr.mxu0 0.0
        %1546 = vmatpush1.msra.mxu0 0.0
        %1547 = vmatprep.subr.mxu0 0.0
        %1548 = vmatpush1.msra.mxu0 0.0
        %1549 = vmatprep.subr.mxu0 0.0
        %1550 = vmatpush1.msra.mxu0 0.0
        %1551 = vmatprep.subr.mxu0 0.0
        %1552 = vmatpush1.msra.mxu0 0.0
        %1553 = vmatprep.subr.mxu0 0.0
        %1554 = vmatpush1.msra.mxu0 0.0
        %1555 = vmatprep.subr.mxu0 0.0
        %1556 = vmatpush1.msra.mxu0 0.0
        %1557 = vmatprep.subr.mxu0 0.0
        %1558 = vmatpush1.msra.mxu0 0.0
        %1559 = vmatprep.subr.mxu0 0.0
        %1560 = vmatpush1.msra.mxu0 0.0
        %1561 = vmatprep.subr.mxu0 0.0
        %1562 = vmatpush1.msra.mxu0 0.0
        %1563 = vmatprep.subr.mxu0 0.0
        %1564 = vmatpush1.msra.mxu0 0.0
        %1565 = vmatprep.subr.mxu0 0.0
        %1566 = vmatpush1.msra.mxu0 0.0
        %1567 = vmatprep.subr.mxu0 0.0
        %1568 = vmatpush1.msra.mxu0 0.0
        %1569 = vmatprep.subr.mxu0 0.0
        %1570 = vmatpush1.msra.mxu0 0.0
        %1571 = vmatprep.subr.mxu0 0.0
        %1572 = vmatpush1.msra.mxu0 0.0
        %1573 = vmatprep.subr.mxu0 0.0
        %1574 = vmatpush1.msra.mxu0 0.0
        %1575 = vmatprep.subr.mxu0 0.0
        %1576 = vmatpush1.msra.mxu0 0.0
        %1577 = vmatprep.subr.mxu0 0.0
        %1578 = vmatpush1.msra.mxu0 0.0
        %1579 = vmatprep.subr.mxu0 0.0
        %1580 = vmatpush1.msra.mxu0 0.0
        %1581 = vmatprep.subr.mxu0 0.0
        %1582 = vmatpush1.msra.mxu0 0.0
        %1583 = vmatprep.subr.mxu0 0.0
        %1584 = vmatpush1.msra.mxu0 0.0
        %1585 = vmatprep.subr.mxu0 0.0
        %1586 = vmatpush1.msra.mxu0 0.0
        %1587 = vmatprep.subr.mxu0 0.0
        %1588 = vmatpush1.msra.mxu0 0.0
        %1589 = vmatprep.subr.mxu0 0.0
        %1590 = vmatpush1.msra.mxu0 0.0
        %1591 = vmatprep.subr.mxu0 0.0
        %1592 = vmatpush1.msra.mxu0 0.0
        %1593 = vmatprep.subr.mxu0 0.0
        %1594 = vmatpush1.msra.mxu0 0.0
        %1595 = vmatprep.mubr.f32.mxu0 0.0
        %1596 = vmatmul.mubr.f32.gmra.mrb[0].mxu0 %v1526
        %v1597 = vpop.f32.mrb[0].mxu0
        %v1598 = vadd.f32 0.0, %v1597
        %v1599 = vpop.f32.mrb[0].mxu0
        %1600 = vmatprep.mubr.f32.mxu0 0.0
        %1601 = vmatmul.mubr.f32.gmra.mrb[0].mxu0 %v1529
        %v1602 = vpop.f32.mrb[0].mxu0
        %v1603 = vadd.f32 0.0, %v1602
        %v1604 = vpop.f32.mrb[0].mxu0
        %1605 = vdwg.mxu0
        %1608 = vrot.lane.b32.xlu0 %v884, 96
        %v1609 = vpop.permute.xlu0 %1608
        %1610 = vrot.lane.b32.xlu0 %v887, 96
        %v1611 = vpop.permute.xlu0 %1610
        %v1615 = vsel %vm1436, %v1519, 0
        %v1618 = vsel %vm1436, %v1520, 0
        %1620 = vmatprep.subr.mxu0 0.0
        %1621 = vmatpush1.msra.mxu0 %v1609
        %1622 = vmatprep.subr.mxu0 0.0
        %1623 = vmatpush1.msra.mxu0 %v1611
        %1624 = vmatprep.subr.mxu0 0.0
        %1625 = vmatpush1.msra.mxu0 0.0
        %1626 = vmatprep.subr.mxu0 0.0
        %1627 = vmatpush1.msra.mxu0 0.0
        %1628 = vmatprep.subr.mxu0 0.0
        %1629 = vmatpush1.msra.mxu0 0.0
        %1630 = vmatprep.subr.mxu0 0.0
        %1631 = vmatpush1.msra.mxu0 0.0
        %1632 = vmatprep.subr.mxu0 0.0
        %1633 = vmatpush1.msra.mxu0 0.0
        %1634 = vmatprep.subr.mxu0 0.0
        %1635 = vmatpush1.msra.mxu0 0.0
        %1636 = vmatprep.subr.mxu0 0.0
        %1637 = vmatpush1.msra.mxu0 0.0
        %1638 = vmatprep.subr.mxu0 0.0
        %1639 = vmatpush1.msra.mxu0 0.0
        %1640 = vmatprep.subr.mxu0 0.0
        %1641 = vmatpush1.msra.mxu0 0.0
        %1642 = vmatprep.subr.mxu0 0.0
        %1643 = vmatpush1.msra.mxu0 0.0
        %1644 = vmatprep.subr.mxu0 0.0
        %1645 = vmatpush1.msra.mxu0 0.0
        %1646 = vmatprep.subr.mxu0 0.0
        %1647 = vmatpush1.msra.mxu0 0.0
        %1648 = vmatprep.subr.mxu0 0.0
        %1649 = vmatpush1.msra.mxu0 0.0
        %1650 = vmatprep.subr.mxu0 0.0
        %1651 = vmatpush1.msra.mxu0 0.0
        %1652 = vmatprep.subr.mxu0 0.0
        %1653 = vmatpush1.msra.mxu0 0.0
        %1654 = vmatprep.subr.mxu0 0.0
        %1655 = vmatpush1.msra.mxu0 0.0
        %1656 = vmatprep.subr.mxu0 0.0
        %1657 = vmatpush1.msra.mxu0 0.0
        %1658 = vmatprep.subr.mxu0 0.0
        %1659 = vmatpush1.msra.mxu0 0.0
        %1660 = vmatprep.subr.mxu0 0.0
        %1661 = vmatpush1.msra.mxu0 0.0
        %1662 = vmatprep.subr.mxu0 0.0
        %1663 = vmatpush1.msra.mxu0 0.0
        %1664 = vmatprep.subr.mxu0 0.0
        %1665 = vmatpush1.msra.mxu0 0.0
        %1666 = vmatprep.subr.mxu0 0.0
        %1667 = vmatpush1.msra.mxu0 0.0
        %1668 = vmatprep.subr.mxu0 0.0
        %1669 = vmatpush1.msra.mxu0 0.0
        %1670 = vmatprep.subr.mxu0 0.0
        %1671 = vmatpush1.msra.mxu0 0.0
        %1672 = vmatprep.subr.mxu0 0.0
        %1673 = vmatpush1.msra.mxu0 0.0
        %1674 = vmatprep.subr.mxu0 0.0
        %1675 = vmatpush1.msra.mxu0 0.0
        %1676 = vmatprep.subr.mxu0 0.0
        %1677 = vmatpush1.msra.mxu0 0.0
        %1678 = vmatprep.subr.mxu0 0.0
        %1679 = vmatpush1.msra.mxu0 0.0
        %1680 = vmatprep.subr.mxu0 0.0
        %1681 = vmatpush1.msra.mxu0 0.0
        %1682 = vmatprep.subr.mxu0 0.0
        %1683 = vmatpush1.msra.mxu0 0.0
        %1684 = vmatprep.mubr.f32.mxu0 0.0
        %1685 = vmatmul.mubr.f32.gmra.mrb[0].mxu0 %v1615
        %v1686 = vpop.f32.mrb[0].mxu0
        %v1687 = vadd.f32 0.0, %v1686
        %v1688 = vpop.f32.mrb[0].mxu0
        %1689 = vmatprep.mubr.f32.mxu0 0.0
        %1690 = vmatmul.mubr.f32.gmra.mrb[0].mxu0 %v1618
        %v1691 = vpop.f32.mrb[0].mxu0
        %v1692 = vadd.f32 0.0, %v1691
        %v1693 = vpop.f32.mrb[0].mxu0
        %1694 = vdwg.mxu0
        %1695 = vrot.lane.b32.xlu0 %v884, 64
        %v1696 = vpop.permute.xlu0 %1695
        %1697 = vrot.lane.b32.xlu0 %v887, 64
        %v1698 = vpop.permute.xlu0 %1697
        %v1702 = vsel %vm1436, %v1521, 0
        %v1705 = vsel %vm1436, %v1522, 0
        %1707 = vmatprep.subr.mxu0 0.0
        %1708 = vmatpush1.msra.mxu0 %v1696
        %1709 = vmatprep.subr.mxu0 0.0
        %1710 = vmatpush1.msra.mxu0 %v1698
        %1711 = vmatprep.subr.mxu0 0.0
        %1712 = vmatpush1.msra.mxu0 0.0
        %1713 = vmatprep.subr.mxu0 0.0
        %1714 = vmatpush1.msra.mxu0 0.0
        %1715 = vmatprep.subr.mxu0 0.0
        %1716 = vmatpush1.msra.mxu0 0.0
        %1717 = vmatprep.subr.mxu0 0.0
        %1718 = vmatpush1.msra.mxu0 0.0
        %1719 = vmatprep.subr.mxu0 0.0
        %1720 = vmatpush1.msra.mxu0 0.0
        %1721 = vmatprep.subr.mxu0 0.0
        %1722 = vmatpush1.msra.mxu0 0.0
        %1723 = vmatprep.subr.mxu0 0.0
        %1724 = vmatpush1.msra.mxu0 0.0
        %1725 = vmatprep.subr.mxu0 0.0
        %1726 = vmatpush1.msra.mxu0 0.0
        %1727 = vmatprep.subr.mxu0 0.0
        %1728 = vmatpush1.msra.mxu0 0.0
        %1729 = vmatprep.subr.mxu0 0.0
        %1730 = vmatpush1.msra.mxu0 0.0
        %1731 = vmatprep.subr.mxu0 0.0
        %1732 = vmatpush1.msra.mxu0 0.0
        %1733 = vmatprep.subr.mxu0 0.0
        %1734 = vmatpush1.msra.mxu0 0.0
        %1735 = vmatprep.subr.mxu0 0.0
        %1736 = vmatpush1.msra.mxu0 0.0
        %1737 = vmatprep.subr.mxu0 0.0
        %1738 = vmatpush1.msra.mxu0 0.0
        %1739 = vmatprep.subr.mxu0 0.0
        %1740 = vmatpush1.msra.mxu0 0.0
        %1741 = vmatprep.subr.mxu0 0.0
        %1742 = vmatpush1.msra.mxu0 0.0
        %1743 = vmatprep.subr.mxu0 0.0
        %1744 = vmatpush1.msra.mxu0 0.0
        %1745 = vmatprep.subr.mxu0 0.0
        %1746 = vmatpush1.msra.mxu0 0.0
        %1747 = vmatprep.subr.mxu0 0.0
        %1748 = vmatpush1.msra.mxu0 0.0
        %1749 = vmatprep.subr.mxu0 0.0
        %1750 = vmatpush1.msra.mxu0 0.0
        %1751 = vmatprep.subr.mxu0 0.0
        %1752 = vmatpush1.msra.mxu0 0.0
        %1753 = vmatprep.subr.mxu0 0.0
        %1754 = vmatpush1.msra.mxu0 0.0
        %1755 = vmatprep.subr.mxu0 0.0
        %1756 = vmatpush1.msra.mxu0 0.0
        %1757 = vmatprep.subr.mxu0 0.0
        %1758 = vmatpush1.msra.mxu0 0.0
        %1759 = vmatprep.subr.mxu0 0.0
        %1760 = vmatpush1.msra.mxu0 0.0
        %1761 = vmatprep.subr.mxu0 0.0
        %1762 = vmatpush1.msra.mxu0 0.0
        %1763 = vmatprep.subr.mxu0 0.0
        %1764 = vmatpush1.msra.mxu0 0.0
        %1765 = vmatprep.subr.mxu0 0.0
        %1766 = vmatpush1.msra.mxu0 0.0
        %1767 = vmatprep.subr.mxu0 0.0
        %1768 = vmatpush1.msra.mxu0 0.0
        %1769 = vmatprep.subr.mxu0 0.0
        %1770 = vmatpush1.msra.mxu0 0.0
        %1771 = vmatprep.mubr.f32.mxu0 0.0
        %1772 = vmatmul.mubr.f32.gmra.mrb[0].mxu0 %v1702
        %v1773 = vpop.f32.mrb[0].mxu0
        %v1774 = vadd.f32 0.0, %v1773
        %v1775 = vpop.f32.mrb[0].mxu0
        %1776 = vmatprep.mubr.f32.mxu0 0.0
        %1777 = vmatmul.mubr.f32.gmra.mrb[0].mxu0 %v1705
        %v1778 = vpop.f32.mrb[0].mxu0
        %v1779 = vadd.f32 0.0, %v1778
        %v1780 = vpop.f32.mrb[0].mxu0
        %1781 = vdwg.mxu0
        %1782 = vrot.lane.b32.xlu0 %v884, 32
        %v1783 = vpop.permute.xlu0 %1782
        %1784 = vrot.lane.b32.xlu0 %v887, 32
        %v1785 = vpop.permute.xlu0 %1784
        %v1789 = vsel %vm1436, %v1523, 0
        %v1792 = vsel %vm1436, %v1524, 0
        %1794 = vmatprep.subr.mxu0 0.0
        %1795 = vmatpush1.msra.mxu0 %v1783
        %1796 = vmatprep.subr.mxu0 0.0
        %1797 = vmatpush1.msra.mxu0 %v1785
        %1798 = vmatprep.subr.mxu0 0.0
        %1799 = vmatpush1.msra.mxu0 0.0
        %1800 = vmatprep.subr.mxu0 0.0
        %1801 = vmatpush1.msra.mxu0 0.0
        %1802 = vmatprep.subr.mxu0 0.0
        %1803 = vmatpush1.msra.mxu0 0.0
        %1804 = vmatprep.subr.mxu0 0.0
        %1805 = vmatpush1.msra.mxu0 0.0
        %1806 = vmatprep.subr.mxu0 0.0
        %1807 = vmatpush1.msra.mxu0 0.0
        %1808 = vmatprep.subr.mxu0 0.0
        %1809 = vmatpush1.msra.mxu0 0.0
        %1810 = vmatprep.subr.mxu0 0.0
        %1811 = vmatpush1.msra.mxu0 0.0
        %1812 = vmatprep.subr.mxu0 0.0
        %1813 = vmatpush1.msra.mxu0 0.0
        %1814 = vmatprep.subr.mxu0 0.0
        %1815 = vmatpush1.msra.mxu0 0.0
        %1816 = vmatprep.subr.mxu0 0.0
        %1817 = vmatpush1.msra.mxu0 0.0
        %1818 = vmatprep.subr.mxu0 0.0
        %1819 = vmatpush1.msra.mxu0 0.0
        %1820 = vmatprep.subr.mxu0 0.0
        %1821 = vmatpush1.msra.mxu0 0.0
        %1822 = vmatprep.subr.mxu0 0.0
        %1823 = vmatpush1.msra.mxu0 0.0
        %1824 = vmatprep.subr.mxu0 0.0
        %1825 = vmatpush1.msra.mxu0 0.0
        %1826 = vmatprep.subr.mxu0 0.0
        %1827 = vmatpush1.msra.mxu0 0.0
        %1828 = vmatprep.subr.mxu0 0.0
        %1829 = vmatpush1.msra.mxu0 0.0
        %1830 = vmatprep.subr.mxu0 0.0
        %1831 = vmatpush1.msra.mxu0 0.0
        %1832 = vmatprep.subr.mxu0 0.0
        %1833 = vmatpush1.msra.mxu0 0.0
        %1834 = vmatprep.subr.mxu0 0.0
        %1835 = vmatpush1.msra.mxu0 0.0
        %1836 = vmatprep.subr.mxu0 0.0
        %1837 = vmatpush1.msra.mxu0 0.0
        %1838 = vmatprep.subr.mxu0 0.0
        %1839 = vmatpush1.msra.mxu0 0.0
        %1840 = vmatprep.subr.mxu0 0.0
        %1841 = vmatpush1.msra.mxu0 0.0
        %1842 = vmatprep.subr.mxu0 0.0
        %1843 = vmatpush1.msra.mxu0 0.0
        %1844 = vmatprep.subr.mxu0 0.0
        %1845 = vmatpush1.msra.mxu0 0.0
        %1846 = vmatprep.subr.mxu0 0.0
        %1847 = vmatpush1.msra.mxu0 0.0
        %1848 = vmatprep.subr.mxu0 0.0
        %1849 = vmatpush1.msra.mxu0 0.0
        %1850 = vmatprep.subr.mxu0 0.0
        %1851 = vmatpush1.msra.mxu0 0.0
        %1852 = vmatprep.subr.mxu0 0.0
        %1853 = vmatpush1.msra.mxu0 0.0
        %1854 = vmatprep.subr.mxu0 0.0
        %1855 = vmatpush1.msra.mxu0 0.0
        %1856 = vmatprep.subr.mxu0 0.0
        %1857 = vmatpush1.msra.mxu0 0.0
        %1858 = vmatprep.mubr.f32.mxu0 0.0
        %1859 = vmatmul.mubr.f32.gmra.mrb[0].mxu0 %v1789
        %v1860 = vpop.f32.mrb[0].mxu0
        %v1861 = vadd.f32 0.0, %v1860
        %v1862 = vpop.f32.mrb[0].mxu0
        %1863 = vmatprep.mubr.f32.mxu0 0.0
        %1864 = vmatmul.mubr.f32.gmra.mrb[0].mxu0 %v1792
        %v1865 = vpop.f32.mrb[0].mxu0
        %v1866 = vadd.f32 0.0, %v1865
        %v1867 = vpop.f32.mrb[0].mxu0
        %1868 = vdwg.mxu0
        %1871 = vrot.lane.b32.xlu0 %v1687, 32
        %v1872 = vpop.permute.xlu0 %1871
        %1873 = vrot.lane.b32.xlu0 %v1692, 32
        %v1874 = vpop.permute.xlu0 %1873
        %1879 = vrot.lane.b32.xlu0 %v1774, 64
        %v1880 = vpop.permute.xlu0 %1879
        %1881 = vrot.lane.b32.xlu0 %v1779, 64
        %v1882 = vpop.permute.xlu0 %1881
        %1887 = vrot.lane.b32.xlu0 %v1861, 96
        %v1888 = vpop.permute.xlu0 %1887
        %1889 = vrot.lane.b32.xlu0 %v1866, 96
        %v1890 = vpop.permute.xlu0 %1889
        %v1893 = vsel %vm969, %v1598, %v1872
        %v1894 = vsel %vm969, %v1603, %v1874
        %vm1895 = vcmask 523264
        %v1896 = vsel %vm1895, %v1893, %v1880
        %v1897 = vsel %vm1895, %v1894, %v1882
        %vm1898 = vcmask 785408
        %v1899 = vsel %vm1898, %v1896, %v1888
        %v1900 = vsel %vm1898, %v1897, %v1890
        %1901 = vxpose.xlu0.b32.start [1/16] %v841, 128
        %1902 = vxpose.xlu0.b32.cont [2/16] %v845, 128
        %1903 = vxpose.xlu0.b32.cont [3/16] 0.0, 128
        %1904 = vxpose.xlu0.b32.cont [4/16] 0.0, 128
        %1905 = vxpose.xlu0.b32.cont [5/16] 0.0, 128
        %1906 = vxpose.xlu0.b32.cont [6/16] 0.0, 128
        %1907 = vxpose.xlu0.b32.cont [7/16] 0.0, 128
        %1908 = vxpose.xlu0.b32.cont [8/16] 0.0, 128
        %1909 = vxpose.xlu0.b32.cont [9/16] 0.0, 128
        %1910 = vxpose.xlu0.b32.cont [10/16] 0.0, 128
        %1911 = vxpose.xlu0.b32.cont [11/16] 0.0, 128
        %1912 = vxpose.xlu0.b32.cont [12/16] 0.0, 128
        %1913 = vxpose.xlu0.b32.cont [13/16] 0.0, 128
        %1914 = vxpose.xlu0.b32.cont [14/16] 0.0, 128
        %1915 = vxpose.xlu0.b32.cont [15/16] 0.0, 128
        %1916 = vxpose.xlu0.b32.end [16/16] 0.0, 128
        %v1917 = vpop.trf.xlu0
        %v1918 = vpop.trf.xlu0
        %v1919 = vpop.trf.xlu0
        %v1920 = vpop.trf.xlu0
        %v1921 = vpop.trf.xlu0
        %v1922 = vpop.trf.xlu0
        %v1923 = vpop.trf.xlu0
        %v1924 = vpop.trf.xlu0
        %v1925 = vpop.trf.xlu0
        %v1926 = vpop.trf.xlu0
        %v1927 = vpop.trf.xlu0
        %v1928 = vpop.trf.xlu0
        %v1929 = vpop.trf.xlu0
        %v1930 = vpop.trf.xlu0
        %v1931 = vpop.trf.xlu0
        %v1932 = vpop.trf.xlu0
        %1933 = vxpose.xlu0.b32.start [1/16] %v1917, 128
        %1934 = vxpose.xlu0.b32.cont [2/16] %v1918, 128
        %1935 = vxpose.xlu0.b32.cont [3/16] %v1919, 128
        %1936 = vxpose.xlu0.b32.cont [4/16] %v1920, 128
        %1937 = vxpose.xlu0.b32.cont [5/16] 0.0, 128
        %1938 = vxpose.xlu0.b32.cont [6/16] 0.0, 128
        %1939 = vxpose.xlu0.b32.cont [7/16] 0.0, 128
        %1940 = vxpose.xlu0.b32.cont [8/16] 0.0, 128
        %1941 = vxpose.xlu0.b32.cont [9/16] 0.0, 128
        %1942 = vxpose.xlu0.b32.cont [10/16] 0.0, 128
        %1943 = vxpose.xlu0.b32.cont [11/16] 0.0, 128
        %1944 = vxpose.xlu0.b32.cont [12/16] 0.0, 128
        %1945 = vxpose.xlu0.b32.cont [13/16] 0.0, 128
        %1946 = vxpose.xlu0.b32.cont [14/16] 0.0, 128
        %1947 = vxpose.xlu0.b32.cont [15/16] 0.0, 128
        %1948 = vxpose.xlu0.b32.end [16/16] 0.0, 128
        %v1949 = vpop.trf.xlu0
        %v1950 = vpop.trf.xlu0
        %v1951 = vpop.trf.xlu0
        %v1952 = vpop.trf.xlu0
        %v1953 = vpop.trf.xlu0
        %v1954 = vpop.trf.xlu0
        %v1955 = vpop.trf.xlu0
        %v1956 = vpop.trf.xlu0
        %v1957 = vpop.trf.xlu0
        %v1958 = vpop.trf.xlu0
        %v1959 = vpop.trf.xlu0
        %v1960 = vpop.trf.xlu0
        %v1961 = vpop.trf.xlu0
        %v1962 = vpop.trf.xlu0
        %v1963 = vpop.trf.xlu0
        %v1964 = vpop.trf.xlu0
        %v1966 = vsel %vm969, %v1949, 0
        %v1969 = vsel %vm969, %v1950, 0
        %v1972 = vsel %vm969, %v843, 0
        %v1975 = vsel %vm969, %v847, 0
        %1977 = vmatprep.subr.mxu0 0.0
        %1978 = vmatpush1.xpose.msra.mxu0 %v1972
        %1979 = vmatprep.subr.mxu0 0.0
        %1980 = vmatpush1.xpose.msra.mxu0 %v1975
        %1981 = vmatprep.subr.mxu0 0.0
        %1982 = vmatpush1.xpose.msra.mxu0 0.0
        %1983 = vmatprep.subr.mxu0 0.0
        %1984 = vmatpush1.xpose.msra.mxu0 0.0
        %1985 = vmatprep.subr.mxu0 0.0
        %1986 = vmatpush1.xpose.msra.mxu0 0.0
        %1987 = vmatprep.subr.mxu0 0.0
        %1988 = vmatpush1.xpose.msra.mxu0 0.0
        %1989 = vmatprep.subr.mxu0 0.0
        %1990 = vmatpush1.xpose.msra.mxu0 0.0
        %1991 = vmatprep.subr.mxu0 0.0
        %1992 = vmatpush1.xpose.msra.mxu0 0.0
        %1993 = vmatprep.subr.mxu0 0.0
        %1994 = vmatpush1.xpose.msra.mxu0 0.0
        %1995 = vmatprep.subr.mxu0 0.0
        %1996 = vmatpush1.xpose.msra.mxu0 0.0
        %1997 = vmatprep.subr.mxu0 0.0
        %1998 = vmatpush1.xpose.msra.mxu0 0.0
        %1999 = vmatprep.subr.mxu0 0.0
        %2000 = vmatpush1.xpose.msra.mxu0 0.0
        %2001 = vmatprep.subr.mxu0 0.0
        %2002 = vmatpush1.xpose.msra.mxu0 0.0
        %2003 = vmatprep.subr.mxu0 0.0
        %2004 = vmatpush1.xpose.msra.mxu0 0.0
        %2005 = vmatprep.subr.mxu0 0.0
        %2006 = vmatpush1.xpose.msra.mxu0 0.0
        %2007 = vmatprep.subr.mxu0 0.0
        %2008 = vmatpush1.xpose.msra.mxu0 0.0
        %2009 = vmatprep.subr.mxu0 0.0
        %2010 = vmatpush1.xpose.msra.mxu0 0.0
        %2011 = vmatprep.subr.mxu0 0.0
        %2012 = vmatpush1.xpose.msra.mxu0 0.0
        %2013 = vmatprep.subr.mxu0 0.0
        %2014 = vmatpush1.xpose.msra.mxu0 0.0
        %2015 = vmatprep.subr.mxu0 0.0
        %2016 = vmatpush1.xpose.msra.mxu0 0.0
        %2017 = vmatprep.subr.mxu0 0.0
        %2018 = vmatpush1.xpose.msra.mxu0 0.0
        %2019 = vmatprep.subr.mxu0 0.0
        %2020 = vmatpush1.xpose.msra.mxu0 0.0
        %2021 = vmatprep.subr.mxu0 0.0
        %2022 = vmatpush1.xpose.msra.mxu0 0.0
        %2023 = vmatprep.subr.mxu0 0.0
        %2024 = vmatpush1.xpose.msra.mxu0 0.0
        %2025 = vmatprep.subr.mxu0 0.0
        %2026 = vmatpush1.xpose.msra.mxu0 0.0
        %2027 = vmatprep.subr.mxu0 0.0
        %2028 = vmatpush1.xpose.msra.mxu0 0.0
        %2029 = vmatprep.subr.mxu0 0.0
        %2030 = vmatpush1.xpose.msra.mxu0 0.0
        %2031 = vmatprep.subr.mxu0 0.0
        %2032 = vmatpush1.xpose.msra.mxu0 0.0
        %2033 = vmatprep.subr.mxu0 0.0
        %2034 = vmatpush1.xpose.msra.mxu0 0.0
        %2035 = vmatprep.subr.mxu0 0.0
        %2036 = vmatpush1.xpose.msra.mxu0 0.0
        %2037 = vmatprep.subr.mxu0 0.0
        %2038 = vmatpush1.xpose.msra.mxu0 0.0
        %2039 = vmatprep.subr.mxu0 0.0
        %2040 = vmatpush1.xpose.msra.mxu0 0.0
        %2041 = vmatprep.mubr.f32.mxu0 0.0
        %2042 = vmatmul.mubr.f32.gmra.mrb[0].mxu0 %v1966
        %v2043 = vpop.f32.mrb[0].mxu0
        %v2044 = vadd.f32 0.0, %v2043
        %v2045 = vpop.f32.mrb[0].mxu0
        %2046 = vmatprep.mubr.f32.mxu0 0.0
        %2047 = vmatmul.mubr.f32.gmra.mrb[0].mxu0 %v1969
        %v2048 = vpop.f32.mrb[0].mxu0
        %v2049 = vadd.f32 0.0, %v2048
        %v2050 = vpop.f32.mrb[0].mxu0
        %2051 = vdwg.mxu0
        %2052 = vxpose.xlu0.b32.start [1/16] %v1921, 128
        %2053 = vxpose.xlu0.b32.cont [2/16] %v1922, 128
        %2054 = vxpose.xlu0.b32.cont [3/16] %v1923, 128
        %2055 = vxpose.xlu0.b32.cont [4/16] %v1924, 128
        %2056 = vxpose.xlu0.b32.cont [5/16] 0.0, 128
        %2057 = vxpose.xlu0.b32.cont [6/16] 0.0, 128
        %2058 = vxpose.xlu0.b32.cont [7/16] 0.0, 128
        %2059 = vxpose.xlu0.b32.cont [8/16] 0.0, 128
        %2060 = vxpose.xlu0.b32.cont [9/16] 0.0, 128
        %2061 = vxpose.xlu0.b32.cont [10/16] 0.0, 128
        %2062 = vxpose.xlu0.b32.cont [11/16] 0.0, 128
        %2063 = vxpose.xlu0.b32.cont [12/16] 0.0, 128
        %2064 = vxpose.xlu0.b32.cont [13/16] 0.0, 128
        %2065 = vxpose.xlu0.b32.cont [14/16] 0.0, 128
        %2066 = vxpose.xlu0.b32.cont [15/16] 0.0, 128
        %2067 = vxpose.xlu0.b32.end [16/16] 0.0, 128
        %v2068 = vpop.trf.xlu0
        %v2069 = vpop.trf.xlu0
        %v2070 = vpop.trf.xlu0
        %v2071 = vpop.trf.xlu0
        %v2072 = vpop.trf.xlu0
        %v2073 = vpop.trf.xlu0
        %v2074 = vpop.trf.xlu0
        %v2075 = vpop.trf.xlu0
        %v2076 = vpop.trf.xlu0
        %v2077 = vpop.trf.xlu0
        %v2078 = vpop.trf.xlu0
        %v2079 = vpop.trf.xlu0
        %v2080 = vpop.trf.xlu0
        %v2081 = vpop.trf.xlu0
        %v2082 = vpop.trf.xlu0
        %v2083 = vpop.trf.xlu0
        %2084 = vrot.lane.b32.xlu0 %v843, 96
        %v2085 = vpop.permute.xlu0 %2084
        %2086 = vrot.lane.b32.xlu0 %v847, 96
        %v2087 = vpop.permute.xlu0 %2086
        %v2089 = vsel %vm969, %v2068, 0
        %v2092 = vsel %vm969, %v2069, 0
        %v2094 = vsel %vm969, %v2085, 0
        %v2096 = vsel %vm969, %v2087, 0
        %2098 = vmatprep.subr.mxu0 0.0
        %2099 = vmatpush1.xpose.msra.mxu0 %v2094
        %2100 = vmatprep.subr.mxu0 0.0
        %2101 = vmatpush1.xpose.msra.mxu0 %v2096
        %2102 = vmatprep.subr.mxu0 0.0
        %2103 = vmatpush1.xpose.msra.mxu0 0.0
        %2104 = vmatprep.subr.mxu0 0.0
        %2105 = vmatpush1.xpose.msra.mxu0 0.0
        %2106 = vmatprep.subr.mxu0 0.0
        %2107 = vmatpush1.xpose.msra.mxu0 0.0
        %2108 = vmatprep.subr.mxu0 0.0
        %2109 = vmatpush1.xpose.msra.mxu0 0.0
        %2110 = vmatprep.subr.mxu0 0.0
        %2111 = vmatpush1.xpose.msra.mxu0 0.0
        %2112 = vmatprep.subr.mxu0 0.0
        %2113 = vmatpush1.xpose.msra.mxu0 0.0
        %2114 = vmatprep.subr.mxu0 0.0
        %2115 = vmatpush1.xpose.msra.mxu0 0.0
        %2116 = vmatprep.subr.mxu0 0.0
        %2117 = vmatpush1.xpose.msra.mxu0 0.0
        %2118 = vmatprep.subr.mxu0 0.0
        %2119 = vmatpush1.xpose.msra.mxu0 0.0
        %2120 = vmatprep.subr.mxu0 0.0
        %2121 = vmatpush1.xpose.msra.mxu0 0.0
        %2122 = vmatprep.subr.mxu0 0.0
        %2123 = vmatpush1.xpose.msra.mxu0 0.0
        %2124 = vmatprep.subr.mxu0 0.0
        %2125 = vmatpush1.xpose.msra.mxu0 0.0
        %2126 = vmatprep.subr.mxu0 0.0
        %2127 = vmatpush1.xpose.msra.mxu0 0.0
        %2128 = vmatprep.subr.mxu0 0.0
        %2129 = vmatpush1.xpose.msra.mxu0 0.0
        %2130 = vmatprep.subr.mxu0 0.0
        %2131 = vmatpush1.xpose.msra.mxu0 0.0
        %2132 = vmatprep.subr.mxu0 0.0
        %2133 = vmatpush1.xpose.msra.mxu0 0.0
        %2134 = vmatprep.subr.mxu0 0.0
        %2135 = vmatpush1.xpose.msra.mxu0 0.0
        %2136 = vmatprep.subr.mxu0 0.0
        %2137 = vmatpush1.xpose.msra.mxu0 0.0
        %2138 = vmatprep.subr.mxu0 0.0
        %2139 = vmatpush1.xpose.msra.mxu0 0.0
        %2140 = vmatprep.subr.mxu0 0.0
        %2141 = vmatpush1.xpose.msra.mxu0 0.0
        %2142 = vmatprep.subr.mxu0 0.0
        %2143 = vmatpush1.xpose.msra.mxu0 0.0
        %2144 = vmatprep.subr.mxu0 0.0
        %2145 = vmatpush1.xpose.msra.mxu0 0.0
        %2146 = vmatprep.subr.mxu0 0.0
        %2147 = vmatpush1.xpose.msra.mxu0 0.0
        %2148 = vmatprep.subr.mxu0 0.0
        %2149 = vmatpush1.xpose.msra.mxu0 0.0
        %2150 = vmatprep.subr.mxu0 0.0
        %2151 = vmatpush1.xpose.msra.mxu0 0.0
        %2152 = vmatprep.subr.mxu0 0.0
        %2153 = vmatpush1.xpose.msra.mxu0 0.0
        %2154 = vmatprep.subr.mxu0 0.0
        %2155 = vmatpush1.xpose.msra.mxu0 0.0
        %2156 = vmatprep.subr.mxu0 0.0
        %2157 = vmatpush1.xpose.msra.mxu0 0.0
        %2158 = vmatprep.subr.mxu0 0.0
        %2159 = vmatpush1.xpose.msra.mxu0 0.0
        %2160 = vmatprep.subr.mxu0 0.0
        %2161 = vmatpush1.xpose.msra.mxu0 0.0
        %2162 = vmatprep.mubr.f32.mxu0 0.0
        %2163 = vmatmul.mubr.f32.gmra.mrb[0].mxu0 %v2089
        %v2164 = vpop.f32.mrb[0].mxu0
        %v2165 = vadd.f32 0.0, %v2164
        %v2166 = vpop.f32.mrb[0].mxu0
        %2167 = vmatprep.mubr.f32.mxu0 0.0
        %2168 = vmatmul.mubr.f32.gmra.mrb[0].mxu0 %v2092
        %v2169 = vpop.f32.mrb[0].mxu0
        %v2170 = vadd.f32 0.0, %v2169
        %v2171 = vpop.f32.mrb[0].mxu0
        %2172 = vdwg.mxu0
        %2173 = vxpose.xlu0.b32.start [1/16] %v1925, 128
        %2174 = vxpose.xlu0.b32.cont [2/16] %v1926, 128
        %2175 = vxpose.xlu0.b32.cont [3/16] %v1927, 128
        %2176 = vxpose.xlu0.b32.cont [4/16] %v1928, 128
        %2177 = vxpose.xlu0.b32.cont [5/16] 0.0, 128
        %2178 = vxpose.xlu0.b32.cont [6/16] 0.0, 128
        %2179 = vxpose.xlu0.b32.cont [7/16] 0.0, 128
        %2180 = vxpose.xlu0.b32.cont [8/16] 0.0, 128
        %2181 = vxpose.xlu0.b32.cont [9/16] 0.0, 128
        %2182 = vxpose.xlu0.b32.cont [10/16] 0.0, 128
        %2183 = vxpose.xlu0.b32.cont [11/16] 0.0, 128
        %2184 = vxpose.xlu0.b32.cont [12/16] 0.0, 128
        %2185 = vxpose.xlu0.b32.cont [13/16] 0.0, 128
        %2186 = vxpose.xlu0.b32.cont [14/16] 0.0, 128
        %2187 = vxpose.xlu0.b32.cont [15/16] 0.0, 128
        %2188 = vxpose.xlu0.b32.end [16/16] 0.0, 128
        %v2189 = vpop.trf.xlu0
        %v2190 = vpop.trf.xlu0
        %v2191 = vpop.trf.xlu0
        %v2192 = vpop.trf.xlu0
        %v2193 = vpop.trf.xlu0
        %v2194 = vpop.trf.xlu0
        %v2195 = vpop.trf.xlu0
        %v2196 = vpop.trf.xlu0
        %v2197 = vpop.trf.xlu0
        %v2198 = vpop.trf.xlu0
        %v2199 = vpop.trf.xlu0
        %v2200 = vpop.trf.xlu0
        %v2201 = vpop.trf.xlu0
        %v2202 = vpop.trf.xlu0
        %v2203 = vpop.trf.xlu0
        %v2204 = vpop.trf.xlu0
        %2205 = vrot.lane.b32.xlu0 %v843, 64
        %v2206 = vpop.permute.xlu0 %2205
        %2207 = vrot.lane.b32.xlu0 %v847, 64
        %v2208 = vpop.permute.xlu0 %2207
        %v2210 = vsel %vm969, %v2189, 0
        %v2213 = vsel %vm969, %v2190, 0
        %v2215 = vsel %vm969, %v2206, 0
        %v2217 = vsel %vm969, %v2208, 0
        %2219 = vmatprep.subr.mxu0 0.0
        %2220 = vmatpush1.xpose.msra.mxu0 %v2215
        %2221 = vmatprep.subr.mxu0 0.0
        %2222 = vmatpush1.xpose.msra.mxu0 %v2217
        %2223 = vmatprep.subr.mxu0 0.0
        %2224 = vmatpush1.xpose.msra.mxu0 0.0
        %2225 = vmatprep.subr.mxu0 0.0
        %2226 = vmatpush1.xpose.msra.mxu0 0.0
        %2227 = vmatprep.subr.mxu0 0.0
        %2228 = vmatpush1.xpose.msra.mxu0 0.0
        %2229 = vmatprep.subr.mxu0 0.0
        %2230 = vmatpush1.xpose.msra.mxu0 0.0
        %2231 = vmatprep.subr.mxu0 0.0
        %2232 = vmatpush1.xpose.msra.mxu0 0.0
        %2233 = vmatprep.subr.mxu0 0.0
        %2234 = vmatpush1.xpose.msra.mxu0 0.0
        %2235 = vmatprep.subr.mxu0 0.0
        %2236 = vmatpush1.xpose.msra.mxu0 0.0
        %2237 = vmatprep.subr.mxu0 0.0
        %2238 = vmatpush1.xpose.msra.mxu0 0.0
        %2239 = vmatprep.subr.mxu0 0.0
        %2240 = vmatpush1.xpose.msra.mxu0 0.0
        %2241 = vmatprep.subr.mxu0 0.0
        %2242 = vmatpush1.xpose.msra.mxu0 0.0
        %2243 = vmatprep.subr.mxu0 0.0
        %2244 = vmatpush1.xpose.msra.mxu0 0.0
        %2245 = vmatprep.subr.mxu0 0.0
        %2246 = vmatpush1.xpose.msra.mxu0 0.0
        %2247 = vmatprep.subr.mxu0 0.0
        %2248 = vmatpush1.xpose.msra.mxu0 0.0
        %2249 = vmatprep.subr.mxu0 0.0
        %2250 = vmatpush1.xpose.msra.mxu0 0.0
        %2251 = vmatprep.subr.mxu0 0.0
        %2252 = vmatpush1.xpose.msra.mxu0 0.0
        %2253 = vmatprep.subr.mxu0 0.0
        %2254 = vmatpush1.xpose.msra.mxu0 0.0
        %2255 = vmatprep.subr.mxu0 0.0
        %2256 = vmatpush1.xpose.msra.mxu0 0.0
        %2257 = vmatprep.subr.mxu0 0.0
        %2258 = vmatpush1.xpose.msra.mxu0 0.0
        %2259 = vmatprep.subr.mxu0 0.0
        %2260 = vmatpush1.xpose.msra.mxu0 0.0
        %2261 = vmatprep.subr.mxu0 0.0
        %2262 = vmatpush1.xpose.msra.mxu0 0.0
        %2263 = vmatprep.subr.mxu0 0.0
        %2264 = vmatpush1.xpose.msra.mxu0 0.0
        %2265 = vmatprep.subr.mxu0 0.0
        %2266 = vmatpush1.xpose.msra.mxu0 0.0
        %2267 = vmatprep.subr.mxu0 0.0
        %2268 = vmatpush1.xpose.msra.mxu0 0.0
        %2269 = vmatprep.subr.mxu0 0.0
        %2270 = vmatpush1.xpose.msra.mxu0 0.0
        %2271 = vmatprep.subr.mxu0 0.0
        %2272 = vmatpush1.xpose.msra.mxu0 0.0
        %2273 = vmatprep.subr.mxu0 0.0
        %2274 = vmatpush1.xpose.msra.mxu0 0.0
        %2275 = vmatprep.subr.mxu0 0.0
        %2276 = vmatpush1.xpose.msra.mxu0 0.0
        %2277 = vmatprep.subr.mxu0 0.0
        %2278 = vmatpush1.xpose.msra.mxu0 0.0
        %2279 = vmatprep.subr.mxu0 0.0
        %2280 = vmatpush1.xpose.msra.mxu0 0.0
        %2281 = vmatprep.subr.mxu0 0.0
        %2282 = vmatpush1.xpose.msra.mxu0 0.0
        %2283 = vmatprep.mubr.f32.mxu0 0.0
        %2284 = vmatmul.mubr.f32.gmra.mrb[0].mxu0 %v2210
        %v2285 = vpop.f32.mrb[0].mxu0
        %v2286 = vadd.f32 0.0, %v2285
        %v2287 = vpop.f32.mrb[0].mxu0
        %2288 = vmatprep.mubr.f32.mxu0 0.0
        %2289 = vmatmul.mubr.f32.gmra.mrb[0].mxu0 %v2213
        %v2290 = vpop.f32.mrb[0].mxu0
        %v2291 = vadd.f32 0.0, %v2290
        %v2292 = vpop.f32.mrb[0].mxu0
        %2293 = vdwg.mxu0
        %2294 = vxpose.xlu0.b32.start [1/16] %v1929, 128
        %2295 = vxpose.xlu0.b32.cont [2/16] %v1930, 128
        %2296 = vxpose.xlu0.b32.cont [3/16] %v1931, 128
        %2297 = vxpose.xlu0.b32.cont [4/16] %v1932, 128
        %2298 = vxpose.xlu0.b32.cont [5/16] 0.0, 128
        %2299 = vxpose.xlu0.b32.cont [6/16] 0.0, 128
        %2300 = vxpose.xlu0.b32.cont [7/16] 0.0, 128
        %2301 = vxpose.xlu0.b32.cont [8/16] 0.0, 128
        %2302 = vxpose.xlu0.b32.cont [9/16] 0.0, 128
        %2303 = vxpose.xlu0.b32.cont [10/16] 0.0, 128
        %2304 = vxpose.xlu0.b32.cont [11/16] 0.0, 128
        %2305 = vxpose.xlu0.b32.cont [12/16] 0.0, 128
        %2306 = vxpose.xlu0.b32.cont [13/16] 0.0, 128
        %2307 = vxpose.xlu0.b32.cont [14/16] 0.0, 128
        %2308 = vxpose.xlu0.b32.cont [15/16] 0.0, 128
        %2309 = vxpose.xlu0.b32.end [16/16] 0.0, 128
        %v2310 = vpop.trf.xlu0
        %v2311 = vpop.trf.xlu0
        %v2312 = vpop.trf.xlu0
        %v2313 = vpop.trf.xlu0
        %v2314 = vpop.trf.xlu0
        %v2315 = vpop.trf.xlu0
        %v2316 = vpop.trf.xlu0
        %v2317 = vpop.trf.xlu0
        %v2318 = vpop.trf.xlu0
        %v2319 = vpop.trf.xlu0
        %v2320 = vpop.trf.xlu0
        %v2321 = vpop.trf.xlu0
        %v2322 = vpop.trf.xlu0
        %v2323 = vpop.trf.xlu0
        %v2324 = vpop.trf.xlu0
        %v2325 = vpop.trf.xlu0
        %2326 = vrot.lane.b32.xlu0 %v843, 32
        %v2327 = vpop.permute.xlu0 %2326
        %2328 = vrot.lane.b32.xlu0 %v847, 32
        %v2329 = vpop.permute.xlu0 %2328
        %v2331 = vsel %vm969, %v2310, 0
        %v2334 = vsel %vm969, %v2311, 0
        %v2336 = vsel %vm969, %v2327, 0
        %v2338 = vsel %vm969, %v2329, 0
        %2340 = vmatprep.subr.mxu0 0.0
        %2341 = vmatpush1.xpose.msra.mxu0 %v2336
        %2342 = vmatprep.subr.mxu0 0.0
        %2343 = vmatpush1.xpose.msra.mxu0 %v2338
        %2344 = vmatprep.subr.mxu0 0.0
        %2345 = vmatpush1.xpose.msra.mxu0 0.0
        %2346 = vmatprep.subr.mxu0 0.0
        %2347 = vmatpush1.xpose.msra.mxu0 0.0
        %2348 = vmatprep.subr.mxu0 0.0
        %2349 = vmatpush1.xpose.msra.mxu0 0.0
        %2350 = vmatprep.subr.mxu0 0.0
        %2351 = vmatpush1.xpose.msra.mxu0 0.0
        %2352 = vmatprep.subr.mxu0 0.0
        %2353 = vmatpush1.xpose.msra.mxu0 0.0
        %2354 = vmatprep.subr.mxu0 0.0
        %2355 = vmatpush1.xpose.msra.mxu0 0.0
        %2356 = vmatprep.subr.mxu0 0.0
        %2357 = vmatpush1.xpose.msra.mxu0 0.0
        %2358 = vmatprep.subr.mxu0 0.0
        %2359 = vmatpush1.xpose.msra.mxu0 0.0
        %2360 = vmatprep.subr.mxu0 0.0
        %2361 = vmatpush1.xpose.msra.mxu0 0.0
        %2362 = vmatprep.subr.mxu0 0.0
        %2363 = vmatpush1.xpose.msra.mxu0 0.0
        %2364 = vmatprep.subr.mxu0 0.0
        %2365 = vmatpush1.xpose.msra.mxu0 0.0
        %2366 = vmatprep.subr.mxu0 0.0
        %2367 = vmatpush1.xpose.msra.mxu0 0.0
        %2368 = vmatprep.subr.mxu0 0.0
        %2369 = vmatpush1.xpose.msra.mxu0 0.0
        %2370 = vmatprep.subr.mxu0 0.0
        %2371 = vmatpush1.xpose.msra.mxu0 0.0
        %2372 = vmatprep.subr.mxu0 0.0
        %2373 = vmatpush1.xpose.msra.mxu0 0.0
        %2374 = vmatprep.subr.mxu0 0.0
        %2375 = vmatpush1.xpose.msra.mxu0 0.0
        %2376 = vmatprep.subr.mxu0 0.0
        %2377 = vmatpush1.xpose.msra.mxu0 0.0
        %2378 = vmatprep.subr.mxu0 0.0
        %2379 = vmatpush1.xpose.msra.mxu0 0.0
        %2380 = vmatprep.subr.mxu0 0.0
        %2381 = vmatpush1.xpose.msra.mxu0 0.0
        %2382 = vmatprep.subr.mxu0 0.0
        %2383 = vmatpush1.xpose.msra.mxu0 0.0
        %2384 = vmatprep.subr.mxu0 0.0
        %2385 = vmatpush1.xpose.msra.mxu0 0.0
        %2386 = vmatprep.subr.mxu0 0.0
        %2387 = vmatpush1.xpose.msra.mxu0 0.0
        %2388 = vmatprep.subr.mxu0 0.0
        %2389 = vmatpush1.xpose.msra.mxu0 0.0
        %2390 = vmatprep.subr.mxu0 0.0
        %2391 = vmatpush1.xpose.msra.mxu0 0.0
        %2392 = vmatprep.subr.mxu0 0.0
        %2393 = vmatpush1.xpose.msra.mxu0 0.0
        %2394 = vmatprep.subr.mxu0 0.0
        %2395 = vmatpush1.xpose.msra.mxu0 0.0
        %2396 = vmatprep.subr.mxu0 0.0
        %2397 = vmatpush1.xpose.msra.mxu0 0.0
        %2398 = vmatprep.subr.mxu0 0.0
        %2399 = vmatpush1.xpose.msra.mxu0 0.0
        %2400 = vmatprep.subr.mxu0 0.0
        %2401 = vmatpush1.xpose.msra.mxu0 0.0
        %2402 = vmatprep.subr.mxu0 0.0
        %2403 = vmatpush1.xpose.msra.mxu0 0.0
        %2404 = vmatprep.mubr.f32.mxu0 0.0
        %2405 = vmatmul.mubr.f32.gmra.mrb[0].mxu0 %v2331
        %v2406 = vpop.f32.mrb[0].mxu0
        %v2407 = vadd.f32 0.0, %v2406
        %v2408 = vpop.f32.mrb[0].mxu0
        %2409 = vmatprep.mubr.f32.mxu0 0.0
        %2410 = vmatmul.mubr.f32.gmra.mrb[0].mxu0 %v2334
        %v2411 = vpop.f32.mrb[0].mxu0
        %v2412 = vadd.f32 0.0, %v2411
        %v2413 = vpop.f32.mrb[0].mxu0
        %2414 = vdwg.mxu0
        %v2415 = vmul.f32 %v2044, 0.17677669
        %v2416 = vmul.f32 %v2049, 0.17677669
        %v2417 = vmul.f32 %v2165, 0.17677669
        %v2418 = vmul.f32 %v2170, 0.17677669
        %v2419 = vmul.f32 %v2286, 0.17677669
        %v2420 = vmul.f32 %v2291, 0.17677669
        %v2421 = vmul.f32 %v2407, 0.17677669
        %v2422 = vmul.f32 %v2412, 0.17677669
        %v2423 = vsel %vm903, -1e+30, %v2415
        %v2424 = vsel %vm904, -1e+30, %v2416
        %v2425 = vsel %vm903, -1e+30, %v2417
        %v2426 = vsel %vm904, -1e+30, %v2418
        %v2427 = vsel %vm903, -1e+30, %v2419
        %v2428 = vsel %vm904, -1e+30, %v2420
        %v2429 = vsel %vm903, -1e+30, %v2421
        %v2430 = vsel %vm904, -1e+30, %v2422
        %v2431 = vsel %vm1436, %v2423, -inf
        %2432 = vmax.xlane.f32.xlu0 %v2431
        %v2433 = vpop.xlane.xlu0 %2432
        %v2434 = vsel %vm1436, %v2424, -inf
        %2435 = vmax.xlane.f32.xlu0 %v2434
        %v2436 = vpop.xlane.xlu0 %2435
        %v2437 = vsel %vm1436, %v2425, -inf
        %2438 = vmax.xlane.f32.xlu0 %v2437
        %v2439 = vpop.xlane.xlu0 %2438
        %v2440 = vsel %vm1436, %v2426, -inf
        %2441 = vmax.xlane.f32.xlu0 %v2440
        %v2442 = vpop.xlane.xlu0 %2441
        %v2443 = vsel %vm1436, %v2427, -inf
        %2444 = vmax.xlane.f32.xlu0 %v2443
        %v2445 = vpop.xlane.xlu0 %2444
        %v2446 = vsel %vm1436, %v2428, -inf
        %2447 = vmax.xlane.f32.xlu0 %v2446
        %v2448 = vpop.xlane.xlu0 %2447
        %v2449 = vsel %vm1436, %v2429, -inf
        %2450 = vmax.xlane.f32.xlu0 %v2449
        %v2451 = vpop.xlane.xlu0 %2450
        %v2452 = vsel %vm1436, %v2430, -inf
        %2453 = vmax.xlane.f32.xlu0 %v2452
        %v2454 = vpop.xlane.xlu0 %2453
        %v2455 = vsub.f32 %v2423, %v2433
        %v2456 = vsub.f32 %v2424, %v2436
        %v2457 = vsub.f32 %v2425, %v2439
        %v2458 = vsub.f32 %v2426, %v2442
        %v2459 = vsub.f32 %v2427, %v2445
        %v2460 = vsub.f32 %v2428, %v2448
        %v2461 = vsub.f32 %v2429, %v2451
        %v2462 = vsub.f32 %v2430, %v2454
        %v2463 = vmul.f32 %v2455, 1.442695
        %v2464 = vpow.pop %v2463
        %v2465 = vmul.f32 %v2456, 1.442695
        %v2466 = vpow.pop %v2465
        %v2467 = vmul.f32 %v2457, 1.442695
        %v2468 = vpow.pop %v2467
        %v2469 = vmul.f32 %v2458, 1.442695
        %v2470 = vpow.pop %v2469
        %v2471 = vmul.f32 %v2459, 1.442695
        %v2472 = vpow.pop %v2471
        %v2473 = vmul.f32 %v2460, 1.442695
        %v2474 = vpow.pop %v2473
        %v2475 = vmul.f32 %v2461, 1.442695
        %v2476 = vpow.pop %v2475
        %v2477 = vmul.f32 %v2462, 1.442695
        %v2478 = vpow.pop %v2477
        %v2479 = vsel %vm1436, %v2464, 0.0
        %2480 = vadd.xlane.f32.xlu0 %v2479
        %v2481 = vpop.xlane.xlu0 %2480
        %v2482 = vsel %vm1436, %v2466, 0.0
        %2483 = vadd.xlane.f32.xlu0 %v2482
        %v2484 = vpop.xlane.xlu0 %2483
        %v2485 = vsel %vm1436, %v2468, 0.0
        %2486 = vadd.xlane.f32.xlu0 %v2485
        %v2487 = vpop.xlane.xlu0 %2486
        %v2488 = vsel %vm1436, %v2470, 0.0
        %2489 = vadd.xlane.f32.xlu0 %v2488
        %v2490 = vpop.xlane.xlu0 %2489
        %v2491 = vsel %vm1436, %v2472, 0.0
        %2492 = vadd.xlane.f32.xlu0 %v2491
        %v2493 = vpop.xlane.xlu0 %2492
        %v2494 = vsel %vm1436, %v2474, 0.0
        %2495 = vadd.xlane.f32.xlu0 %v2494
        %v2496 = vpop.xlane.xlu0 %2495
        %v2497 = vsel %vm1436, %v2476, 0.0
        %2498 = vadd.xlane.f32.xlu0 %v2497
        %v2499 = vpop.xlane.xlu0 %2498
        %v2500 = vsel %vm1436, %v2478, 0.0
        %2501 = vadd.xlane.f32.xlu0 %v2500
        %v2502 = vpop.xlane.xlu0 %2501
        %v2503 = vrcp.pop %v2481
        %v2504 = vrcp.pop %v2484
        %v2505 = vrcp.pop %v2487
        %v2506 = vrcp.pop %v2490
        %v2507 = vrcp.pop %v2493
        %v2508 = vrcp.pop %v2496
        %v2509 = vrcp.pop %v2499
        %v2510 = vrcp.pop %v2502
        %v2511 = vmul.f32 %v2464, %v2503
        %v2512 = vmul.f32 %v2466, %v2504
        %v2513 = vmul.f32 %v2468, %v2505
        %v2514 = vmul.f32 %v2470, %v2506
        %v2515 = vmul.f32 %v2472, %v2507
        %v2516 = vmul.f32 %v2474, %v2508
        %v2517 = vmul.f32 %v2476, %v2509
        %v2518 = vmul.f32 %v2478, %v2510
        %v2520 = vsel %vm1436, %v2511, 0
        %v2523 = vsel %vm1436, %v2512, 0
        %2525 = vmatprep.subr.mxu0 0.0
        %2526 = vmatpush1.msra.mxu0 %v892
        %2527 = vmatprep.subr.mxu0 0.0
        %2528 = vmatpush1.msra.mxu0 %v895
        %2529 = vmatprep.subr.mxu0 0.0
        %2530 = vmatpush1.msra.mxu0 0.0
        %2531 = vmatprep.subr.mxu0 0.0
        %2532 = vmatpush1.msra.mxu0 0.0
        %2533 = vmatprep.subr.mxu0 0.0
        %2534 = vmatpush1.msra.mxu0 0.0
        %2535 = vmatprep.subr.mxu0 0.0
        %2536 = vmatpush1.msra.mxu0 0.0
        %2537 = vmatprep.subr.mxu0 0.0
        %2538 = vmatpush1.msra.mxu0 0.0
        %2539 = vmatprep.subr.mxu0 0.0
        %2540 = vmatpush1.msra.mxu0 0.0
        %2541 = vmatprep.subr.mxu0 0.0
        %2542 = vmatpush1.msra.mxu0 0.0
        %2543 = vmatprep.subr.mxu0 0.0
        %2544 = vmatpush1.msra.mxu0 0.0
        %2545 = vmatprep.subr.mxu0 0.0
        %2546 = vmatpush1.msra.mxu0 0.0
        %2547 = vmatprep.subr.mxu0 0.0
        %2548 = vmatpush1.msra.mxu0 0.0
        %2549 = vmatprep.subr.mxu0 0.0
        %2550 = vmatpush1.msra.mxu0 0.0
        %2551 = vmatprep.subr.mxu0 0.0
        %2552 = vmatpush1.msra.mxu0 0.0
        %2553 = vmatprep.subr.mxu0 0.0
        %2554 = vmatpush1.msra.mxu0 0.0
        %2555 = vmatprep.subr.mxu0 0.0
        %2556 = vmatpush1.msra.mxu0 0.0
        %2557 = vmatprep.subr.mxu0 0.0
        %2558 = vmatpush1.msra.mxu0 0.0
        %2559 = vmatprep.subr.mxu0 0.0
        %2560 = vmatpush1.msra.mxu0 0.0
        %2561 = vmatprep.subr.mxu0 0.0
        %2562 = vmatpush1.msra.mxu0 0.0
        %2563 = vmatprep.subr.mxu0 0.0
        %2564 = vmatpush1.msra.mxu0 0.0
        %2565 = vmatprep.subr.mxu0 0.0
        %2566 = vmatpush1.msra.mxu0 0.0
        %2567 = vmatprep.subr.mxu0 0.0
        %2568 = vmatpush1.msra.mxu0 0.0
        %2569 = vmatprep.subr.mxu0 0.0
        %2570 = vmatpush1.msra.mxu0 0.0
        %2571 = vmatprep.subr.mxu0 0.0
        %2572 = vmatpush1.msra.mxu0 0.0
        %2573 = vmatprep.subr.mxu0 0.0
        %2574 = vmatpush1.msra.mxu0 0.0
        %2575 = vmatprep.subr.mxu0 0.0
        %2576 = vmatpush1.msra.mxu0 0.0
        %2577 = vmatprep.subr.mxu0 0.0
        %2578 = vmatpush1.msra.mxu0 0.0
        %2579 = vmatprep.subr.mxu0 0.0
        %2580 = vmatpush1.msra.mxu0 0.0
        %2581 = vmatprep.subr.mxu0 0.0
        %2582 = vmatpush1.msra.mxu0 0.0
        %2583 = vmatprep.subr.mxu0 0.0
        %2584 = vmatpush1.msra.mxu0 0.0
        %2585 = vmatprep.subr.mxu0 0.0
        %2586 = vmatpush1.msra.mxu0 0.0
        %2587 = vmatprep.subr.mxu0 0.0
        %2588 = vmatpush1.msra.mxu0 0.0
        %2589 = vmatprep.mubr.f32.mxu0 0.0
        %2590 = vmatmul.mubr.f32.gmra.mrb[0].mxu0 %v2520
        %v2591 = vpop.f32.mrb[0].mxu0
        %v2592 = vadd.f32 0.0, %v2591
        %v2593 = vpop.f32.mrb[0].mxu0
        %2594 = vmatprep.mubr.f32.mxu0 0.0
        %2595 = vmatmul.mubr.f32.gmra.mrb[0].mxu0 %v2523
        %v2596 = vpop.f32.mrb[0].mxu0
        %v2597 = vadd.f32 0.0, %v2596
        %v2598 = vpop.f32.mrb[0].mxu0
        %2599 = vdwg.mxu0
        %2602 = vrot.lane.b32.xlu0 %v892, 96
        %v2603 = vpop.permute.xlu0 %2602
        %2604 = vrot.lane.b32.xlu0 %v895, 96
        %v2605 = vpop.permute.xlu0 %2604
        %v2609 = vsel %vm1436, %v2513, 0
        %v2612 = vsel %vm1436, %v2514, 0
        %2614 = vmatprep.subr.mxu0 0.0
        %2615 = vmatpush1.msra.mxu0 %v2603
        %2616 = vmatprep.subr.mxu0 0.0
        %2617 = vmatpush1.msra.mxu0 %v2605
        %2618 = vmatprep.subr.mxu0 0.0
        %2619 = vmatpush1.msra.mxu0 0.0
        %2620 = vmatprep.subr.mxu0 0.0
        %2621 = vmatpush1.msra.mxu0 0.0
        %2622 = vmatprep.subr.mxu0 0.0
        %2623 = vmatpush1.msra.mxu0 0.0
        %2624 = vmatprep.subr.mxu0 0.0
        %2625 = vmatpush1.msra.mxu0 0.0
        %2626 = vmatprep.subr.mxu0 0.0
        %2627 = vmatpush1.msra.mxu0 0.0
        %2628 = vmatprep.subr.mxu0 0.0
        %2629 = vmatpush1.msra.mxu0 0.0
        %2630 = vmatprep.subr.mxu0 0.0
        %2631 = vmatpush1.msra.mxu0 0.0
        %2632 = vmatprep.subr.mxu0 0.0
        %2633 = vmatpush1.msra.mxu0 0.0
        %2634 = vmatprep.subr.mxu0 0.0
        %2635 = vmatpush1.msra.mxu0 0.0
        %2636 = vmatprep.subr.mxu0 0.0
        %2637 = vmatpush1.msra.mxu0 0.0
        %2638 = vmatprep.subr.mxu0 0.0
        %2639 = vmatpush1.msra.mxu0 0.0
        %2640 = vmatprep.subr.mxu0 0.0
        %2641 = vmatpush1.msra.mxu0 0.0
        %2642 = vmatprep.subr.mxu0 0.0
        %2643 = vmatpush1.msra.mxu0 0.0
        %2644 = vmatprep.subr.mxu0 0.0
        %2645 = vmatpush1.msra.mxu0 0.0
        %2646 = vmatprep.subr.mxu0 0.0
        %2647 = vmatpush1.msra.mxu0 0.0
        %2648 = vmatprep.subr.mxu0 0.0
        %2649 = vmatpush1.msra.mxu0 0.0
        %2650 = vmatprep.subr.mxu0 0.0
        %2651 = vmatpush1.msra.mxu0 0.0
        %2652 = vmatprep.subr.mxu0 0.0
        %2653 = vmatpush1.msra.mxu0 0.0
        %2654 = vmatprep.subr.mxu0 0.0
        %2655 = vmatpush1.msra.mxu0 0.0
        %2656 = vmatprep.subr.mxu0 0.0
        %2657 = vmatpush1.msra.mxu0 0.0
        %2658 = vmatprep.subr.mxu0 0.0
        %2659 = vmatpush1.msra.mxu0 0.0
        %2660 = vmatprep.subr.mxu0 0.0
        %2661 = vmatpush1.msra.mxu0 0.0
        %2662 = vmatprep.subr.mxu0 0.0
        %2663 = vmatpush1.msra.mxu0 0.0
        %2664 = vmatprep.subr.mxu0 0.0
        %2665 = vmatpush1.msra.mxu0 0.0
        %2666 = vmatprep.subr.mxu0 0.0
        %2667 = vmatpush1.msra.mxu0 0.0
        %2668 = vmatprep.subr.mxu0 0.0
        %2669 = vmatpush1.msra.mxu0 0.0
        %2670 = vmatprep.subr.mxu0 0.0
        %2671 = vmatpush1.msra.mxu0 0.0
        %2672 = vmatprep.subr.mxu0 0.0
        %2673 = vmatpush1.msra.mxu0 0.0
        %2674 = vmatprep.subr.mxu0 0.0
        %2675 = vmatpush1.msra.mxu0 0.0
        %2676 = vmatprep.subr.mxu0 0.0
        %2677 = vmatpush1.msra.mxu0 0.0
        %2678 = vmatprep.mubr.f32.mxu0 0.0
        %2679 = vmatmul.mubr.f32.gmra.mrb[0].mxu0 %v2609
        %v2680 = vpop.f32.mrb[0].mxu0
        %v2681 = vadd.f32 0.0, %v2680
        %v2682 = vpop.f32.mrb[0].mxu0
        %2683 = vmatprep.mubr.f32.mxu0 0.0
        %2684 = vmatmul.mubr.f32.gmra.mrb[0].mxu0 %v2612
        %v2685 = vpop.f32.mrb[0].mxu0
        %v2686 = vadd.f32 0.0, %v2685
        %v2687 = vpop.f32.mrb[0].mxu0
        %2688 = vdwg.mxu0
        %2689 = vrot.lane.b32.xlu0 %v892, 64
        %v2690 = vpop.permute.xlu0 %2689
        %2691 = vrot.lane.b32.xlu0 %v895, 64
        %v2692 = vpop.permute.xlu0 %2691
        %v2696 = vsel %vm1436, %v2515, 0
        %v2699 = vsel %vm1436, %v2516, 0
        %2701 = vmatprep.subr.mxu0 0.0
        %2702 = vmatpush1.msra.mxu0 %v2690
        %2703 = vmatprep.subr.mxu0 0.0
        %2704 = vmatpush1.msra.mxu0 %v2692
        %2705 = vmatprep.subr.mxu0 0.0
        %2706 = vmatpush1.msra.mxu0 0.0
        %2707 = vmatprep.subr.mxu0 0.0
        %2708 = vmatpush1.msra.mxu0 0.0
        %2709 = vmatprep.subr.mxu0 0.0
        %2710 = vmatpush1.msra.mxu0 0.0
        %2711 = vmatprep.subr.mxu0 0.0
        %2712 = vmatpush1.msra.mxu0 0.0
        %2713 = vmatprep.subr.mxu0 0.0
        %2714 = vmatpush1.msra.mxu0 0.0
        %2715 = vmatprep.subr.mxu0 0.0
        %2716 = vmatpush1.msra.mxu0 0.0
        %2717 = vmatprep.subr.mxu0 0.0
        %2718 = vmatpush1.msra.mxu0 0.0
        %2719 = vmatprep.subr.mxu0 0.0
        %2720 = vmatpush1.msra.mxu0 0.0
        %2721 = vmatprep.subr.mxu0 0.0
        %2722 = vmatpush1.msra.mxu0 0.0
        %2723 = vmatprep.subr.mxu0 0.0
        %2724 = vmatpush1.msra.mxu0 0.0
        %2725 = vmatprep.subr.mxu0 0.0
        %2726 = vmatpush1.msra.mxu0 0.0
        %2727 = vmatprep.subr.mxu0 0.0
        %2728 = vmatpush1.msra.mxu0 0.0
        %2729 = vmatprep.subr.mxu0 0.0
        %2730 = vmatpush1.msra.mxu0 0.0
        %2731 = vmatprep.subr.mxu0 0.0
        %2732 = vmatpush1.msra.mxu0 0.0
        %2733 = vmatprep.subr.mxu0 0.0
        %2734 = vmatpush1.msra.mxu0 0.0
        %2735 = vmatprep.subr.mxu0 0.0
        %2736 = vmatpush1.msra.mxu0 0.0
        %2737 = vmatprep.subr.mxu0 0.0
        %2738 = vmatpush1.msra.mxu0 0.0
        %2739 = vmatprep.subr.mxu0 0.0
        %2740 = vmatpush1.msra.mxu0 0.0
        %2741 = vmatprep.subr.mxu0 0.0
        %2742 = vmatpush1.msra.mxu0 0.0
        %2743 = vmatprep.subr.mxu0 0.0
        %2744 = vmatpush1.msra.mxu0 0.0
        %2745 = vmatprep.subr.mxu0 0.0
        %2746 = vmatpush1.msra.mxu0 0.0
        %2747 = vmatprep.subr.mxu0 0.0
        %2748 = vmatpush1.msra.mxu0 0.0
        %2749 = vmatprep.subr.mxu0 0.0
        %2750 = vmatpush1.msra.mxu0 0.0
        %2751 = vmatprep.subr.mxu0 0.0
        %2752 = vmatpush1.msra.mxu0 0.0
        %2753 = vmatprep.subr.mxu0 0.0
        %2754 = vmatpush1.msra.mxu0 0.0
        %2755 = vmatprep.subr.mxu0 0.0
        %2756 = vmatpush1.msra.mxu0 0.0
        %2757 = vmatprep.subr.mxu0 0.0
        %2758 = vmatpush1.msra.mxu0 0.0
        %2759 = vmatprep.subr.mxu0 0.0
        %2760 = vmatpush1.msra.mxu0 0.0
        %2761 = vmatprep.subr.mxu0 0.0
        %2762 = vmatpush1.msra.mxu0 0.0
        %2763 = vmatprep.subr.mxu0 0.0
        %2764 = vmatpush1.msra.mxu0 0.0
        %2765 = vmatprep.mubr.f32.mxu0 0.0
        %2766 = vmatmul.mubr.f32.gmra.mrb[0].mxu0 %v2696
        %v2767 = vpop.f32.mrb[0].mxu0
        %v2768 = vadd.f32 0.0, %v2767
        %v2769 = vpop.f32.mrb[0].mxu0
        %2770 = vmatprep.mubr.f32.mxu0 0.0
        %2771 = vmatmul.mubr.f32.gmra.mrb[0].mxu0 %v2699
        %v2772 = vpop.f32.mrb[0].mxu0
        %v2773 = vadd.f32 0.0, %v2772
        %v2774 = vpop.f32.mrb[0].mxu0
        %2775 = vdwg.mxu0
        %2776 = vrot.lane.b32.xlu0 %v892, 32
        %v2777 = vpop.permute.xlu0 %2776
        %2778 = vrot.lane.b32.xlu0 %v895, 32
        %v2779 = vpop.permute.xlu0 %2778
        %v2783 = vsel %vm1436, %v2517, 0
        %v2786 = vsel %vm1436, %v2518, 0
        %2788 = vmatprep.subr.mxu0 0.0
        %2789 = vmatpush1.msra.mxu0 %v2777
        %2790 = vmatprep.subr.mxu0 0.0
        %2791 = vmatpush1.msra.mxu0 %v2779
        %2792 = vmatprep.subr.mxu0 0.0
        %2793 = vmatpush1.msra.mxu0 0.0
        %2794 = vmatprep.subr.mxu0 0.0
        %2795 = vmatpush1.msra.mxu0 0.0
        %2796 = vmatprep.subr.mxu0 0.0
        %2797 = vmatpush1.msra.mxu0 0.0
        %2798 = vmatprep.subr.mxu0 0.0
        %2799 = vmatpush1.msra.mxu0 0.0
        %2800 = vmatprep.subr.mxu0 0.0
        %2801 = vmatpush1.msra.mxu0 0.0
        %2802 = vmatprep.subr.mxu0 0.0
        %2803 = vmatpush1.msra.mxu0 0.0
        %2804 = vmatprep.subr.mxu0 0.0
        %2805 = vmatpush1.msra.mxu0 0.0
        %2806 = vmatprep.subr.mxu0 0.0
        %2807 = vmatpush1.msra.mxu0 0.0
        %2808 = vmatprep.subr.mxu0 0.0
        %2809 = vmatpush1.msra.mxu0 0.0
        %2810 = vmatprep.subr.mxu0 0.0
        %2811 = vmatpush1.msra.mxu0 0.0
        %2812 = vmatprep.subr.mxu0 0.0
        %2813 = vmatpush1.msra.mxu0 0.0
        %2814 = vmatprep.subr.mxu0 0.0
        %2815 = vmatpush1.msra.mxu0 0.0
        %2816 = vmatprep.subr.mxu0 0.0
        %2817 = vmatpush1.msra.mxu0 0.0
        %2818 = vmatprep.subr.mxu0 0.0
        %2819 = vmatpush1.msra.mxu0 0.0
        %2820 = vmatprep.subr.mxu0 0.0
        %2821 = vmatpush1.msra.mxu0 0.0
        %2822 = vmatprep.subr.mxu0 0.0
        %2823 = vmatpush1.msra.mxu0 0.0
        %2824 = vmatprep.subr.mxu0 0.0
        %2825 = vmatpush1.msra.mxu0 0.0
        %2826 = vmatprep.subr.mxu0 0.0
        %2827 = vmatpush1.msra.mxu0 0.0
        %2828 = vmatprep.subr.mxu0 0.0
        %2829 = vmatpush1.msra.mxu0 0.0
        %2830 = vmatprep.subr.mxu0 0.0
        %2831 = vmatpush1.msra.mxu0 0.0
        %2832 = vmatprep.subr.mxu0 0.0
        %2833 = vmatpush1.msra.mxu0 0.0
        %2834 = vmatprep.subr.mxu0 0.0
        %2835 = vmatpush1.msra.mxu0 0.0
        %2836 = vmatprep.subr.mxu0 0.0
        %2837 = vmatpush1.msra.mxu0 0.0
        %2838 = vmatprep.subr.mxu0 0.0
        %2839 = vmatpush1.msra.mxu0 0.0
        %2840 = vmatprep.subr.mxu0 0.0
        %2841 = vmatpush1.msra.mxu0 0.0
        %2842 = vmatprep.subr.mxu0 0.0
        %2843 = vmatpush1.msra.mxu0 0.0
        %2844 = vmatprep.subr.mxu0 0.0
        %2845 = vmatpush1.msra.mxu0 0.0
        %2846 = vmatprep.subr.mxu0 0.0
        %2847 = vmatpush1.msra.mxu0 0.0
        %2848 = vmatprep.subr.mxu0 0.0
        %2849 = vmatpush1.msra.mxu0 0.0
        %2850 = vmatprep.subr.mxu0 0.0
        %2851 = vmatpush1.msra.mxu0 0.0
        %2852 = vmatprep.mubr.f32.mxu0 0.0
        %2853 = vmatmul.mubr.f32.gmra.mrb[0].mxu0 %v2783
        %v2854 = vpop.f32.mrb[0].mxu0
        %v2855 = vadd.f32 0.0, %v2854
        %v2856 = vpop.f32.mrb[0].mxu0
        %2857 = vmatprep.mubr.f32.mxu0 0.0
        %2858 = vmatmul.mubr.f32.gmra.mrb[0].mxu0 %v2786
        %v2859 = vpop.f32.mrb[0].mxu0
        %v2860 = vadd.f32 0.0, %v2859
        %v2861 = vpop.f32.mrb[0].mxu0
        %2862 = vdwg.mxu0
        %2865 = vrot.lane.b32.xlu0 %v2681, 32
        %v2866 = vpop.permute.xlu0 %2865
        %2867 = vrot.lane.b32.xlu0 %v2686, 32
        %v2868 = vpop.permute.xlu0 %2867
        %2873 = vrot.lane.b32.xlu0 %v2768, 64
        %v2874 = vpop.permute.xlu0 %2873
        %2875 = vrot.lane.b32.xlu0 %v2773, 64
        %v2876 = vpop.permute.xlu0 %2875
        %2881 = vrot.lane.b32.xlu0 %v2855, 96
        %v2882 = vpop.permute.xlu0 %2881
        %2883 = vrot.lane.b32.xlu0 %v2860, 96
        %v2884 = vpop.permute.xlu0 %2883
        %v2887 = vsel %vm969, %v2592, %v2866
        %v2888 = vsel %vm969, %v2597, %v2868
        %v2889 = vsel %vm1895, %v2887, %v2874
        %v2890 = vsel %vm1895, %v2888, %v2876
        %v2891 = vsel %vm1898, %v2889, %v2882
        %v2892 = vsel %vm1898, %v2890, %v2884
        %v2893 = vpack.c.bf16 %v1900, %v1899
        %v2894 = vpack.c.bf16 %v2892, %v2891
        %v2895 = vld [vmem:[#allocation10] sm:$0xf]
        %v2896 = vld [vmem:[#allocation10 + $0x4] sm:$0xf]
        %v2897 = vld [vmem:[#allocation10 + $0x8] sm:$0xf]
        %v2898 = vld [vmem:[#allocation10 + $0xc] sm:$0xf]
        %v2899 = vld [vmem:[#allocation10 + $0x10] sm:$0xf]
        %v2900 = vld [vmem:[#allocation10 + $0x14] sm:$0xf]
        %v2901 = vld [vmem:[#allocation10 + $0x18] sm:$0xf]
        %v2902 = vld [vmem:[#allocation10 + $0x1c] sm:$0xf]
        %v2903 = vld [vmem:[#allocation10 + $0x20] sm:$0xf]
        %v2904 = vld [vmem:[#allocation10 + $0x24] sm:$0xf]
        %v2905 = vld [vmem:[#allocation10 + $0x28] sm:$0xf]
        %v2906 = vld [vmem:[#allocation10 + $0x2c] sm:$0xf]
        %v2907 = vld [vmem:[#allocation10 + $0x30] sm:$0xf]
        %v2908 = vld [vmem:[#allocation10 + $0x34] sm:$0xf]
        %v2909 = vld [vmem:[#allocation10 + $0x38] sm:$0xf]
        %v2910 = vld [vmem:[#allocation10 + $0x3c] sm:$0xf]
        %v2911 = vld [vmem:[%s6] sm:$0x1]
        %v2913 = vlaneseq
        %v2914 = vshrl.u32 %v2913, 7
        %v2915 = vsub.s32 0, %v2914
        %v2916 = vrot.slane %v2911, %v2915
        %v2934 = vunpack.c.l.b16 %v2895
        %v2935 = vunpack.c.l.b16 %v2896
        %v2936 = vunpack.c.l.b16 %v2897
        %v2937 = vunpack.c.l.b16 %v2898
        %v2938 = vunpack.c.l.b16 %v2899
        %v2939 = vunpack.c.l.b16 %v2900
        %v2940 = vunpack.c.l.b16 %v2901
        %v2941 = vunpack.c.l.b16 %v2902
        %v2942 = vunpack.c.l.b16 %v2903
        %v2943 = vunpack.c.l.b16 %v2904
        %v2944 = vunpack.c.l.b16 %v2905
        %v2945 = vunpack.c.l.b16 %v2906
        %v2946 = vunpack.c.l.b16 %v2907
        %v2947 = vunpack.c.l.b16 %v2908
        %v2948 = vunpack.c.l.b16 %v2909
        %v2949 = vunpack.c.l.b16 %v2910
        %v2950 = vpack.c.b16 %v2935, %v2934
        %v2951 = vpack.c.b16 %v2937, %v2936
        %v2952 = vpack.c.b16 %v2939, %v2938
        %v2953 = vpack.c.b16 %v2941, %v2940
        %v2954 = vpack.c.b16 %v2943, %v2942
        %v2955 = vpack.c.b16 %v2945, %v2944
        %v2956 = vpack.c.b16 %v2947, %v2946
        %v2957 = vpack.c.b16 %v2949, %v2948
        %2966 = vmatprep.subr.bf16.mxu0 0
        %2967 = vmatpush1.bf16.msra.mxu0 %v2950
        %2968 = vmatprep.subr.bf16.mxu0 0
        %2969 = vmatpush1.bf16.msra.mxu0 %v2951
        %2970 = vmatprep.subr.bf16.mxu0 0
        %2971 = vmatpush1.bf16.msra.mxu0 %v2952
        %2972 = vmatprep.subr.bf16.mxu0 0
        %2973 = vmatpush1.bf16.msra.mxu0 %v2953
        %2974 = vmatprep.subr.bf16.mxu0 0
        %2975 = vmatpush1.bf16.msra.mxu0 %v2954
        %2976 = vmatprep.subr.bf16.mxu0 0
        %2977 = vmatpush1.bf16.msra.mxu0 %v2955
        %2978 = vmatprep.subr.bf16.mxu0 0
        %2979 = vmatpush1.bf16.msra.mxu0 %v2956
        %2980 = vmatprep.subr.bf16.mxu0 0
        %2981 = vmatpush1.bf16.msra.mxu0 %v2957
        %2982 = vmatprep.subr.bf16.mxu0 0
        %2983 = vmatpush1.bf16.msra.mxu0 0
        %2984 = vmatprep.subr.bf16.mxu0 0
        %2985 = vmatpush1.bf16.msra.mxu0 0
        %2986 = vmatprep.subr.bf16.mxu0 0
        %2987 = vmatpush1.bf16.msra.mxu0 0
        %2988 = vmatprep.subr.bf16.mxu0 0
        %2989 = vmatpush1.bf16.msra.mxu0 0
        %2990 = vmatprep.subr.bf16.mxu0 0
        %2991 = vmatpush1.bf16.msra.mxu0 0
        %2992 = vmatprep.subr.bf16.mxu0 0
        %2993 = vmatpush1.bf16.msra.mxu0 0
        %2994 = vmatprep.subr.bf16.mxu0 0
        %2995 = vmatpush1.bf16.msra.mxu0 0
        %2996 = vmatprep.subr.bf16.mxu0 0
        %2997 = vmatpush1.bf16.msra.mxu0 0
        %2998 = vmatprep.mubr.bf16.mxu0 0
        %2999 = vmatmul.mubr.bf16.gmra.mrb[0].mxu0 %v2893
        %v3000 = vpop.f32.mrb[0].mxu0
        %v3001 = vadd.f32 %v2916, %v3000
        %v3002 = vpop.f32.mrb[0].mxu0
        %v3003 = vpop.f32.mrb[0].mxu0
        %v3004 = vadd.f32 %v2916, %v3003
        %v3005 = vpop.f32.mrb[0].mxu0
        %3006 = vmatprep.mubr.bf16.mxu0 0
        %3007 = vmatmul.mubr.bf16.gmra.mrb[0].mxu0 %v2894
        %v3008 = vpop.f32.mrb[0].mxu0
        %v3009 = vadd.f32 %v2916, %v3008
        %v3010 = vpop.f32.mrb[0].mxu0
        %v3011 = vpop.f32.mrb[0].mxu0
        %v3012 = vadd.f32 %v2916, %v3011
        %v3013 = vpop.f32.mrb[0].mxu0
        %3014 = vdwg.mxu0
        %v3015 = vadd.f32 %v546, %v3001
        %v3016 = vadd.f32 %v547, %v3004
        %v3017 = vadd.f32 %v548, %v3009
        %v3018 = vadd.f32 %v549, %v3012
        %v3019 = vld [vmem:[%s7] sm:$0x1]
        %v3020 = vld [vmem:[%s8] sm:$0x1]
        %3021 = vadd.xlane.f32.xlu0 %v3015
        %v3022 = vpop.xlane.xlu0 %3021
        %3023 = vadd.xlane.f32.xlu0 %v3016
        %v3024 = vpop.xlane.xlu0 %3023
        %3025 = vadd.xlane.f32.xlu0 %v3017
        %v3026 = vpop.xlane.xlu0 %3025
        %3027 = vadd.xlane.f32.xlu0 %v3018
        %v3028 = vpop.xlane.xlu0 %3027
        %v3029 = vmul.f32 %v3022, %v560
        %v3030 = vmul.f32 %v3024, %v560
        %v3031 = vmul.f32 %v3026, %v560
        %v3032 = vmul.f32 %v3028, %v560
        %v3033 = vsub.f32 %v3015, %v3029
        %v3034 = vsub.f32 %v3016, %v3030
        %v3035 = vsub.f32 %v3017, %v3031
        %v3036 = vsub.f32 %v3018, %v3032
        %v3037 = vmul.f32 %v3033, %v3033
        %v3038 = vmul.f32 %v3034, %v3034
        %v3039 = vmul.f32 %v3035, %v3035
        %v3040 = vmul.f32 %v3036, %v3036
        %3041 = vadd.xlane.f32.xlu0 %v3037
        %v3042 = vpop.xlane.xlu0 %3041
        %3043 = vadd.xlane.f32.xlu0 %v3038
        %v3044 = vpop.xlane.xlu0 %3043
        %3045 = vadd.xlane.f32.xlu0 %v3039
        %v3046 = vpop.xlane.xlu0 %3045
        %3047 = vadd.xlane.f32.xlu0 %v3040
        %v3048 = vpop.xlane.xlu0 %3047
        %v3049 = vmul.f32 %v3042, %v560
        %v3050 = vmul.f32 %v3044, %v560
        %v3051 = vmul.f32 %v3046, %v560
        %v3052 = vmul.f32 %v3048, %v560
        %v3053 = vadd.f32 %v3049, 1e-05
        %v3054 = vadd.f32 %v3050, 1e-05
        %v3055 = vadd.f32 %v3051, 1e-05
        %v3056 = vadd.f32 %v3052, 1e-05
        %v3057 = vrsqrt.pop %v3053
        %v3058 = vrsqrt.pop %v3054
        %v3059 = vrsqrt.pop %v3055
        %v3060 = vrsqrt.pop %v3056
        %v3061 = vmul.f32 %v3033, %v3057
        %v3062 = vmul.f32 %v3034, %v3058
        %v3063 = vmul.f32 %v3035, %v3059
        %v3064 = vmul.f32 %v3036, %v3060
        %v3066 = vlaneseq
        %v3067 = vshrl.u32 %v3066, 7
        %v3068 = vsub.s32 0, %v3067
        %v3069 = vrot.slane %v3019, %v3068
        %v3071 = vmul.f32 %v3069, %v3061
        %v3072 = vmul.f32 %v3069, %v3062
        %v3073 = vmul.f32 %v3069, %v3063
        %v3074 = vmul.f32 %v3069, %v3064
        %v3076 = vlaneseq
        %v3077 = vshrl.u32 %v3076, 7
        %v3078 = vsub.s32 0, %v3077
        %v3079 = vrot.slane %v3020, %v3078
        %v3081 = vadd.f32 %v3071, %v3079
        %v3082 = vadd.f32 %v3072, %v3079
        %v3083 = vadd.f32 %v3073, %v3079
        %v3084 = vadd.f32 %v3074, %v3079
        %v3085 = vpack.c.bf16 %v3082, %v3081
        %v3086 = vpack.c.bf16 %v3084, %v3083
        %v3087 = vld [vmem:[#allocation11] sm:$0xff]
        %v3088 = vld [vmem:[#allocation11 + $0x8] sm:$0xff]
        %v3089 = vld [vmem:[#allocation11 + $0x10] sm:$0xff]
        %v3090 = vld [vmem:[#allocation11 + $0x18] sm:$0xff]
        %v3091 = vld [vmem:[#allocation11 + $0x20] sm:$0xff]
        %v3092 = vld [vmem:[#allocation11 + $0x28] sm:$0xff]
        %v3093 = vld [vmem:[#allocation11 + $0x30] sm:$0xff]
        %v3094 = vld [vmem:[#allocation11 + $0x38] sm:$0xff]
        %v3095 = vld [vmem:[#allocation11 + $0x40] sm:$0xff]
        %v3096 = vld [vmem:[#allocation11 + $0x48] sm:$0xff]
        %v3097 = vld [vmem:[#allocation11 + $0x50] sm:$0xff]
        %v3098 = vld [vmem:[#allocation11 + $0x58] sm:$0xff]
        %v3099 = vld [vmem:[#allocation11 + $0x60] sm:$0xff]
        %v3100 = vld [vmem:[#allocation11 + $0x68] sm:$0xff]
        %v3101 = vld [vmem:[#allocation11 + $0x70] sm:$0xff]
        %v3102 = vld [vmem:[#allocation11 + $0x78] sm:$0xff]
        %v3103 = vld [vmem:[#allocation11 + $0x80] sm:$0xff]
        %v3104 = vld [vmem:[#allocation11 + $0x88] sm:$0xff]
        %v3105 = vld [vmem:[#allocation11 + $0x90] sm:$0xff]
        %v3106 = vld [vmem:[#allocation11 + $0x98] sm:$0xff]
        %v3107 = vld [vmem:[#allocation11 + $0xa0] sm:$0xff]
        %v3108 = vld [vmem:[#allocation11 + $0xa8] sm:$0xff]
        %v3109 = vld [vmem:[#allocation11 + $0xb0] sm:$0xff]
        %v3110 = vld [vmem:[#allocation11 + $0xb8] sm:$0xff]
        %v3111 = vld [vmem:[#allocation11 + $0xc0] sm:$0xff]
        %v3112 = vld [vmem:[#allocation11 + $0xc8] sm:$0xff]
        %v3113 = vld [vmem:[#allocation11 + $0xd0] sm:$0xff]
        %v3114 = vld [vmem:[#allocation11 + $0xd8] sm:$0xff]
        %v3115 = vld [vmem:[#allocation11 + $0xe0] sm:$0xff]
        %v3116 = vld [vmem:[#allocation11 + $0xe8] sm:$0xff]
        %v3117 = vld [vmem:[#allocation11 + $0xf0] sm:$0xff]
        %v3118 = vld [vmem:[#allocation11 + $0xf8] sm:$0xff]
        %v3119 = vld [vmem:[%s10] sm:$0xf]
        %v3121 = vlaneseq
        %v3122 = vshrl.u32 %v3121, 7
        %v3123 = vsub.s32 0, %v3122
        %v3124 = vrot.slane %v3119, %v3123
        %v3125 = vlaneseq
        %v3126 = vshrl.u32 %v3125, 7
        %v3127 = vsub.s32 1, %v3126
        %v3128 = vrot.slane %v3119, %v3127
        %v3129 = vlaneseq
        %v3130 = vshrl.u32 %v3129, 7
        %v3131 = vsub.s32 2, %v3130
        %v3132 = vrot.slane %v3119, %v3131
        %v3133 = vlaneseq
        %v3134 = vshrl.u32 %v3133, 7
        %v3135 = vsub.s32 3, %v3134
        %v3136 = vrot.slane %v3119, %v3135
        %v3173 = vunpack.c.l.b16 %v3087
        %v3174 = vunpack.c.h.b16 %v3087
        %v3175 = vunpack.c.l.b16 %v3088
        %v3176 = vunpack.c.h.b16 %v3088
        %v3177 = vunpack.c.l.b16 %v3089
        %v3178 = vunpack.c.h.b16 %v3089
        %v3179 = vunpack.c.l.b16 %v3090
        %v3180 = vunpack.c.h.b16 %v3090
        %v3181 = vunpack.c.l.b16 %v3091
        %v3182 = vunpack.c.h.b16 %v3091
        %v3183 = vunpack.c.l.b16 %v3092
        %v3184 = vunpack.c.h.b16 %v3092
        %v3185 = vunpack.c.l.b16 %v3093
        %v3186 = vunpack.c.h.b16 %v3093
        %v3187 = vunpack.c.l.b16 %v3094
        %v3188 = vunpack.c.h.b16 %v3094
        %v3189 = vunpack.c.l.b16 %v3095
        %v3190 = vunpack.c.h.b16 %v3095
        %v3191 = vunpack.c.l.b16 %v3096
        %v3192 = vunpack.c.h.b16 %v3096
        %v3193 = vunpack.c.l.b16 %v3097
        %v3194 = vunpack.c.h.b16 %v3097
        %v3195 = vunpack.c.l.b16 %v3098
        %v3196 = vunpack.c.h.b16 %v3098
        %v3197 = vunpack.c.l.b16 %v3099
        %v3198 = vunpack.c.h.b16 %v3099
        %v3199 = vunpack.c.l.b16 %v3100
        %v3200 = vunpack.c.h.b16 %v3100
        %v3201 = vunpack.c.l.b16 %v3101
        %v3202 = vunpack.c.h.b16 %v3101
        %v3203 = vunpack.c.l.b16 %v3102
        %v3204 = vunpack.c.h.b16 %v3102
        %v3205 = vunpack.c.l.b16 %v3103
        %v3206 = vunpack.c.h.b16 %v3103
        %v3207 = vunpack.c.l.b16 %v3104
        %v3208 = vunpack.c.h.b16 %v3104
        %v3209 = vunpack.c.l.b16 %v3105
        %v3210 = vunpack.c.h.b16 %v3105
        %v3211 = vunpack.c.l.b16 %v3106
        %v3212 = vunpack.c.h.b16 %v3106
        %v3213 = vunpack.c.l.b16 %v3107
        %v3214 = vunpack.c.h.b16 %v3107
        %v3215 = vunpack.c.l.b16 %v3108
        %v3216 = vunpack.c.h.b16 %v3108
        %v3217 = vunpack.c.l.b16 %v3109
        %v3218 = vunpack.c.h.b16 %v3109
        %v3219 = vunpack.c.l.b16 %v3110
        %v3220 = vunpack.c.h.b16 %v3110
        %v3221 = vunpack.c.l.b16 %v3111
        %v3222 = vunpack.c.h.b16 %v3111
        %v3223 = vunpack.c.l.b16 %v3112
        %v3224 = vunpack.c.h.b16 %v3112
        %v3225 = vunpack.c.l.b16 %v3113
        %v3226 = vunpack.c.h.b16 %v3113
        %v3227 = vunpack.c.l.b16 %v3114
        %v3228 = vunpack.c.h.b16 %v3114
        %v3229 = vunpack.c.l.b16 %v3115
        %v3230 = vunpack.c.h.b16 %v3115
        %v3231 = vunpack.c.l.b16 %v3116
        %v3232 = vunpack.c.h.b16 %v3116
        %v3233 = vunpack.c.l.b16 %v3117
        %v3234 = vunpack.c.h.b16 %v3117
        %v3235 = vunpack.c.l.b16 %v3118
        %v3236 = vunpack.c.h.b16 %v3118
        %v3237 = vpack.c.b16 %v3177, %v3173
        %v3238 = vpack.c.b16 %v3178, %v3174
        %v3239 = vpack.c.b16 %v3179, %v3175
        %v3240 = vpack.c.b16 %v3180, %v3176
        %v3241 = vpack.c.b16 %v3185, %v3181
        %v3242 = vpack.c.b16 %v3186, %v3182
        %v3243 = vpack.c.b16 %v3187, %v3183
        %v3244 = vpack.c.b16 %v3188, %v3184
        %v3245 = vpack.c.b16 %v3193, %v3189
        %v3246 = vpack.c.b16 %v3194, %v3190
        %v3247 = vpack.c.b16 %v3195, %v3191
        %v3248 = vpack.c.b16 %v3196, %v3192
        %v3249 = vpack.c.b16 %v3201, %v3197
        %v3250 = vpack.c.b16 %v3202, %v3198
        %v3251 = vpack.c.b16 %v3203, %v3199
        %v3252 = vpack.c.b16 %v3204, %v3200
        %v3253 = vpack.c.b16 %v3209, %v3205
        %v3254 = vpack.c.b16 %v3210, %v3206
        %v3255 = vpack.c.b16 %v3211, %v3207
        %v3256 = vpack.c.b16 %v3212, %v3208
        %v3257 = vpack.c.b16 %v3217, %v3213
        %v3258 = vpack.c.b16 %v3218, %v3214
        %v3259 = vpack.c.b16 %v3219, %v3215
        %v3260 = vpack.c.b16 %v3220, %v3216
        %v3261 = vpack.c.b16 %v3225, %v3221
        %v3262 = vpack.c.b16 %v3226, %v3222
        %v3263 = vpack.c.b16 %v3227, %v3223
        %v3264 = vpack.c.b16 %v3228, %v3224
        %v3265 = vpack.c.b16 %v3233, %v3229
        %v3266 = vpack.c.b16 %v3234, %v3230
        %v3267 = vpack.c.b16 %v3235, %v3231
        %v3268 = vpack.c.b16 %v3236, %v3232
        %3301 = vmatprep.subr.bf16.mxu0 %v3238
        %3302 = vmatpush1.bf16.msra.mxu0 %v3237
        %3303 = vmatprep.subr.bf16.mxu0 %v3242
        %3304 = vmatpush1.bf16.msra.mxu0 %v3241
        %3305 = vmatprep.subr.bf16.mxu0 %v3246
        %3306 = vmatpush1.bf16.msra.mxu0 %v3245
        %3307 = vmatprep.subr.bf16.mxu0 %v3250
        %3308 = vmatpush1.bf16.msra.mxu0 %v3249
        %3309 = vmatprep.subr.bf16.mxu0 %v3254
        %3310 = vmatpush1.bf16.msra.mxu0 %v3253
        %3311 = vmatprep.subr.bf16.mxu0 %v3258
        %3312 = vmatpush1.bf16.msra.mxu0 %v3257
        %3313 = vmatprep.subr.bf16.mxu0 %v3262
        %3314 = vmatpush1.bf16.msra.mxu0 %v3261
        %3315 = vmatprep.subr.bf16.mxu0 %v3266
        %3316 = vmatpush1.bf16.msra.mxu0 %v3265
        %3317 = vmatprep.subr.bf16.mxu0 0
        %3318 = vmatpush1.bf16.msra.mxu0 0
        %3319 = vmatprep.subr.bf16.mxu0 0
        %3320 = vmatpush1.bf16.msra.mxu0 0
        %3321 = vmatprep.subr.bf16.mxu0 0
        %3322 = vmatpush1.bf16.msra.mxu0 0
        %3323 = vmatprep.subr.bf16.mxu0 0
        %3324 = vmatpush1.bf16.msra.mxu0 0
        %3325 = vmatprep.subr.bf16.mxu0 0
        %3326 = vmatpush1.bf16.msra.mxu0 0
        %3327 = vmatprep.subr.bf16.mxu0 0
        %3328 = vmatpush1.bf16.msra.mxu0 0
        %3329 = vmatprep.subr.bf16.mxu0 0
        %3330 = vmatpush1.bf16.msra.mxu0 0
        %3331 = vmatprep.subr.bf16.mxu0 0
        %3332 = vmatpush1.bf16.msra.mxu0 0
        %3333 = vmatprep.mubr.bf16.mxu0 0
        %3334 = vmatmul.mubr.bf16.gmra.mrb[0].mxu0 %v3085
        %v3335 = vpop.f32.mrb[0].mxu0
        %v3336 = vadd.f32 %v3124, %v3335
        %v3337 = vpop.f32.mrb[0].mxu0
        %v3338 = vadd.f32 %v3128, %v3337
        %v3339 = vpop.f32.mrb[0].mxu0
        %v3340 = vadd.f32 %v3124, %v3339
        %v3341 = vpop.f32.mrb[0].mxu0
        %v3342 = vadd.f32 %v3128, %v3341
        %3343 = vmatprep.mubr.bf16.mxu0 0
        %3344 = vmatmul.mubr.bf16.gmra.mrb[0].mxu0 %v3086
        %v3345 = vpop.f32.mrb[0].mxu0
        %v3346 = vadd.f32 %v3124, %v3345
        %v3347 = vpop.f32.mrb[0].mxu0
        %v3348 = vadd.f32 %v3128, %v3347
        %v3349 = vpop.f32.mrb[0].mxu0
        %v3350 = vadd.f32 %v3124, %v3349
        %v3351 = vpop.f32.mrb[0].mxu0
        %v3352 = vadd.f32 %v3128, %v3351
        %3353 = vdwg.mxu0
        %3354 = vmatprep.subr.bf16.mxu0 %v3240
        %3355 = vmatpush1.bf16.msra.mxu0 %v3239
        %3356 = vmatprep.subr.bf16.mxu0 %v3244
        %3357 = vmatpush1.bf16.msra.mxu0 %v3243
        %3358 = vmatprep.subr.bf16.mxu0 %v3248
        %3359 = vmatpush1.bf16.msra.mxu0 %v3247
        %3360 = vmatprep.subr.bf16.mxu0 %v3252
        %3361 = vmatpush1.bf16.msra.mxu0 %v3251
        %3362 = vmatprep.subr.bf16.mxu0 %v3256
        %3363 = vmatpush1.bf16.msra.mxu0 %v3255
        %3364 = vmatprep.subr.bf16.mxu0 %v3260
        %3365 = vmatpush1.bf16.msra.mxu0 %v3259
        %3366 = vmatprep.subr.bf16.mxu0 %v3264
        %3367 = vmatpush1.bf16.msra.mxu0 %v3263
        %3368 = vmatprep.subr.bf16.mxu0 %v3268
        %3369 = vmatpush1.bf16.msra.mxu0 %v3267
        %3370 = vmatprep.subr.bf16.mxu0 0
        %3371 = vmatpush1.bf16.msra.mxu0 0
        %3372 = vmatprep.subr.bf16.mxu0 0
        %3373 = vmatpush1.bf16.msra.mxu0 0
        %3374 = vmatprep.subr.bf16.mxu0 0
        %3375 = vmatpush1.bf16.msra.mxu0 0
        %3376 = vmatprep.subr.bf16.mxu0 0
        %3377 = vmatpush1.bf16.msra.mxu0 0
        %3378 = vmatprep.subr.bf16.mxu0 0
        %3379 = vmatpush1.bf16.msra.mxu0 0
        %3380 = vmatprep.subr.bf16.mxu0 0
        %3381 = vmatpush1.bf16.msra.mxu0 0
        %3382 = vmatprep.subr.bf16.mxu0 0
        %3383 = vmatpush1.bf16.msra.mxu0 0
        %3384 = vmatprep.subr.bf16.mxu0 0
        %3385 = vmatpush1.bf16.msra.mxu0 0
        %3386 = vmatprep.mubr.bf16.mxu0 0
        %3387 = vmatmul.mubr.bf16.gmra.mrb[0].mxu0 %v3085
        %v3388 = vpop.f32.mrb[0].mxu0
        %v3389 = vadd.f32 %v3132, %v3388
        %v3390 = vpop.f32.mrb[0].mxu0
        %v3391 = vadd.f32 %v3136, %v3390
        %v3392 = vpop.f32.mrb[0].mxu0
        %v3393 = vadd.f32 %v3132, %v3392
        %v3394 = vpop.f32.mrb[0].mxu0
        %v3395 = vadd.f32 %v3136, %v3394
        %3396 = vmatprep.mubr.bf16.mxu0 0
        %3397 = vmatmul.mubr.bf16.gmra.mrb[0].mxu0 %v3086
        %v3398 = vpop.f32.mrb[0].mxu0
        %v3399 = vadd.f32 %v3132, %v3398
        %v3400 = vpop.f32.mrb[0].mxu0
        %v3401 = vadd.f32 %v3136, %v3400
        %v3402 = vpop.f32.mrb[0].mxu0
        %v3403 = vadd.f32 %v3132, %v3402
        %v3404 = vpop.f32.mrb[0].mxu0
        %v3405 = vadd.f32 %v3136, %v3404
        %3406 = vdwg.mxu0
        %v3407 = vmul.f32 %v3336, 0.5
        %v3408 = vmul.f32 %v3338, 0.5
        %v3409 = vmul.f32 %v3389, 0.5
        %v3410 = vmul.f32 %v3391, 0.5
        %v3411 = vmul.f32 %v3340, 0.5
        %v3412 = vmul.f32 %v3342, 0.5
        %v3413 = vmul.f32 %v3393, 0.5
        %v3414 = vmul.f32 %v3395, 0.5
        %v3415 = vmul.f32 %v3346, 0.5
        %v3416 = vmul.f32 %v3348, 0.5
        %v3417 = vmul.f32 %v3399, 0.5
        %v3418 = vmul.f32 %v3401, 0.5
        %v3419 = vmul.f32 %v3350, 0.5
        %v3420 = vmul.f32 %v3352, 0.5
        %v3421 = vmul.f32 %v3403, 0.5
        %v3422 = vmul.f32 %v3405, 0.5
        %v3423 = vmul.f32 %v3336, 0.044715
        %v3424 = vmul.f32 %v3338, 0.044715
        %v3425 = vmul.f32 %v3389, 0.044715
        %v3426 = vmul.f32 %v3391, 0.044715
        %v3427 = vmul.f32 %v3340, 0.044715
        %v3428 = vmul.f32 %v3342, 0.044715
        %v3429 = vmul.f32 %v3393, 0.044715
        %v3430 = vmul.f32 %v3395, 0.044715
        %v3431 = vmul.f32 %v3346, 0.044715
        %v3432 = vmul.f32 %v3348, 0.044715
        %v3433 = vmul.f32 %v3399, 0.044715
        %v3434 = vmul.f32 %v3401, 0.044715
        %v3435 = vmul.f32 %v3350, 0.044715
        %v3436 = vmul.f32 %v3352, 0.044715
        %v3437 = vmul.f32 %v3403, 0.044715
        %v3438 = vmul.f32 %v3405, 0.044715
        %v3439 = vmul.f32 %v3423, %v3336
        %v3440 = vmul.f32 %v3424, %v3338
        %v3441 = vmul.f32 %v3425, %v3389
        %v3442 = vmul.f32 %v3426, %v3391
        %v3443 = vmul.f32 %v3427, %v3340
        %v3444 = vmul.f32 %v3428, %v3342
        %v3445 = vmul.f32 %v3429, %v3393
        %v3446 = vmul.f32 %v3430, %v3395
        %v3447 = vmul.f32 %v3431, %v3346
        %v3448 = vmul.f32 %v3432, %v3348
        %v3449 = vmul.f32 %v3433, %v3399
        %v3450 = vmul.f32 %v3434, %v3401
        %v3451 = vmul.f32 %v3435, %v3350
        %v3452 = vmul.f32 %v3436, %v3352
        %v3453 = vmul.f32 %v3437, %v3403
        %v3454 = vmul.f32 %v3438, %v3405
        %v3455 = vmul.f32 %v3439, %v3336
        %v3456 = vmul.f32 %v3440, %v3338
        %v3457 = vmul.f32 %v3441, %v3389
        %v3458 = vmul.f32 %v3442, %v3391
        %v3459 = vmul.f32 %v3443, %v3340
        %v3460 = vmul.f32 %v3444, %v3342
        %v3461 = vmul.f32 %v3445, %v3393
        %v3462 = vmul.f32 %v3446, %v3395
        %v3463 = vmul.f32 %v3447, %v3346
        %v3464 = vmul.f32 %v3448, %v3348
        %v3465 = vmul.f32 %v3449, %v3399
        %v3466 = vmul.f32 %v3450, %v3401
        %v3467 = vmul.f32 %v3451, %v3350
        %v3468 = vmul.f32 %v3452, %v3352
        %v3469 = vmul.f32 %v3453, %v3403
        %v3470 = vmul.f32 %v3454, %v3405
        %v3471 = vadd.f32 %v3336, %v3455
        %v3472 = vadd.f32 %v3338, %v3456
        %v3473 = vadd.f32 %v3389, %v3457
        %v3474 = vadd.f32 %v3391, %v3458
        %v3475 = vadd.f32 %v3340, %v3459
        %v3476 = vadd.f32 %v3342, %v3460
        %v3477 = vadd.f32 %v3393, %v3461
        %v3478 = vadd.f32 %v3395, %v3462
        %v3479 = vadd.f32 %v3346, %v3463
        %v3480 = vadd.f32 %v3348, %v3464
        %v3481 = vadd.f32 %v3399, %v3465
        %v3482 = vadd.f32 %v3401, %v3466
        %v3483 = vadd.f32 %v3350, %v3467
        %v3484 = vadd.f32 %v3352, %v3468
        %v3485 = vadd.f32 %v3403, %v3469
        %v3486 = vadd.f32 %v3405, %v3470
        %v3487 = vmul.f32 %v3471, 0.7978846
        %v3488 = vmul.f32 %v3472, 0.7978846
        %v3489 = vmul.f32 %v3473, 0.7978846
        %v3490 = vmul.f32 %v3474, 0.7978846
        %v3491 = vmul.f32 %v3475, 0.7978846
        %v3492 = vmul.f32 %v3476, 0.7978846
        %v3493 = vmul.f32 %v3477, 0.7978846
        %v3494 = vmul.f32 %v3478, 0.7978846
        %v3495 = vmul.f32 %v3479, 0.7978846
        %v3496 = vmul.f32 %v3480, 0.7978846
        %v3497 = vmul.f32 %v3481, 0.7978846
        %v3498 = vmul.f32 %v3482, 0.7978846
        %v3499 = vmul.f32 %v3483, 0.7978846
        %v3500 = vmul.f32 %v3484, 0.7978846
        %v3501 = vmul.f32 %v3485, 0.7978846
        %v3502 = vmul.f32 %v3486, 0.7978846
        %v3503 = vtanh.pop %v3487
        %v3504 = vtanh.pop %v3488
        %v3505 = vtanh.pop %v3489
        %v3506 = vtanh.pop %v3490
        %v3507 = vtanh.pop %v3491
        %v3508 = vtanh.pop %v3492
        %v3509 = vtanh.pop %v3493
        %v3510 = vtanh.pop %v3494
        %v3511 = vtanh.pop %v3495
        %v3512 = vtanh.pop %v3496
        %v3513 = vtanh.pop %v3497
        %v3514 = vtanh.pop %v3498
        %v3515 = vtanh.pop %v3499
        %v3516 = vtanh.pop %v3500
        %v3517 = vtanh.pop %v3501
        %v3518 = vtanh.pop %v3502
        %v3519 = vadd.f32 %v3503, 1.0
        %v3520 = vadd.f32 %v3504, 1.0
        %v3521 = vadd.f32 %v3505, 1.0
        %v3522 = vadd.f32 %v3506, 1.0
        %v3523 = vadd.f32 %v3507, 1.0
        %v3524 = vadd.f32 %v3508, 1.0
        %v3525 = vadd.f32 %v3509, 1.0
        %v3526 = vadd.f32 %v3510, 1.0
        %v3527 = vadd.f32 %v3511, 1.0
        %v3528 = vadd.f32 %v3512, 1.0
        %v3529 = vadd.f32 %v3513, 1.0
        %v3530 = vadd.f32 %v3514, 1.0
        %v3531 = vadd.f32 %v3515, 1.0
        %v3532 = vadd.f32 %v3516, 1.0
        %v3533 = vadd.f32 %v3517, 1.0
        %v3534 = vadd.f32 %v3518, 1.0
        %v3535 = vmul.f32 %v3407, %v3519
        %v3536 = vmul.f32 %v3408, %v3520
        %v3537 = vmul.f32 %v3409, %v3521
        %v3538 = vmul.f32 %v3410, %v3522
        %v3539 = vmul.f32 %v3411, %v3523
        %v3540 = vmul.f32 %v3412, %v3524
        %v3541 = vmul.f32 %v3413, %v3525
        %v3542 = vmul.f32 %v3414, %v3526
        %v3543 = vmul.f32 %v3415, %v3527
        %v3544 = vmul.f32 %v3416, %v3528
        %v3545 = vmul.f32 %v3417, %v3529
        %v3546 = vmul.f32 %v3418, %v3530
        %v3547 = vmul.f32 %v3419, %v3531
        %v3548 = vmul.f32 %v3420, %v3532
        %v3549 = vmul.f32 %v3421, %v3533
        %v3550 = vmul.f32 %v3422, %v3534
        %v3551 = vpack.c.bf16 %v3539, %v3535
        %v3552 = vpack.c.bf16 %v3540, %v3536
        %v3553 = vpack.c.bf16 %v3541, %v3537
        %v3554 = vpack.c.bf16 %v3542, %v3538
        %v3555 = vpack.c.bf16 %v3547, %v3543
        %v3556 = vpack.c.bf16 %v3548, %v3544
        %v3557 = vpack.c.bf16 %v3549, %v3545
        %v3558 = vpack.c.bf16 %v3550, %v3546
        %v3559 = vld [vmem:[#allocation13] sm:$0xf]
        %v3560 = vld [vmem:[#allocation13 + $0x4] sm:$0xf]
        %v3561 = vld [vmem:[#allocation13 + $0x8] sm:$0xf]
        %v3562 = vld [vmem:[#allocation13 + $0xc] sm:$0xf]
        %v3563 = vld [vmem:[#allocation13 + $0x10] sm:$0xf]
        %v3564 = vld [vmem:[#allocation13 + $0x14] sm:$0xf]
        %v3565 = vld [vmem:[#allocation13 + $0x18] sm:$0xf]
        %v3566 = vld [vmem:[#allocation13 + $0x1c] sm:$0xf]
        %v3567 = vld [vmem:[#allocation13 + $0x20] sm:$0xf]
        %v3568 = vld [vmem:[#allocation13 + $0x24] sm:$0xf]
        %v3569 = vld [vmem:[#allocation13 + $0x28] sm:$0xf]
        %v3570 = vld [vmem:[#allocation13 + $0x2c] sm:$0xf]
        %v3571 = vld [vmem:[#allocation13 + $0x30] sm:$0xf]
        %v3572 = vld [vmem:[#allocation13 + $0x34] sm:$0xf]
        %v3573 = vld [vmem:[#allocation13 + $0x38] sm:$0xf]
        %v3574 = vld [vmem:[#allocation13 + $0x3c] sm:$0xf]
        %v3575 = vld [vmem:[#allocation13 + $0x40] sm:$0xf]
        %v3576 = vld [vmem:[#allocation13 + $0x44] sm:$0xf]
        %v3577 = vld [vmem:[#allocation13 + $0x48] sm:$0xf]
        %v3578 = vld [vmem:[#allocation13 + $0x4c] sm:$0xf]
        %v3579 = vld [vmem:[#allocation13 + $0x50] sm:$0xf]
        %v3580 = vld [vmem:[#allocation13 + $0x54] sm:$0xf]
        %v3581 = vld [vmem:[#allocation13 + $0x58] sm:$0xf]
        %v3582 = vld [vmem:[#allocation13 + $0x5c] sm:$0xf]
        %v3583 = vld [vmem:[#allocation13 + $0x60] sm:$0xf]
        %v3584 = vld [vmem:[#allocation13 + $0x64] sm:$0xf]
        %v3585 = vld [vmem:[#allocation13 + $0x68] sm:$0xf]
        %v3586 = vld [vmem:[#allocation13 + $0x6c] sm:$0xf]
        %v3587 = vld [vmem:[#allocation13 + $0x70] sm:$0xf]
        %v3588 = vld [vmem:[#allocation13 + $0x74] sm:$0xf]
        %v3589 = vld [vmem:[#allocation13 + $0x78] sm:$0xf]
        %v3590 = vld [vmem:[#allocation13 + $0x7c] sm:$0xf]
        %v3591 = vld [vmem:[#allocation13 + $0x80] sm:$0xf]
        %v3592 = vld [vmem:[#allocation13 + $0x84] sm:$0xf]
        %v3593 = vld [vmem:[#allocation13 + $0x88] sm:$0xf]
        %v3594 = vld [vmem:[#allocation13 + $0x8c] sm:$0xf]
        %v3595 = vld [vmem:[#allocation13 + $0x90] sm:$0xf]
        %v3596 = vld [vmem:[#allocation13 + $0x94] sm:$0xf]
        %v3597 = vld [vmem:[#allocation13 + $0x98] sm:$0xf]
        %v3598 = vld [vmem:[#allocation13 + $0x9c] sm:$0xf]
        %v3599 = vld [vmem:[#allocation13 + $0xa0] sm:$0xf]
        %v3600 = vld [vmem:[#allocation13 + $0xa4] sm:$0xf]
        %v3601 = vld [vmem:[#allocation13 + $0xa8] sm:$0xf]
        %v3602 = vld [vmem:[#allocation13 + $0xac] sm:$0xf]
        %v3603 = vld [vmem:[#allocation13 + $0xb0] sm:$0xf]
        %v3604 = vld [vmem:[#allocation13 + $0xb4] sm:$0xf]
        %v3605 = vld [vmem:[#allocation13 + $0xb8] sm:$0xf]
        %v3606 = vld [vmem:[#allocation13 + $0xbc] sm:$0xf]
        %v3607 = vld [vmem:[#allocation13 + $0xc0] sm:$0xf]
        %v3608 = vld [vmem:[#allocation13 + $0xc4] sm:$0xf]
        %v3609 = vld [vmem:[#allocation13 + $0xc8] sm:$0xf]
        %v3610 = vld [vmem:[#allocation13 + $0xcc] sm:$0xf]
        %v3611 = vld [vmem:[#allocation13 + $0xd0] sm:$0xf]
        %v3612 = vld [vmem:[#allocation13 + $0xd4] sm:$0xf]
        %v3613 = vld [vmem:[#allocation13 + $0xd8] sm:$0xf]
        %v3614 = vld [vmem:[#allocation13 + $0xdc] sm:$0xf]
        %v3615 = vld [vmem:[#allocation13 + $0xe0] sm:$0xf]
        %v3616 = vld [vmem:[#allocation13 + $0xe4] sm:$0xf]
        %v3617 = vld [vmem:[#allocation13 + $0xe8] sm:$0xf]
        %v3618 = vld [vmem:[#allocation13 + $0xec] sm:$0xf]
        %v3619 = vld [vmem:[#allocation13 + $0xf0] sm:$0xf]
        %v3620 = vld [vmem:[#allocation13 + $0xf4] sm:$0xf]
        %v3621 = vld [vmem:[#allocation13 + $0xf8] sm:$0xf]
        %v3622 = vld [vmem:[#allocation13 + $0xfc] sm:$0xf]
        %v3623 = vld [vmem:[%s12] sm:$0x1]
        %v3625 = vlaneseq
        %v3626 = vshrl.u32 %v3625, 7
        %v3627 = vsub.s32 0, %v3626
        %v3628 = vrot.slane %v3623, %v3627
        %v3694 = vunpack.c.l.b16 %v3559
        %v3695 = vunpack.c.l.b16 %v3560
        %v3696 = vunpack.c.l.b16 %v3561
        %v3697 = vunpack.c.l.b16 %v3562
        %v3698 = vunpack.c.l.b16 %v3563
        %v3699 = vunpack.c.l.b16 %v3564
        %v3700 = vunpack.c.l.b16 %v3565
        %v3701 = vunpack.c.l.b16 %v3566
        %v3702 = vunpack.c.l.b16 %v3567
        %v3703 = vunpack.c.l.b16 %v3568
        %v3704 = vunpack.c.l.b16 %v3569
        %v3705 = vunpack.c.l.b16 %v3570
        %v3706 = vunpack.c.l.b16 %v3571
        %v3707 = vunpack.c.l.b16 %v3572
        %v3708 = vunpack.c.l.b16 %v3573
        %v3709 = vunpack.c.l.b16 %v3574
        %v3710 = vunpack.c.l.b16 %v3575
        %v3711 = vunpack.c.l.b16 %v3576
        %v3712 = vunpack.c.l.b16 %v3577
        %v3713 = vunpack.c.l.b16 %v3578
        %v3714 = vunpack.c.l.b16 %v3579
        %v3715 = vunpack.c.l.b16 %v3580
        %v3716 = vunpack.c.l.b16 %v3581
        %v3717 = vunpack.c.l.b16 %v3582
        %v3718 = vunpack.c.l.b16 %v3583
        %v3719 = vunpack.c.l.b16 %v3584
        %v3720 = vunpack.c.l.b16 %v3585
        %v3721 = vunpack.c.l.b16 %v3586
        %v3722 = vunpack.c.l.b16 %v3587
        %v3723 = vunpack.c.l.b16 %v3588
        %v3724 = vunpack.c.l.b16 %v3589
        %v3725 = vunpack.c.l.b16 %v3590
        %v3726 = vunpack.c.l.b16 %v3591
        %v3727 = vunpack.c.l.b16 %v3592
        %v3728 = vunpack.c.l.b16 %v3593
        %v3729 = vunpack.c.l.b16 %v3594
        %v3730 = vunpack.c.l.b16 %v3595
        %v3731 = vunpack.c.l.b16 %v3596
        %v3732 = vunpack.c.l.b16 %v3597
        %v3733 = vunpack.c.l.b16 %v3598
        %v3734 = vunpack.c.l.b16 %v3599
        %v3735 = vunpack.c.l.b16 %v3600
        %v3736 = vunpack.c.l.b16 %v3601
        %v3737 = vunpack.c.l.b16 %v3602
        %v3738 = vunpack.c.l.b16 %v3603
        %v3739 = vunpack.c.l.b16 %v3604
        %v3740 = vunpack.c.l.b16 %v3605
        %v3741 = vunpack.c.l.b16 %v3606
        %v3742 = vunpack.c.l.b16 %v3607
        %v3743 = vunpack.c.l.b16 %v3608
        %v3744 = vunpack.c.l.b16 %v3609
        %v3745 = vunpack.c.l.b16 %v3610
        %v3746 = vunpack.c.l.b16 %v3611
        %v3747 = vunpack.c.l.b16 %v3612
        %v3748 = vunpack.c.l.b16 %v3613
        %v3749 = vunpack.c.l.b16 %v3614
        %v3750 = vunpack.c.l.b16 %v3615
        %v3751 = vunpack.c.l.b16 %v3616
        %v3752 = vunpack.c.l.b16 %v3617
        %v3753 = vunpack.c.l.b16 %v3618
        %v3754 = vunpack.c.l.b16 %v3619
        %v3755 = vunpack.c.l.b16 %v3620
        %v3756 = vunpack.c.l.b16 %v3621
        %v3757 = vunpack.c.l.b16 %v3622
        %v3758 = vpack.c.b16 %v3695, %v3694
        %v3759 = vpack.c.b16 %v3697, %v3696
        %v3760 = vpack.c.b16 %v3699, %v3698
        %v3761 = vpack.c.b16 %v3701, %v3700
        %v3762 = vpack.c.b16 %v3703, %v3702
        %v3763 = vpack.c.b16 %v3705, %v3704
        %v3764 = vpack.c.b16 %v3707, %v3706
        %v3765 = vpack.c.b16 %v3709, %v3708
        %v3766 = vpack.c.b16 %v3711, %v3710
        %v3767 = vpack.c.b16 %v3713, %v3712
        %v3768 = vpack.c.b16 %v3715, %v3714
        %v3769 = vpack.c.b16 %v3717, %v3716
        %v3770 = vpack.c.b16 %v3719, %v3718
        %v3771 = vpack.c.b16 %v3721, %v3720
        %v3772 = vpack.c.b16 %v3723, %v3722
        %v3773 = vpack.c.b16 %v3725, %v3724
        %v3774 = vpack.c.b16 %v3727, %v3726
        %v3775 = vpack.c.b16 %v3729, %v3728
        %v3776 = vpack.c.b16 %v3731, %v3730
        %v3777 = vpack.c.b16 %v3733, %v3732
        %v3778 = vpack.c.b16 %v3735, %v3734
        %v3779 = vpack.c.b16 %v3737, %v3736
        %v3780 = vpack.c.b16 %v3739, %v3738
        %v3781 = vpack.c.b16 %v3741, %v3740
        %v3782 = vpack.c.b16 %v3743, %v3742
        %v3783 = vpack.c.b16 %v3745, %v3744
        %v3784 = vpack.c.b16 %v3747, %v3746
        %v3785 = vpack.c.b16 %v3749, %v3748
        %v3786 = vpack.c.b16 %v3751, %v3750
        %v3787 = vpack.c.b16 %v3753, %v3752
        %v3788 = vpack.c.b16 %v3755, %v3754
        %v3789 = vpack.c.b16 %v3757, %v3756
        %3822 = vmatprep.subr.bf16.mxu0 0
        %3823 = vmatpush1.bf16.msra.mxu0 %v3758
        %3824 = vmatprep.subr.bf16.mxu0 0
        %3825 = vmatpush1.bf16.msra.mxu0 %v3759
        %3826 = vmatprep.subr.bf16.mxu0 0
        %3827 = vmatpush1.bf16.msra.mxu0 %v3760
        %3828 = vmatprep.subr.bf16.mxu0 0
        %3829 = vmatpush1.bf16.msra.mxu0 %v3761
        %3830 = vmatprep.subr.bf16.mxu0 0
        %3831 = vmatpush1.bf16.msra.mxu0 %v3762
        %3832 = vmatprep.subr.bf16.mxu0 0
        %3833 = vmatpush1.bf16.msra.mxu0 %v3763
        %3834 = vmatprep.subr.bf16.mxu0 0
        %3835 = vmatpush1.bf16.msra.mxu0 %v3764
        %3836 = vmatprep.subr.bf16.mxu0 0
        %3837 = vmatpush1.bf16.msra.mxu0 %v3765
        %3838 = vmatprep.subr.bf16.mxu0 0
        %3839 = vmatpush1.bf16.msra.mxu0 %v3766
        %3840 = vmatprep.subr.bf16.mxu0 0
        %3841 = vmatpush1.bf16.msra.mxu0 %v3767
        %3842 = vmatprep.subr.bf16.mxu0 0
        %3843 = vmatpush1.bf16.msra.mxu0 %v3768
        %3844 = vmatprep.subr.bf16.mxu0 0
        %3845 = vmatpush1.bf16.msra.mxu0 %v3769
        %3846 = vmatprep.subr.bf16.mxu0 0
        %3847 = vmatpush1.bf16.msra.mxu0 %v3770
        %3848 = vmatprep.subr.bf16.mxu0 0
        %3849 = vmatpush1.bf16.msra.mxu0 %v3771
        %3850 = vmatprep.subr.bf16.mxu0 0
        %3851 = vmatpush1.bf16.msra.mxu0 %v3772
        %3852 = vmatprep.subr.bf16.mxu0 0
        %3853 = vmatpush1.bf16.msra.mxu0 %v3773
        %3854 = vmatprep.mubr.bf16.mxu0 %v3552
        %3855 = vmatmul.mubr.bf16.gmra.mrb[0].mxu0 %v3551
        %v3856 = vpop.f32.mrb[0].mxu0
        %v3857 = vadd.f32 %v3628, %v3856
        %v3858 = vpop.f32.mrb[0].mxu0
        %v3859 = vpop.f32.mrb[0].mxu0
        %v3860 = vadd.f32 %v3628, %v3859
        %v3861 = vpop.f32.mrb[0].mxu0
        %3862 = vmatprep.mubr.bf16.mxu0 %v3556
        %3863 = vmatmul.mubr.bf16.gmra.mrb[0].mxu0 %v3555
        %v3864 = vpop.f32.mrb[0].mxu0
        %v3865 = vadd.f32 %v3628, %v3864
        %v3866 = vpop.f32.mrb[0].mxu0
        %v3867 = vpop.f32.mrb[0].mxu0
        %v3868 = vadd.f32 %v3628, %v3867
        %v3869 = vpop.f32.mrb[0].mxu0
        %3870 = vdwg.mxu0
        %3871 = vmatprep.subr.bf16.mxu0 0
        %3872 = vmatpush1.bf16.msra.mxu0 %v3774
        %3873 = vmatprep.subr.bf16.mxu0 0
        %3874 = vmatpush1.bf16.msra.mxu0 %v3775
        %3875 = vmatprep.subr.bf16.mxu0 0
        %3876 = vmatpush1.bf16.msra.mxu0 %v3776
        %3877 = vmatprep.subr.bf16.mxu0 0
        %3878 = vmatpush1.bf16.msra.mxu0 %v3777
        %3879 = vmatprep.subr.bf16.mxu0 0
        %3880 = vmatpush1.bf16.msra.mxu0 %v3778
        %3881 = vmatprep.subr.bf16.mxu0 0
        %3882 = vmatpush1.bf16.msra.mxu0 %v3779
        %3883 = vmatprep.subr.bf16.mxu0 0
        %3884 = vmatpush1.bf16.msra.mxu0 %v3780
        %3885 = vmatprep.subr.bf16.mxu0 0
        %3886 = vmatpush1.bf16.msra.mxu0 %v3781
        %3887 = vmatprep.subr.bf16.mxu0 0
        %3888 = vmatpush1.bf16.msra.mxu0 %v3782
        %3889 = vmatprep.subr.bf16.mxu0 0
        %3890 = vmatpush1.bf16.msra.mxu0 %v3783
        %3891 = vmatprep.subr.bf16.mxu0 0
        %3892 = vmatpush1.bf16.msra.mxu0 %v3784
        %3893 = vmatprep.subr.bf16.mxu0 0
        %3894 = vmatpush1.bf16.msra.mxu0 %v3785
        %3895 = vmatprep.subr.bf16.mxu0 0
        %3896 = vmatpush1.bf16.msra.mxu0 %v3786
        %3897 = vmatprep.subr.bf16.mxu0 0
        %3898 = vmatpush1.bf16.msra.mxu0 %v3787
        %3899 = vmatprep.subr.bf16.mxu0 0
        %3900 = vmatpush1.bf16.msra.mxu0 %v3788
        %3901 = vmatprep.subr.bf16.mxu0 0
        %3902 = vmatpush1.bf16.msra.mxu0 %v3789
        %3903 = vmatprep.mubr.bf16.mxu0 %v3554
        %3904 = vmatmul.mubr.bf16.gmra.mrb[0].mxu0 %v3553
        %v3905 = vpop.f32.mrb[0].mxu0
        %v3906 = vadd.f32 %v3857, %v3905
        %v3907 = vpop.f32.mrb[0].mxu0
        %v3908 = vpop.f32.mrb[0].mxu0
        %v3909 = vadd.f32 %v3860, %v3908
        %v3910 = vpop.f32.mrb[0].mxu0
        %3911 = vmatprep.mubr.bf16.mxu0 %v3558
        %3912 = vmatmul.mubr.bf16.gmra.mrb[0].mxu0 %v3557
        %v3913 = vpop.f32.mrb[0].mxu0
        %v3914 = vadd.f32 %v3865, %v3913
        %v3915 = vpop.f32.mrb[0].mxu0
        %v3916 = vpop.f32.mrb[0].mxu0
        %v3917 = vadd.f32 %v3868, %v3916
        %v3918 = vpop.f32.mrb[0].mxu0
        %3919 = vdwg.mxu0
        %v3920 = vadd.f32 %v3015, %v3906
        %v3921 = vadd.f32 %v3016, %v3909
        %v3922 = vadd.f32 %v3017, %v3914
        %v3923 = vadd.f32 %v3018, %v3917
        %3924 = vst [vmem:[%s542] sm:$0xff] %v3920
        %3925 = vst [vmem:[%s542 + $0x8] sm:$0xff] %v3921
        %3926 = vst [vmem:[%s542 + $0x10] sm:$0xff] %v3922
        %3927 = vst [vmem:[%s542 + $0x18] sm:$0xff] %v3923
        %s3928 = sand.u32 %s319, 1
        %s3929 = scalar_lea.sflag [#allocation4], %s3928
        %s3930 = sand.u32 %s319, 1
        %s3931 = smul.addr %s3930, 32
        %s3932 = scalar_lea.vmem [#allocation14], %s3931
        // Predicated region
        $region101: #{tpu_custom_call.1} parent=71 // pred_check
          %p3933 = pneg %p329
        $region102: #{tpu_custom_call.1} parent=71 // pred_check_branch
          %3935 = sbr.rel (%p3933) target = $region104
        $region103: #{tpu_custom_call.1} parent=71 // pred_region
          %s3936 = smul.u32 2, %s33
          %s3938 = ssub.s32 512, 512
          %3939 = vsyncadd %s3929, %s3938
          %s3940 = smul.addr %s3936, 2
          %s3941 = smul.addr %s3940, 128
          %s3942 = scalar_lea.hbm %s13, %s3941
          %s3943 = sshll.u32 %s3932, 4
          %s3944 = int_to_ptr.vmem [resolvable:$true] %s3943
          %3949 = dma.vmem_to_hbm [thread:$0]  %s3944, 512, %s3942, %s3929, 128, 128, 8
        $region104: #{tpu_custom_call.1} parent=71 // pred_fallthru
          _
      $region72: #{tpu_custom_call.1} parent=5 // pred_fallthru
        _
      %p3950 = scmp.le.s32.totalorder 2, %s28
      // Predicated region
      $region105: #{tpu_custom_call.1} parent=5 // pred_check
        %p3951 = pneg %p3950
      $region106: #{tpu_custom_call.1} parent=5 // pred_check_branch
        %3953 = sbr.rel (%p3951) target = $region108
      $region107: #{tpu_custom_call.1} parent=5 // pred_region
        %s3954 = ssub.s32 %s28, 2
        // Predicated region
        $region109: #{tpu_custom_call.1} parent=107 // pred_check
          %p3955 = pneg %p335
        $region110: #{tpu_custom_call.1} parent=107 // pred_check_branch
          %3957 = sbr.rel (%p3955) target = $region112
        $region111: #{tpu_custom_call.1} parent=107 // pred_region
          %s3958 = sand.u32 %s320, 1
          %s3959 = scalar_lea.sflag [#allocation4], %s3958
          %s3960 = sand.u32 %s320, 1
          %s3961 = smul.addr %s3960, 32
          %s3962 = scalar_lea.vmem [#allocation14], %s3961
          %3963 = dma.done %s3959, 512
        $region112: #{tpu_custom_call.1} parent=107 // pred_fallthru
          _
      $region108: #{tpu_custom_call.1} parent=5 // pred_fallthru
        _
    $region6: #{tpu_custom_call.1} parent=1 // loop_footer
      %s32 = sadd.s32 1, %s28
    $region7: #{tpu_custom_call.1} parent=1 // loop_footer_branch
      %27 = sbr.rel target = $region3
    $region8: #{tpu_custom_call.1} parent=1 // loop_exit
      _
    %3964 = vsyncpa [#allocation3], 1
    %s3965 = scalar_lea.sflag [#allocation3], 1
    %3966 = vsyncpa %s3965, 1
    %3967 = vsyncpa [#allocation6], 1
    %3968 = vsyncpa [#allocation9], 1
    %3969 = vsyncpa [#allocation12], 1
    %3970 = vsyncpa [#allocation4], 1
    %s3971 = scalar_lea.sflag [#allocation4], 1
    %3972 = vsyncpa %s3971, 1

</llo_original>
